<compile_context>
chip_gen: v5e
topology: v5e:2x2
jax: 0.10.0
libtpu: 0.0.40
codegen_flags: <defaults>
</compile_context>

<pallas_src>
import functools

import numpy as np
import jax
import jax.numpy as jnp
from jax import lax
from jax.experimental import pallas as pl
from jax.experimental.pallas import tpu as pltpu


AST_LN_EPS = 1e-12      # HF ASTConfig layer_norm_eps default
TORCH_LN_EPS = 1e-5     # torch LayerNorm default
PATCH_SIZE = 16         # ASTConfig defaults
FREQ_STRIDE = 10
TIME_STRIDE = 10

_INV_SQRT2 = np.float32(1.0 / np.sqrt(2.0))


# --------------------------------------------------------------------- in-kernel helpers

def _ln(x, g, b, eps):
    mu = jnp.mean(x, axis=-1, keepdims=True)
    var = jnp.mean(jnp.square(x - mu), axis=-1, keepdims=True)
    return (x - mu) * lax.rsqrt(var + eps) * g + b


def _gelu(y):   # exact erf-GELU (HF AST default "gelu")
    return 0.5 * y * (1.0 + lax.erf(y * _INV_SQRT2))


def _softmax_rows(s):
    s = s - jnp.max(s, axis=-1, keepdims=True)
    p = jnp.exp(s)
    return p / jnp.sum(p, axis=-1, keepdims=True)   # exact division (perf-review parity note)


def _mha(x, wq, bq, wkv, bkv, wo, bo, *, nhead, hidden, dh):
    """Multi-head self-attention on one (S, hidden) slab.

    * K/V: ONE fused transposed matmul -> kv_t (2*hidden, S); per-head slices are 8-aligned
      sublane slices (no 8-lane column slicing / relayout filler).
    * Q: per-head (hidden, dh) weight indexed on a leading axis, so scores are standard
      (S, dh) @ (dh, S) matmuls and P@V is the A @ B^T form.
    * Per-head outputs are folded directly into the output projection (no concat/transpose).
    """
    scale = np.float32(1.0 / np.sqrt(dh))
    kv_t = lax.dot_general(wkv, x, (((1,), (1,)), ((), ())),
                           preferred_element_type=jnp.float32) + bkv        # (2*hidden, S)
    out = bo                                                                # (1, hidden)
    for h in range(nhead):
        q = jnp.dot(x, wq[h], preferred_element_type=jnp.float32) + bq[h]   # (S, dh)
        k_t = kv_t[h * dh:(h + 1) * dh, :]                                  # (dh, S)
        v_t = kv_t[hidden + h * dh: hidden + (h + 1) * dh, :]               # (dh, S)
        s = jnp.dot(q, k_t, preferred_element_type=jnp.float32) * scale     # (S, S)
        p = _softmax_rows(s)
        o = lax.dot_general(p, v_t, (((1,), (1,)), ((), ())),
                            preferred_element_type=jnp.float32)             # (S, dh)
        out = out + jnp.dot(o, wo[h], preferred_element_type=jnp.float32)   # fold into out-proj
    return out


# --------------------------------------------------------------------- fully fused kernel

def _make_fused_kernel(*, n_enc, n_dec, nhead, hidden, ff, dh, S, n_mels):
    """One kernel = the whole forward for a single batch element."""

    def kernel(*refs):
        it = iter(refs)
        pm_ref = next(it)
        tokpos_ref = next(it)
        patch_w_ref = next(it)
        enc_ws = [tuple(next(it) for _ in range(5)) for _ in range(n_enc)]
        fc_enc_w_ref = next(it)
        fc_dec_w_ref = next(it)
        if n_dec > 0:
            dec_ws = [tuple(next(it) for _ in range(7)) for _ in range(n_dec)]
        else:
            dec_lin_w_ref = next(it)
        out1_w_ref = next(it)
        out2_wt_ref = next(it)
        vh_ref = next(it)          # packed hidden-width LN gains / biases
        vff_ref = next(it)         # packed ff-width biases
        bq_ref = next(it)          # packed per-attention Q biases     (n_attn, nhead, 1, dh)
        bkv_ref = next(it)         # packed per-attention K/V biases   (n_attn, 2*hidden, 1)
        fc_enc_b_ref = next(it)
        out2_b_ref = next(it)
        recon_ref = next(it)
        z_ref = next(it)

        VH = vh_ref[...]
        VFF = vff_ref[...]
        BQ = bq_ref[...]
        BKV = bkv_ref[...]

        def vrow(i):               # (1, hidden) row of the packed vector table
            return VH[i:i + 1, :]

        # ---- AST embedding: patch matmul + (cls/dist/patch-bias/pos-emb) all in tokpos;
        #      the two token rows never hit the MXU.
        pe = jnp.dot(pm_ref[0].astype(jnp.float32), patch_w_ref[...],
                     preferred_element_type=jnp.float32)                    # (n_patch, hidden)
        tokpos = tokpos_ref[...]
        h = jnp.concatenate([tokpos[:2, :], tokpos[2:, :] + pe], axis=0)    # (S, hidden)

        row = 0
        attn = 0

        # ---- AST encoder layers (pre-LN ViT block, exact-GELU MLP)
        for l in range(n_enc):
            wq, wkv, wo, fiw, fow = (r[...] for r in enc_ws[l])
            g1, b1, ob, g2, b2, fob = (vrow(row + i) for i in range(6))
            row += 6
            fib = VFF[l:l + 1, :]
            ln1 = _ln(h, g1, b1, AST_LN_EPS)
            h = h + _mha(ln1, wq, BQ[attn], wkv, BKV[attn], wo, ob,
                         nhead=nhead, hidden=hidden, dh=dh)
            attn += 1
            ln2 = _ln(h, g2, b2, AST_LN_EPS)
            mid = _gelu(jnp.dot(ln2, fiw, preferred_element_type=jnp.float32) + fib)
            h = h + jnp.dot(mid, fow, preferred_element_type=jnp.float32) + fob

        # ---- final AST LayerNorm + fc_enc (CLS row) + fc_dec (all resident, no extra launch)
        eg, eb, fdb = vrow(row), vrow(row + 1), vrow(row + 2)
        row += 3
        enc_out = _ln(h, eg, eb, AST_LN_EPS)                                # (S, hidden)
        cls = enc_out[0:1, :]                                               # (1, hidden)
        z = jnp.dot(cls, fc_enc_w_ref[...],
                    preferred_element_type=jnp.float32) + fc_enc_b_ref[...]  # (1, latent)
        z_ref[0] = z.astype(z_ref.dtype)
        # TODO(synk): training-only latent Gaussian noise (torch.randn_like) skipped - eval fwd.
        dec_inp = jnp.dot(z, fc_dec_w_ref[...],
                          preferred_element_type=jnp.float32) + fdb         # (1, hidden)

        # ---- decoder
        if n_dec > 0:
            x = enc_out     # tgt = enc_out; memory = dec_inp (length-1 sequence)
            for l in range(n_dec):
                wq, wkv, wo, cavw, caow, l1w, l2w = (r[...] for r in dec_ws[l])
                (n1g, n1b, sob, cavb, caob,
                 n2g, n2b, l2b, n3g, n3b) = (vrow(row + i) for i in range(10))
                row += 10
                l1b = VFF[n_enc + l:n_enc + l + 1, :]
                # post-LN self-attention block (nn.TransformerDecoderLayer defaults, no mask)
                x = _ln(x + _mha(x, wq, BQ[attn], wkv, BKV[attn], wo, sob,
                                 nhead=nhead, hidden=hidden, dh=dh),
                        n1g, n1b, TORCH_LN_EPS)
                attn += 1
                # cross-attention over a length-1 memory: softmax over one key is exactly 1.0,
                # so Q/K projections cancel and the block is out_proj(v_proj(memory)) broadcast.
                v_mem = jnp.dot(dec_inp, cavw, preferred_element_type=jnp.float32) + cavb
                ca = jnp.dot(v_mem, caow, preferred_element_type=jnp.float32) + caob  # (1,hidden)
                x = _ln(x + ca, n2g, n2b, TORCH_LN_EPS)
                # feed-forward block (ReLU) + add & norm
                f = jnp.maximum(jnp.dot(x, l1w, preferred_element_type=jnp.float32) + l1b, 0.0)
                x = _ln(x + jnp.dot(f, l2w, preferred_element_type=jnp.float32) + l2b,
                        n3g, n3b, TORCH_LN_EPS)
            dec_out = x
        else:
            dlb = vrow(row)
            row += 1
            hdec = jnp.maximum(jnp.dot(dec_inp, dec_lin_w_ref[...],
                                       preferred_element_type=jnp.float32) + dlb, 0.0)
            dec_out = jnp.broadcast_to(hdec, (S, hidden))

        # ---- output head: Linear -> ReLU -> Linear, emitted directly as (n_mels, S)
        o1b = vrow(row)
        mid = jnp.maximum(jnp.dot(dec_out, out1_w_ref[...],
                                  preferred_element_type=jnp.float32) + o1b, 0.0)      # (S, hidden)
        # out2 weight kept in (out, in) orientation -> A @ B^T gives the transposed layout
        r_t = lax.dot_general(out2_wt_ref[...], mid, (((1,), (1,)), ((), ())),
                              preferred_element_type=jnp.float32) + out2_b_ref[...]    # (n_mels, S)
        recon_ref[0] = r_t.astype(recon_ref.dtype)

    return kernel


def _rep(arr):
    """Full-array block replicated across the batch grid (weights/biases)."""
    nd = arr.ndim
    return pl.BlockSpec(tuple(arr.shape), lambda *_: (0,) * nd)


# --------------------------------------------------------------------- model forward

def _im2col_indices(n_mels, T, H, W):
    """Flat gather indices producing (H*W, ps*ps) rows in Conv2d-flatten order (kh, kw)."""
    idx = np.empty((H * W, PATCH_SIZE * PATCH_SIZE), np.int32)
    p = 0
    for hh in range(H):
        for ww in range(W):
            rows = hh * FREQ_STRIDE + np.arange(PATCH_SIZE)
            cols = ww * TIME_STRIDE + np.arange(PATCH_SIZE)
            idx[p] = (rows[:, None] * T + cols[None, :]).reshape(-1)
            p += 1
    return idx.reshape(-1)


def branch_transformer_ae_forward(params, x, cfg):
    """x: (B, 1, n_mels, time) -> (recon (B, 1, n_mels, seq_len), z (B, latent))."""
    B = x.shape[0]
    hidden = cfg["transformer_hidden"]
    nhead = cfg["transformer_nhead"]
    ff = cfg["transformer_ff"]
    n_mels = cfg["n_mels"]
    T = cfg["frames"]
    n_enc = cfg["transformer_layers"]
    n_dec = cfg["decoder_layers"]
    dh = hidden // nhead
    H = (n_mels - PATCH_SIZE) // FREQ_STRIDE + 1
    W = (T - PATCH_SIZE) // TIME_STRIDE + 1
    n_patch = H * W
    S = 2 + n_patch
    latent = params["fc_enc_w"].shape[1]

    # --- strided/overlapping im2col as ONE constant-index XLA gather; everything else is fused.
    img = x[:, 0, :, :].reshape(B, n_mels * T)
    idx = jnp.asarray(_im2col_indices(n_mels, T, H, W))
    pm = jnp.take(img, idx, axis=1).reshape(B, n_patch, PATCH_SIZE * PATCH_SIZE)

    flat = [pm, params["tokpos"], params["patch_w"]]
    for lp in params["enc_layers"]:
        flat += [lp["wq"], lp["wkv"], lp["wo"], lp["fi_w"], lp["fo_w"]]
    flat += [params["fc_enc_w"], params["fc_dec_w"]]
    if n_dec > 0:
        for lp in params["dec_layers"]:
            flat += [lp["wq"], lp["wkv"], lp["wo"],
                     lp["ca_vw"], lp["ca_ow"], lp["l1_w"], lp["l2_w"]]
    else:
        flat += [params["dec_lin_w"]]
    flat += [params["out1_w"], params["out2_wt"],
             params["vh"], params["vff"], params["bq_all"], params["bkv_all"],
             params["fc_enc_b"], params["out2_b"]]

    in_specs = [pl.BlockSpec((1, n_patch, PATCH_SIZE * PATCH_SIZE), lambda b: (b, 0, 0))]
    in_specs += [_rep(a) for a in flat[1:]]

    kernel = _make_fused_kernel(n_enc=n_enc, n_dec=n_dec, nhead=nhead, hidden=hidden,
                                ff=ff, dh=dh, S=S, n_mels=n_mels)

    recon3, z3 = pl.pallas_call(
        kernel,
        grid=(B,),
        in_specs=in_specs,
        out_specs=(
            pl.BlockSpec((1, n_mels, S), lambda b: (b, 0, 0)),
            pl.BlockSpec((1, 1, latent), lambda b: (b, 0, 0)),
        ),
        out_shape=(
            jax.ShapeDtypeStruct((B, n_mels, S), jnp.float32),
            jax.ShapeDtypeStruct((B, 1, latent), jnp.float32),
        ),
        compiler_params=pltpu.CompilerParams(dimension_semantics=("parallel",)),
    )(*flat)

    recon = recon3[:, None, :, :]           # (B, 1, n_mels, S) - layout already emitted by kernel
    z = z3.reshape(B, latent)
    return recon, z


# --------------------------------------------------------------------- params

def init_params(key, cfg, latent_dim):
    hidden = cfg["transformer_hidden"]
    ff = cfg["transformer_ff"]
    nhead = cfg["transformer_nhead"]
    dh = hidden // nhead
    n_mels = cfg["n_mels"]
    n_enc = cfg["transformer_layers"]
    n_dec = cfg["decoder_layers"]
    H = (n_mels - PATCH_SIZE) // FREQ_STRIDE + 1
    W = (cfg["frames"] - PATCH_SIZE) // TIME_STRIDE + 1
    S = 2 + H * W

    keys = iter(jax.random.split(key, 512))

    def w(*shape):
        return jax.random.normal(next(keys), shape, jnp.float32) * 0.02

    def zeros(*shape):
        return jnp.zeros(shape, jnp.float32)

    def ones(*shape):
        return jnp.ones(shape, jnp.float32)

    # tokpos = [cls; dist; patch-conv bias rows] + positional embedding, precomputed ONCE.
    cls_tok, dist_tok, patch_b = w(1, hidden), w(1, hidden), zeros(1, hidden)
    pos_emb = w(S, hidden)
    tokpos = jnp.concatenate(
        [cls_tok, dist_tok, jnp.broadcast_to(patch_b, (H * W, hidden))], axis=0) + pos_emb

    params = {
        "patch_w": w(PATCH_SIZE * PATCH_SIZE, hidden),     # conv-as-im2col weight
        "tokpos": tokpos,
        "fc_enc_w": w(hidden, latent_dim), "fc_enc_b": zeros(1, latent_dim),
        "fc_dec_w": w(latent_dim, hidden),
        "out1_w": w(hidden, hidden),
        "out2_wt": w(n_mels, hidden),                      # (out, in): head emits (n_mels, S)
        "out2_b": zeros(n_mels, 1),
    }

    vh_rows, vff_rows, bq_rows, bkv_rows = [], [], [], []

    enc_layers = []
    for _ in range(n_enc):
        enc_layers.append({
            "wq": w(nhead, hidden, dh),        # per-head Q projection
            "wkv": w(2 * hidden, hidden),      # fused K/V projection (transposed orientation)
            "wo": w(nhead, dh, hidden),        # out-proj split per head (folded concat)
            "fi_w": w(hidden, ff),
            "fo_w": w(ff, hidden),
        })
        # ln1_g, ln1_b, attn_out_b, ln2_g, ln2_b, fo_b
        vh_rows += [ones(hidden), zeros(hidden), zeros(hidden),
                    ones(hidden), zeros(hidden), zeros(hidden)]
        vff_rows.append(zeros(ff))             # fi_b
        bq_rows.append(zeros(nhead, 1, dh))
        bkv_rows.append(zeros(2 * hidden, 1))
    params["enc_layers"] = enc_layers

    # enc_ln_g, enc_ln_b, fc_dec_b
    vh_rows += [ones(hidden), zeros(hidden), zeros(hidden)]

    if n_dec > 0:
        dec_layers = []
        for _ in range(n_dec):
            dec_layers.append({
                "wq": w(nhead, hidden, dh),
                "wkv": w(2 * hidden, hidden),
                "wo": w(nhead, dh, hidden),
                # cross-attn over a length-1 memory: only V and out-proj matter (exact elision)
                "ca_vw": w(hidden, hidden),
                "ca_ow": w(hidden, hidden),
                "l1_w": w(hidden, ff),
                "l2_w": w(ff, hidden),
            })
            # n1_g, n1_b, sa_out_b, ca_vb, ca_ob, n2_g, n2_b, l2_b, n3_g, n3_b
            vh_rows += [ones(hidden), zeros(hidden), zeros(hidden), zeros(hidden), zeros(hidden),
                        ones(hidden), zeros(hidden), zeros(hidden), ones(hidden), zeros(hidden)]
            vff_rows.append(zeros(ff))         # l1_b
            bq_rows.append(zeros(nhead, 1, dh))
            bkv_rows.append(zeros(2 * hidden, 1))
        params["dec_layers"] = dec_layers
    else:
        params["dec_lin_w"] = w(hidden, hidden)
        vh_rows += [zeros(hidden)]             # dec_lin_b

    vh_rows += [zeros(hidden)]                 # out1_b

    params["vh"] = jnp.stack(vh_rows, axis=0)
    params["vff"] = jnp.stack(vff_rows, axis=0)
    params["bq_all"] = jnp.stack(bq_rows, axis=0)
    params["bkv_all"] = jnp.stack(bkv_rows, axis=0)
    return params


# --------------------------------------------------------------------- main

if __name__ == "__main__":
    cfg = dict(
        transformer_hidden=32,
        transformer_nhead=4,
        transformer_ff=64,
        transformer_layers=2,
        transformer_dropout=0.0,
        n_mels=16,
        frames=96,
        decoder_layers=1,
        latent_noise_std=0.0,
    )
    latent_dim = 8
    B = 2

    key = jax.random.PRNGKey(0)
    pkey, xkey = jax.random.split(key)
    params = init_params(pkey, cfg, latent_dim)
    x = jax.random.normal(xkey, (B, 1, cfg["n_mels"], cfg["frames"]), jnp.float32)

    fwd = jax.jit(functools.partial(branch_transformer_ae_forward, cfg=cfg))
    recon, z = fwd(params, x)
    jax.block_until_ready((recon, z))

    H = (cfg["n_mels"] - PATCH_SIZE) // FREQ_STRIDE + 1
    W = (cfg["frames"] - PATCH_SIZE) // TIME_STRIDE + 1
    seq_len = 2 + H * W
    assert recon.shape == (B, 1, cfg["n_mels"], seq_len), recon.shape
    assert z.shape == (B, latent_dim), z.shape
    assert bool(jnp.all(jnp.isfinite(recon))) and bool(jnp.all(jnp.isfinite(z)))
    print("KERNEL_OK")
</pallas_src>

<mosaic_0001>
module attributes {stable_mosaic.version = 11 : i64} {
  func.func @kernel(%arg0: i32, %arg1: memref<1x9x256xf32, #tpu.memory_space<vmem>>, %arg2: memref<11x32xf32, #tpu.memory_space<vmem>>, %arg3: memref<256x32xf32, #tpu.memory_space<vmem>>, %arg4: memref<4x32x8xf32, #tpu.memory_space<vmem>>, %arg5: memref<64x32xf32, #tpu.memory_space<vmem>>, %arg6: memref<4x8x32xf32, #tpu.memory_space<vmem>>, %arg7: memref<32x64xf32, #tpu.memory_space<vmem>>, %arg8: memref<64x32xf32, #tpu.memory_space<vmem>>, %arg9: memref<4x32x8xf32, #tpu.memory_space<vmem>>, %arg10: memref<64x32xf32, #tpu.memory_space<vmem>>, %arg11: memref<4x8x32xf32, #tpu.memory_space<vmem>>, %arg12: memref<32x64xf32, #tpu.memory_space<vmem>>, %arg13: memref<64x32xf32, #tpu.memory_space<vmem>>, %arg14: memref<32x8xf32, #tpu.memory_space<vmem>>, %arg15: memref<8x32xf32, #tpu.memory_space<vmem>>, %arg16: memref<4x32x8xf32, #tpu.memory_space<vmem>>, %arg17: memref<64x32xf32, #tpu.memory_space<vmem>>, %arg18: memref<4x8x32xf32, #tpu.memory_space<vmem>>, %arg19: memref<32x32xf32, #tpu.memory_space<vmem>>, %arg20: memref<32x32xf32, #tpu.memory_space<vmem>>, %arg21: memref<32x64xf32, #tpu.memory_space<vmem>>, %arg22: memref<64x32xf32, #tpu.memory_space<vmem>>, %arg23: memref<32x32xf32, #tpu.memory_space<vmem>>, %arg24: memref<16x32xf32, #tpu.memory_space<vmem>>, %arg25: memref<26x32xf32, #tpu.memory_space<vmem>>, %arg26: memref<3x64xf32, #tpu.memory_space<vmem>>, %arg27: memref<3x4x1x8xf32, #tpu.memory_space<vmem>>, %arg28: memref<3x64x1xf32, #tpu.memory_space<vmem>>, %arg29: memref<1x8xf32, #tpu.memory_space<vmem>>, %arg30: memref<16x1xf32, #tpu.memory_space<vmem>>, %arg31: memref<1x16x11xf32, #tpu.memory_space<vmem>>, %arg32: memref<1x1x8xf32, #tpu.memory_space<vmem>>) attributes {dimension_semantics = [#tpu.dimension_semantics<parallel>], iteration_bounds = array<i64: 2>, scalar_prefetch = 0 : i64, scratch_operands = 0 : i64, tpu.core_type = #tpu.core_type<tc>, window_params = [{transform_indices = @transform_0, window_bounds = array<i64: 1, 9, 256>}, {pipeline_mode = #tpu.pipeline_mode<synchronous>, transform_indices = @transform_1, window_bounds = array<i64: 11, 32>}, {pipeline_mode = #tpu.pipeline_mode<synchronous>, transform_indices = @transform_2, window_bounds = array<i64: 256, 32>}, {pipeline_mode = #tpu.pipeline_mode<synchronous>, transform_indices = @transform_3, window_bounds = array<i64: 4, 32, 8>}, {pipeline_mode = #tpu.pipeline_mode<synchronous>, transform_indices = @transform_4, window_bounds = array<i64: 64, 32>}, {pipeline_mode = #tpu.pipeline_mode<synchronous>, transform_indices = @transform_5, window_bounds = array<i64: 4, 8, 32>}, {pipeline_mode = #tpu.pipeline_mode<synchronous>, transform_indices = @transform_6, window_bounds = array<i64: 32, 64>}, {pipeline_mode = #tpu.pipeline_mode<synchronous>, transform_indices = @transform_7, window_bounds = array<i64: 64, 32>}, {pipeline_mode = #tpu.pipeline_mode<synchronous>, transform_indices = @transform_8, window_bounds = array<i64: 4, 32, 8>}, {pipeline_mode = #tpu.pipeline_mode<synchronous>, transform_indices = @transform_9, window_bounds = array<i64: 64, 32>}, {pipeline_mode = #tpu.pipeline_mode<synchronous>, transform_indices = @transform_10, window_bounds = array<i64: 4, 8, 32>}, {pipeline_mode = #tpu.pipeline_mode<synchronous>, transform_indices = @transform_11, window_bounds = array<i64: 32, 64>}, {pipeline_mode = #tpu.pipeline_mode<synchronous>, transform_indices = @transform_12, window_bounds = array<i64: 64, 32>}, {pipeline_mode = #tpu.pipeline_mode<synchronous>, transform_indices = @transform_13, window_bounds = array<i64: 32, 8>}, {pipeline_mode = #tpu.pipeline_mode<synchronous>, transform_indices = @transform_14, window_bounds = array<i64: 8, 32>}, {pipeline_mode = #tpu.pipeline_mode<synchronous>, transform_indices = @transform_15, window_bounds = array<i64: 4, 32, 8>}, {pipeline_mode = #tpu.pipeline_mode<synchronous>, transform_indices = @transform_16, window_bounds = array<i64: 64, 32>}, {pipeline_mode = #tpu.pipeline_mode<synchronous>, transform_indices = @transform_17, window_bounds = array<i64: 4, 8, 32>}, {pipeline_mode = #tpu.pipeline_mode<synchronous>, transform_indices = @transform_18, window_bounds = array<i64: 32, 32>}, {pipeline_mode = #tpu.pipeline_mode<synchronous>, transform_indices = @transform_19, window_bounds = array<i64: 32, 32>}, {pipeline_mode = #tpu.pipeline_mode<synchronous>, transform_indices = @transform_20, window_bounds = array<i64: 32, 64>}, {pipeline_mode = #tpu.pipeline_mode<synchronous>, transform_indices = @transform_21, window_bounds = array<i64: 64, 32>}, {pipeline_mode = #tpu.pipeline_mode<synchronous>, transform_indices = @transform_22, window_bounds = array<i64: 32, 32>}, {pipeline_mode = #tpu.pipeline_mode<synchronous>, transform_indices = @transform_23, window_bounds = array<i64: 16, 32>}, {pipeline_mode = #tpu.pipeline_mode<synchronous>, transform_indices = @transform_24, window_bounds = array<i64: 26, 32>}, {pipeline_mode = #tpu.pipeline_mode<synchronous>, transform_indices = @transform_25, window_bounds = array<i64: 3, 64>}, {pipeline_mode = #tpu.pipeline_mode<synchronous>, transform_indices = @transform_26, window_bounds = array<i64: 3, 4, 1, 8>}, {pipeline_mode = #tpu.pipeline_mode<synchronous>, transform_indices = @transform_27, window_bounds = array<i64: 3, 64, 1>}, {pipeline_mode = #tpu.pipeline_mode<synchronous>, transform_indices = @transform_28, window_bounds = array<i64: 1, 8>}, {pipeline_mode = #tpu.pipeline_mode<synchronous>, transform_indices = @transform_29, window_bounds = array<i64: 16, 1>}, {transform_indices = @transform_30, window_bounds = array<i64: 1, 16, 11>}, {transform_indices = @transform_31, window_bounds = array<i64: 1, 1, 8>}]} {
    %c0 = arith.constant 0 : index
    %c0_0 = arith.constant 0 : index
    %0 = vector.load %arg25[%c0, %c0_0] : memref<26x32xf32, #tpu.memory_space<vmem>>, vector<26x32xf32>
    %c0_1 = arith.constant 0 : index
    %c0_2 = arith.constant 0 : index
    %1 = vector.load %arg26[%c0_1, %c0_2] : memref<3x64xf32, #tpu.memory_space<vmem>>, vector<3x64xf32>
    %c0_3 = arith.constant 0 : index
    %c0_4 = arith.constant 0 : index
    %c0_5 = arith.constant 0 : index
    %c0_6 = arith.constant 0 : index
    %2 = vector.load %arg27[%c0_3, %c0_4, %c0_5, %c0_6] : memref<3x4x1x8xf32, #tpu.memory_space<vmem>>, vector<3x4x1x8xf32>
    %c0_7 = arith.constant 0 : index
    %c0_8 = arith.constant 0 : index
    %c0_9 = arith.constant 0 : index
    %3 = vector.load %arg28[%c0_7, %c0_8, %c0_9] : memref<3x64x1xf32, #tpu.memory_space<vmem>>, vector<3x64x1xf32>
    %c0_10 = arith.constant 0 : index
    %c0_11 = arith.constant 0 : index
    %c0_12 = arith.constant 0 : index
    %4 = vector.load %arg1[%c0_10, %c0_11, %c0_12] : memref<1x9x256xf32, #tpu.memory_space<vmem>>, vector<1x9x256xf32>
    %5 = vector.shape_cast %4 : vector<1x9x256xf32> to vector<9x256xf32>
    %c0_13 = arith.constant 0 : index
    %c0_14 = arith.constant 0 : index
    %6 = vector.load %arg3[%c0_13, %c0_14] : memref<256x32xf32, #tpu.memory_space<vmem>>, vector<256x32xf32>
    %cst = arith.constant dense<0.000000e+00> : vector<9x32xf32>
    %7 = tpu.matmul %5, %6, %cst {dimension_numbers = #tpu.dot_dimension_numbers<[1], [0], [0], [1], [0, 0, 1, 1], [], []>} : vector<9x256xf32>, vector<256x32xf32>, vector<9x32xf32> -> vector<9x32xf32>
    %c0_15 = arith.constant 0 : index
    %c0_16 = arith.constant 0 : index
    %8 = vector.load %arg2[%c0_15, %c0_16] : memref<11x32xf32, #tpu.memory_space<vmem>>, vector<11x32xf32>
    %9 = vector.extract_strided_slice %8 {offsets = [0, 0], sizes = [2, 32], strides = [1, 1]} : vector<11x32xf32> to vector<2x32xf32>
    %10 = vector.extract_strided_slice %8 {offsets = [2, 0], sizes = [9, 32], strides = [1, 1]} : vector<11x32xf32> to vector<9x32xf32>
    %11 = arith.addf %10, %7 : vector<9x32xf32>
    %12 = tpu.concatenate %9, %11 in 0 : vector<2x32xf32>, vector<9x32xf32> -> vector<11x32xf32>
    %c0_17 = arith.constant 0 : index
    %c0_18 = arith.constant 0 : index
    %c0_19 = arith.constant 0 : index
    %13 = vector.load %arg4[%c0_17, %c0_18, %c0_19] : memref<4x32x8xf32, #tpu.memory_space<vmem>>, vector<4x32x8xf32>
    %c0_20 = arith.constant 0 : index
    %c0_21 = arith.constant 0 : index
    %14 = vector.load %arg5[%c0_20, %c0_21] : memref<64x32xf32, #tpu.memory_space<vmem>>, vector<64x32xf32>
    %c0_22 = arith.constant 0 : index
    %c0_23 = arith.constant 0 : index
    %c0_24 = arith.constant 0 : index
    %15 = vector.load %arg6[%c0_22, %c0_23, %c0_24] : memref<4x8x32xf32, #tpu.memory_space<vmem>>, vector<4x8x32xf32>
    %c0_25 = arith.constant 0 : index
    %c0_26 = arith.constant 0 : index
    %16 = vector.load %arg7[%c0_25, %c0_26] : memref<32x64xf32, #tpu.memory_space<vmem>>, vector<32x64xf32>
    %c0_27 = arith.constant 0 : index
    %c0_28 = arith.constant 0 : index
    %17 = vector.load %arg8[%c0_27, %c0_28] : memref<64x32xf32, #tpu.memory_space<vmem>>, vector<64x32xf32>
    %18 = vector.extract_strided_slice %0 {offsets = [0, 0], sizes = [1, 32], strides = [1, 1]} : vector<26x32xf32> to vector<1x32xf32>
    %19 = vector.extract_strided_slice %0 {offsets = [1, 0], sizes = [1, 32], strides = [1, 1]} : vector<26x32xf32> to vector<1x32xf32>
    %20 = vector.extract_strided_slice %0 {offsets = [2, 0], sizes = [1, 32], strides = [1, 1]} : vector<26x32xf32> to vector<1x32xf32>
    %21 = vector.extract_strided_slice %0 {offsets = [3, 0], sizes = [1, 32], strides = [1, 1]} : vector<26x32xf32> to vector<1x32xf32>
    %22 = vector.extract_strided_slice %0 {offsets = [4, 0], sizes = [1, 32], strides = [1, 1]} : vector<26x32xf32> to vector<1x32xf32>
    %23 = vector.extract_strided_slice %0 {offsets = [5, 0], sizes = [1, 32], strides = [1, 1]} : vector<26x32xf32> to vector<1x32xf32>
    %24 = vector.extract_strided_slice %1 {offsets = [0, 0], sizes = [1, 64], strides = [1, 1]} : vector<3x64xf32> to vector<1x64xf32>
    %cst_29 = arith.constant dense<0.000000e+00> : vector<11xf32>
    %25 = vector.multi_reduction <add>, %12, %cst_29 [1] : vector<11x32xf32> to vector<11xf32>
    %26 = vector.shape_cast %25 : vector<11xf32> to vector<11x1xf32>
    %cst_30 = arith.constant 3.200000e+01 : f32
    %27 = vector.broadcast %cst_30 : f32 to vector<11x1xf32>
    %28 = arith.divf %26, %27 : vector<11x1xf32>
    %29 = vector.broadcast %28 : vector<11x1xf32> to vector<11x32xf32>
    %30 = arith.subf %12, %29 : vector<11x32xf32>
    %31 = arith.mulf %30, %30 : vector<11x32xf32>
    %cst_31 = arith.constant dense<0.000000e+00> : vector<11xf32>
    %32 = vector.multi_reduction <add>, %31, %cst_31 [1] : vector<11x32xf32> to vector<11xf32>
    %33 = vector.shape_cast %32 : vector<11xf32> to vector<11x1xf32>
    %cst_32 = arith.constant 3.200000e+01 : f32
    %34 = vector.broadcast %cst_32 : f32 to vector<11x1xf32>
    %35 = arith.divf %33, %34 : vector<11x1xf32>
    %36 = vector.broadcast %28 : vector<11x1xf32> to vector<11x32xf32>
    %37 = arith.subf %12, %36 : vector<11x32xf32>
    %cst_33 = arith.constant 9.99999996E-13 : f32
    %38 = vector.broadcast %cst_33 : f32 to vector<11x1xf32>
    %39 = arith.addf %35, %38 : vector<11x1xf32>
    %40 = math.rsqrt %39 : vector<11x1xf32>
    %41 = vector.broadcast %40 : vector<11x1xf32> to vector<11x32xf32>
    %42 = arith.mulf %37, %41 : vector<11x32xf32>
    %43 = vector.broadcast %18 : vector<1x32xf32> to vector<11x32xf32>
    %44 = arith.mulf %42, %43 : vector<11x32xf32>
    %45 = vector.broadcast %19 : vector<1x32xf32> to vector<11x32xf32>
    %46 = arith.addf %44, %45 : vector<11x32xf32>
    %47 = vector.extract_strided_slice %2 {offsets = [0, 0, 0, 0], sizes = [1, 4, 1, 8], strides = [1, 1, 1, 1]} : vector<3x4x1x8xf32> to vector<1x4x1x8xf32>
    %48 = vector.shape_cast %47 : vector<1x4x1x8xf32> to vector<4x1x8xf32>
    %49 = vector.extract_strided_slice %3 {offsets = [0, 0, 0], sizes = [1, 64, 1], strides = [1, 1, 1]} : vector<3x64x1xf32> to vector<1x64x1xf32>
    %50 = vector.shape_cast %49 : vector<1x64x1xf32> to vector<64x1xf32>
    %cst_34 = arith.constant dense<0.000000e+00> : vector<64x11xf32>
    %51 = tpu.matmul %14, %46, %cst_34 {dimension_numbers = #tpu.dot_dimension_numbers<[1], [1], [0], [0], [0, 0, 1, 0], [], []>} : vector<64x32xf32>, vector<11x32xf32>, vector<64x11xf32> -> vector<64x11xf32>
    %52 = vector.broadcast %50 : vector<64x1xf32> to vector<64x11xf32>
    %53 = arith.addf %51, %52 : vector<64x11xf32>
    %54 = vector.extract_strided_slice %13 {offsets = [0, 0, 0], sizes = [1, 32, 8], strides = [1, 1, 1]} : vector<4x32x8xf32> to vector<1x32x8xf32>
    %55 = vector.shape_cast %54 : vector<1x32x8xf32> to vector<32x8xf32>
    %cst_35 = arith.constant dense<0.000000e+00> : vector<11x8xf32>
    %56 = tpu.matmul %46, %55, %cst_35 {dimension_numbers = #tpu.dot_dimension_numbers<[1], [0], [0], [1], [0, 0, 1, 1], [], []>} : vector<11x32xf32>, vector<32x8xf32>, vector<11x8xf32> -> vector<11x8xf32>
    %57 = vector.extract_strided_slice %48 {offsets = [0, 0, 0], sizes = [1, 1, 8], strides = [1, 1, 1]} : vector<4x1x8xf32> to vector<1x1x8xf32>
    %58 = vector.shape_cast %57 : vector<1x1x8xf32> to vector<1x8xf32>
    %59 = vector.broadcast %58 : vector<1x8xf32> to vector<11x8xf32>
    %60 = arith.addf %56, %59 : vector<11x8xf32>
    %61 = vector.extract_strided_slice %53 {offsets = [0, 0], sizes = [8, 11], strides = [1, 1]} : vector<64x11xf32> to vector<8x11xf32>
    %62 = vector.extract_strided_slice %53 {offsets = [32, 0], sizes = [8, 11], strides = [1, 1]} : vector<64x11xf32> to vector<8x11xf32>
    %cst_36 = arith.constant dense<0.000000e+00> : vector<11x11xf32>
    %63 = tpu.matmul %60, %61, %cst_36 {dimension_numbers = #tpu.dot_dimension_numbers<[1], [0], [0], [1], [0, 0, 1, 1], [], []>} : vector<11x8xf32>, vector<8x11xf32>, vector<11x11xf32> -> vector<11x11xf32>
    %cst_37 = arith.constant 0.353553385 : f32
    %64 = vector.broadcast %cst_37 : f32 to vector<11x11xf32>
    %65 = arith.mulf %63, %64 : vector<11x11xf32>
    %cst_38 = arith.constant dense<0xFF800000> : vector<11xf32>
    %66 = vector.multi_reduction <maximumf>, %65, %cst_38 [1] : vector<11x11xf32> to vector<11xf32>
    %67 = vector.shape_cast %66 : vector<11xf32> to vector<11x1xf32>
    %68 = vector.broadcast %67 : vector<11x1xf32> to vector<11x11xf32>
    %69 = arith.subf %65, %68 : vector<11x11xf32>
    %70 = math.exp %69 : vector<11x11xf32>
    %cst_39 = arith.constant dense<0.000000e+00> : vector<11xf32>
    %71 = vector.multi_reduction <add>, %70, %cst_39 [1] : vector<11x11xf32> to vector<11xf32>
    %72 = vector.shape_cast %71 : vector<11xf32> to vector<11x1xf32>
    %73 = vector.broadcast %72 : vector<11x1xf32> to vector<11x11xf32>
    %74 = arith.divf %70, %73 : vector<11x11xf32>
    %cst_40 = arith.constant dense<0.000000e+00> : vector<11x8xf32>
    %75 = tpu.matmul %74, %62, %cst_40 {dimension_numbers = #tpu.dot_dimension_numbers<[1], [1], [0], [0], [0, 0, 1, 0], [], []>} : vector<11x11xf32>, vector<8x11xf32>, vector<11x8xf32> -> vector<11x8xf32>
    %76 = vector.extract_strided_slice %15 {offsets = [0, 0, 0], sizes = [1, 8, 32], strides = [1, 1, 1]} : vector<4x8x32xf32> to vector<1x8x32xf32>
    %77 = vector.shape_cast %76 : vector<1x8x32xf32> to vector<8x32xf32>
    %cst_41 = arith.constant dense<0.000000e+00> : vector<11x32xf32>
    %78 = tpu.matmul %75, %77, %cst_41 {dimension_numbers = #tpu.dot_dimension_numbers<[1], [0], [0], [1], [0, 0, 1, 1], [], []>} : vector<11x8xf32>, vector<8x32xf32>, vector<11x32xf32> -> vector<11x32xf32>
    %79 = vector.broadcast %20 : vector<1x32xf32> to vector<11x32xf32>
    %80 = arith.addf %79, %78 : vector<11x32xf32>
    %81 = vector.extract_strided_slice %13 {offsets = [1, 0, 0], sizes = [1, 32, 8], strides = [1, 1, 1]} : vector<4x32x8xf32> to vector<1x32x8xf32>
    %82 = vector.shape_cast %81 : vector<1x32x8xf32> to vector<32x8xf32>
    %cst_42 = arith.constant dense<0.000000e+00> : vector<11x8xf32>
    %83 = tpu.matmul %46, %82, %cst_42 {dimension_numbers = #tpu.dot_dimension_numbers<[1], [0], [0], [1], [0, 0, 1, 1], [], []>} : vector<11x32xf32>, vector<32x8xf32>, vector<11x8xf32> -> vector<11x8xf32>
    %84 = vector.extract_strided_slice %48 {offsets = [1, 0, 0], sizes = [1, 1, 8], strides = [1, 1, 1]} : vector<4x1x8xf32> to vector<1x1x8xf32>
    %85 = vector.shape_cast %84 : vector<1x1x8xf32> to vector<1x8xf32>
    %86 = vector.broadcast %85 : vector<1x8xf32> to vector<11x8xf32>
    %87 = arith.addf %83, %86 : vector<11x8xf32>
    %88 = vector.extract_strided_slice %53 {offsets = [8, 0], sizes = [8, 11], strides = [1, 1]} : vector<64x11xf32> to vector<8x11xf32>
    %89 = vector.extract_strided_slice %53 {offsets = [40, 0], sizes = [8, 11], strides = [1, 1]} : vector<64x11xf32> to vector<8x11xf32>
    %cst_43 = arith.constant dense<0.000000e+00> : vector<11x11xf32>
    %90 = tpu.matmul %87, %88, %cst_43 {dimension_numbers = #tpu.dot_dimension_numbers<[1], [0], [0], [1], [0, 0, 1, 1], [], []>} : vector<11x8xf32>, vector<8x11xf32>, vector<11x11xf32> -> vector<11x11xf32>
    %cst_44 = arith.constant 0.353553385 : f32
    %91 = vector.broadcast %cst_44 : f32 to vector<11x11xf32>
    %92 = arith.mulf %90, %91 : vector<11x11xf32>
    %cst_45 = arith.constant dense<0xFF800000> : vector<11xf32>
    %93 = vector.multi_reduction <maximumf>, %92, %cst_45 [1] : vector<11x11xf32> to vector<11xf32>
    %94 = vector.shape_cast %93 : vector<11xf32> to vector<11x1xf32>
    %95 = vector.broadcast %94 : vector<11x1xf32> to vector<11x11xf32>
    %96 = arith.subf %92, %95 : vector<11x11xf32>
    %97 = math.exp %96 : vector<11x11xf32>
    %cst_46 = arith.constant dense<0.000000e+00> : vector<11xf32>
    %98 = vector.multi_reduction <add>, %97, %cst_46 [1] : vector<11x11xf32> to vector<11xf32>
    %99 = vector.shape_cast %98 : vector<11xf32> to vector<11x1xf32>
    %100 = vector.broadcast %99 : vector<11x1xf32> to vector<11x11xf32>
    %101 = arith.divf %97, %100 : vector<11x11xf32>
    %cst_47 = arith.constant dense<0.000000e+00> : vector<11x8xf32>
    %102 = tpu.matmul %101, %89, %cst_47 {dimension_numbers = #tpu.dot_dimension_numbers<[1], [1], [0], [0], [0, 0, 1, 0], [], []>} : vector<11x11xf32>, vector<8x11xf32>, vector<11x8xf32> -> vector<11x8xf32>
    %103 = vector.extract_strided_slice %15 {offsets = [1, 0, 0], sizes = [1, 8, 32], strides = [1, 1, 1]} : vector<4x8x32xf32> to vector<1x8x32xf32>
    %104 = vector.shape_cast %103 : vector<1x8x32xf32> to vector<8x32xf32>
    %cst_48 = arith.constant dense<0.000000e+00> : vector<11x32xf32>
    %105 = tpu.matmul %102, %104, %cst_48 {dimension_numbers = #tpu.dot_dimension_numbers<[1], [0], [0], [1], [0, 0, 1, 1], [], []>} : vector<11x8xf32>, vector<8x32xf32>, vector<11x32xf32> -> vector<11x32xf32>
    %106 = arith.addf %80, %105 : vector<11x32xf32>
    %107 = vector.extract_strided_slice %13 {offsets = [2, 0, 0], sizes = [1, 32, 8], strides = [1, 1, 1]} : vector<4x32x8xf32> to vector<1x32x8xf32>
    %108 = vector.shape_cast %107 : vector<1x32x8xf32> to vector<32x8xf32>
    %cst_49 = arith.constant dense<0.000000e+00> : vector<11x8xf32>
    %109 = tpu.matmul %46, %108, %cst_49 {dimension_numbers = #tpu.dot_dimension_numbers<[1], [0], [0], [1], [0, 0, 1, 1], [], []>} : vector<11x32xf32>, vector<32x8xf32>, vector<11x8xf32> -> vector<11x8xf32>
    %110 = vector.extract_strided_slice %48 {offsets = [2, 0, 0], sizes = [1, 1, 8], strides = [1, 1, 1]} : vector<4x1x8xf32> to vector<1x1x8xf32>
    %111 = vector.shape_cast %110 : vector<1x1x8xf32> to vector<1x8xf32>
    %112 = vector.broadcast %111 : vector<1x8xf32> to vector<11x8xf32>
    %113 = arith.addf %109, %112 : vector<11x8xf32>
    %114 = vector.extract_strided_slice %53 {offsets = [16, 0], sizes = [8, 11], strides = [1, 1]} : vector<64x11xf32> to vector<8x11xf32>
    %115 = vector.extract_strided_slice %53 {offsets = [48, 0], sizes = [8, 11], strides = [1, 1]} : vector<64x11xf32> to vector<8x11xf32>
    %cst_50 = arith.constant dense<0.000000e+00> : vector<11x11xf32>
    %116 = tpu.matmul %113, %114, %cst_50 {dimension_numbers = #tpu.dot_dimension_numbers<[1], [0], [0], [1], [0, 0, 1, 1], [], []>} : vector<11x8xf32>, vector<8x11xf32>, vector<11x11xf32> -> vector<11x11xf32>
    %cst_51 = arith.constant 0.353553385 : f32
    %117 = vector.broadcast %cst_51 : f32 to vector<11x11xf32>
    %118 = arith.mulf %116, %117 : vector<11x11xf32>
    %cst_52 = arith.constant dense<0xFF800000> : vector<11xf32>
    %119 = vector.multi_reduction <maximumf>, %118, %cst_52 [1] : vector<11x11xf32> to vector<11xf32>
    %120 = vector.shape_cast %119 : vector<11xf32> to vector<11x1xf32>
    %121 = vector.broadcast %120 : vector<11x1xf32> to vector<11x11xf32>
    %122 = arith.subf %118, %121 : vector<11x11xf32>
    %123 = math.exp %122 : vector<11x11xf32>
    %cst_53 = arith.constant dense<0.000000e+00> : vector<11xf32>
    %124 = vector.multi_reduction <add>, %123, %cst_53 [1] : vector<11x11xf32> to vector<11xf32>
    %125 = vector.shape_cast %124 : vector<11xf32> to vector<11x1xf32>
    %126 = vector.broadcast %125 : vector<11x1xf32> to vector<11x11xf32>
    %127 = arith.divf %123, %126 : vector<11x11xf32>
    %cst_54 = arith.constant dense<0.000000e+00> : vector<11x8xf32>
    %128 = tpu.matmul %127, %115, %cst_54 {dimension_numbers = #tpu.dot_dimension_numbers<[1], [1], [0], [0], [0, 0, 1, 0], [], []>} : vector<11x11xf32>, vector<8x11xf32>, vector<11x8xf32> -> vector<11x8xf32>
    %129 = vector.extract_strided_slice %15 {offsets = [2, 0, 0], sizes = [1, 8, 32], strides = [1, 1, 1]} : vector<4x8x32xf32> to vector<1x8x32xf32>
    %130 = vector.shape_cast %129 : vector<1x8x32xf32> to vector<8x32xf32>
    %cst_55 = arith.constant dense<0.000000e+00> : vector<11x32xf32>
    %131 = tpu.matmul %128, %130, %cst_55 {dimension_numbers = #tpu.dot_dimension_numbers<[1], [0], [0], [1], [0, 0, 1, 1], [], []>} : vector<11x8xf32>, vector<8x32xf32>, vector<11x32xf32> -> vector<11x32xf32>
    %132 = arith.addf %106, %131 : vector<11x32xf32>
    %133 = vector.extract_strided_slice %13 {offsets = [3, 0, 0], sizes = [1, 32, 8], strides = [1, 1, 1]} : vector<4x32x8xf32> to vector<1x32x8xf32>
    %134 = vector.shape_cast %133 : vector<1x32x8xf32> to vector<32x8xf32>
    %cst_56 = arith.constant dense<0.000000e+00> : vector<11x8xf32>
    %135 = tpu.matmul %46, %134, %cst_56 {dimension_numbers = #tpu.dot_dimension_numbers<[1], [0], [0], [1], [0, 0, 1, 1], [], []>} : vector<11x32xf32>, vector<32x8xf32>, vector<11x8xf32> -> vector<11x8xf32>
    %136 = vector.extract_strided_slice %48 {offsets = [3, 0, 0], sizes = [1, 1, 8], strides = [1, 1, 1]} : vector<4x1x8xf32> to vector<1x1x8xf32>
    %137 = vector.shape_cast %136 : vector<1x1x8xf32> to vector<1x8xf32>
    %138 = vector.broadcast %137 : vector<1x8xf32> to vector<11x8xf32>
    %139 = arith.addf %135, %138 : vector<11x8xf32>
    %140 = vector.extract_strided_slice %53 {offsets = [24, 0], sizes = [8, 11], strides = [1, 1]} : vector<64x11xf32> to vector<8x11xf32>
    %141 = vector.extract_strided_slice %53 {offsets = [56, 0], sizes = [8, 11], strides = [1, 1]} : vector<64x11xf32> to vector<8x11xf32>
    %cst_57 = arith.constant dense<0.000000e+00> : vector<11x11xf32>
    %142 = tpu.matmul %139, %140, %cst_57 {dimension_numbers = #tpu.dot_dimension_numbers<[1], [0], [0], [1], [0, 0, 1, 1], [], []>} : vector<11x8xf32>, vector<8x11xf32>, vector<11x11xf32> -> vector<11x11xf32>
    %cst_58 = arith.constant 0.353553385 : f32
    %143 = vector.broadcast %cst_58 : f32 to vector<11x11xf32>
    %144 = arith.mulf %142, %143 : vector<11x11xf32>
    %cst_59 = arith.constant dense<0xFF800000> : vector<11xf32>
    %145 = vector.multi_reduction <maximumf>, %144, %cst_59 [1] : vector<11x11xf32> to vector<11xf32>
    %146 = vector.shape_cast %145 : vector<11xf32> to vector<11x1xf32>
    %147 = vector.broadcast %146 : vector<11x1xf32> to vector<11x11xf32>
    %148 = arith.subf %144, %147 : vector<11x11xf32>
    %149 = math.exp %148 : vector<11x11xf32>
    %cst_60 = arith.constant dense<0.000000e+00> : vector<11xf32>
    %150 = vector.multi_reduction <add>, %149, %cst_60 [1] : vector<11x11xf32> to vector<11xf32>
    %151 = vector.shape_cast %150 : vector<11xf32> to vector<11x1xf32>
    %152 = vector.broadcast %151 : vector<11x1xf32> to vector<11x11xf32>
    %153 = arith.divf %149, %152 : vector<11x11xf32>
    %cst_61 = arith.constant dense<0.000000e+00> : vector<11x8xf32>
    %154 = tpu.matmul %153, %141, %cst_61 {dimension_numbers = #tpu.dot_dimension_numbers<[1], [1], [0], [0], [0, 0, 1, 0], [], []>} : vector<11x11xf32>, vector<8x11xf32>, vector<11x8xf32> -> vector<11x8xf32>
    %155 = vector.extract_strided_slice %15 {offsets = [3, 0, 0], sizes = [1, 8, 32], strides = [1, 1, 1]} : vector<4x8x32xf32> to vector<1x8x32xf32>
    %156 = vector.shape_cast %155 : vector<1x8x32xf32> to vector<8x32xf32>
    %cst_62 = arith.constant dense<0.000000e+00> : vector<11x32xf32>
    %157 = tpu.matmul %154, %156, %cst_62 {dimension_numbers = #tpu.dot_dimension_numbers<[1], [0], [0], [1], [0, 0, 1, 1], [], []>} : vector<11x8xf32>, vector<8x32xf32>, vector<11x32xf32> -> vector<11x32xf32>
    %158 = arith.addf %132, %157 : vector<11x32xf32>
    %159 = arith.addf %12, %158 : vector<11x32xf32>
    %cst_63 = arith.constant dense<0.000000e+00> : vector<11xf32>
    %160 = vector.multi_reduction <add>, %159, %cst_63 [1] : vector<11x32xf32> to vector<11xf32>
    %161 = vector.shape_cast %160 : vector<11xf32> to vector<11x1xf32>
    %cst_64 = arith.constant 3.200000e+01 : f32
    %162 = vector.broadcast %cst_64 : f32 to vector<11x1xf32>
    %163 = arith.divf %161, %162 : vector<11x1xf32>
    %164 = vector.broadcast %163 : vector<11x1xf32> to vector<11x32xf32>
    %165 = arith.subf %159, %164 : vector<11x32xf32>
    %166 = arith.mulf %165, %165 : vector<11x32xf32>
    %cst_65 = arith.constant dense<0.000000e+00> : vector<11xf32>
    %167 = vector.multi_reduction <add>, %166, %cst_65 [1] : vector<11x32xf32> to vector<11xf32>
    %168 = vector.shape_cast %167 : vector<11xf32> to vector<11x1xf32>
    %cst_66 = arith.constant 3.200000e+01 : f32
    %169 = vector.broadcast %cst_66 : f32 to vector<11x1xf32>
    %170 = arith.divf %168, %169 : vector<11x1xf32>
    %171 = vector.broadcast %163 : vector<11x1xf32> to vector<11x32xf32>
    %172 = arith.subf %159, %171 : vector<11x32xf32>
    %cst_67 = arith.constant 9.99999996E-13 : f32
    %173 = vector.broadcast %cst_67 : f32 to vector<11x1xf32>
    %174 = arith.addf %170, %173 : vector<11x1xf32>
    %175 = math.rsqrt %174 : vector<11x1xf32>
    %176 = vector.broadcast %175 : vector<11x1xf32> to vector<11x32xf32>
    %177 = arith.mulf %172, %176 : vector<11x32xf32>
    %178 = vector.broadcast %21 : vector<1x32xf32> to vector<11x32xf32>
    %179 = arith.mulf %177, %178 : vector<11x32xf32>
    %180 = vector.broadcast %22 : vector<1x32xf32> to vector<11x32xf32>
    %181 = arith.addf %179, %180 : vector<11x32xf32>
    %cst_68 = arith.constant dense<0.000000e+00> : vector<11x64xf32>
    %182 = tpu.matmul %181, %16, %cst_68 {dimension_numbers = #tpu.dot_dimension_numbers<[1], [0], [0], [1], [0, 0, 1, 1], [], []>} : vector<11x32xf32>, vector<32x64xf32>, vector<11x64xf32> -> vector<11x64xf32>
    %183 = vector.broadcast %24 : vector<1x64xf32> to vector<11x64xf32>
    %184 = arith.addf %182, %183 : vector<11x64xf32>
    %cst_69 = arith.constant 5.000000e-01 : f32
    %185 = vector.broadcast %cst_69 : f32 to vector<11x64xf32>
    %186 = arith.mulf %185, %184 : vector<11x64xf32>
    %cst_70 = arith.constant 0.707106769 : f32
    %187 = vector.broadcast %cst_70 : f32 to vector<11x64xf32>
    %188 = arith.mulf %184, %187 : vector<11x64xf32>
    %189 = math.erf %188 : vector<11x64xf32>
    %cst_71 = arith.constant 1.000000e+00 : f32
    %190 = vector.broadcast %cst_71 : f32 to vector<11x64xf32>
    %191 = arith.addf %190, %189 : vector<11x64xf32>
    %192 = arith.mulf %186, %191 : vector<11x64xf32>
    %cst_72 = arith.constant dense<0.000000e+00> : vector<11x32xf32>
    %193 = tpu.matmul %192, %17, %cst_72 {dimension_numbers = #tpu.dot_dimension_numbers<[1], [0], [0], [1], [0, 0, 1, 1], [], []>} : vector<11x64xf32>, vector<64x32xf32>, vector<11x32xf32> -> vector<11x32xf32>
    %194 = arith.addf %159, %193 : vector<11x32xf32>
    %195 = vector.broadcast %23 : vector<1x32xf32> to vector<11x32xf32>
    %196 = arith.addf %194, %195 : vector<11x32xf32>
    %c0_73 = arith.constant 0 : index
    %c0_74 = arith.constant 0 : index
    %c0_75 = arith.constant 0 : index
    %197 = vector.load %arg9[%c0_73, %c0_74, %c0_75] : memref<4x32x8xf32, #tpu.memory_space<vmem>>, vector<4x32x8xf32>
    %c0_76 = arith.constant 0 : index
    %c0_77 = arith.constant 0 : index
    %198 = vector.load %arg10[%c0_76, %c0_77] : memref<64x32xf32, #tpu.memory_space<vmem>>, vector<64x32xf32>
    %c0_78 = arith.constant 0 : index
    %c0_79 = arith.constant 0 : index
    %c0_80 = arith.constant 0 : index
    %199 = vector.load %arg11[%c0_78, %c0_79, %c0_80] : memref<4x8x32xf32, #tpu.memory_space<vmem>>, vector<4x8x32xf32>
    %c0_81 = arith.constant 0 : index
    %c0_82 = arith.constant 0 : index
    %200 = vector.load %arg12[%c0_81, %c0_82] : memref<32x64xf32, #tpu.memory_space<vmem>>, vector<32x64xf32>
    %c0_83 = arith.constant 0 : index
    %c0_84 = arith.constant 0 : index
    %201 = vector.load %arg13[%c0_83, %c0_84] : memref<64x32xf32, #tpu.memory_space<vmem>>, vector<64x32xf32>
    %202 = vector.extract_strided_slice %0 {offsets = [6, 0], sizes = [1, 32], strides = [1, 1]} : vector<26x32xf32> to vector<1x32xf32>
    %203 = vector.extract_strided_slice %0 {offsets = [7, 0], sizes = [1, 32], strides = [1, 1]} : vector<26x32xf32> to vector<1x32xf32>
    %204 = vector.extract_strided_slice %0 {offsets = [8, 0], sizes = [1, 32], strides = [1, 1]} : vector<26x32xf32> to vector<1x32xf32>
    %205 = vector.extract_strided_slice %0 {offsets = [9, 0], sizes = [1, 32], strides = [1, 1]} : vector<26x32xf32> to vector<1x32xf32>
    %206 = vector.extract_strided_slice %0 {offsets = [10, 0], sizes = [1, 32], strides = [1, 1]} : vector<26x32xf32> to vector<1x32xf32>
    %207 = vector.extract_strided_slice %0 {offsets = [11, 0], sizes = [1, 32], strides = [1, 1]} : vector<26x32xf32> to vector<1x32xf32>
    %208 = vector.extract_strided_slice %1 {offsets = [1, 0], sizes = [1, 64], strides = [1, 1]} : vector<3x64xf32> to vector<1x64xf32>
    %cst_85 = arith.constant dense<0.000000e+00> : vector<11xf32>
    %209 = vector.multi_reduction <add>, %196, %cst_85 [1] : vector<11x32xf32> to vector<11xf32>
    %210 = vector.shape_cast %209 : vector<11xf32> to vector<11x1xf32>
    %cst_86 = arith.constant 3.200000e+01 : f32
    %211 = vector.broadcast %cst_86 : f32 to vector<11x1xf32>
    %212 = arith.divf %210, %211 : vector<11x1xf32>
    %213 = vector.broadcast %212 : vector<11x1xf32> to vector<11x32xf32>
    %214 = arith.subf %196, %213 : vector<11x32xf32>
    %215 = arith.mulf %214, %214 : vector<11x32xf32>
    %cst_87 = arith.constant dense<0.000000e+00> : vector<11xf32>
    %216 = vector.multi_reduction <add>, %215, %cst_87 [1] : vector<11x32xf32> to vector<11xf32>
    %217 = vector.shape_cast %216 : vector<11xf32> to vector<11x1xf32>
    %cst_88 = arith.constant 3.200000e+01 : f32
    %218 = vector.broadcast %cst_88 : f32 to vector<11x1xf32>
    %219 = arith.divf %217, %218 : vector<11x1xf32>
    %220 = vector.broadcast %212 : vector<11x1xf32> to vector<11x32xf32>
    %221 = arith.subf %196, %220 : vector<11x32xf32>
    %cst_89 = arith.constant 9.99999996E-13 : f32
    %222 = vector.broadcast %cst_89 : f32 to vector<11x1xf32>
    %223 = arith.addf %219, %222 : vector<11x1xf32>
    %224 = math.rsqrt %223 : vector<11x1xf32>
    %225 = vector.broadcast %224 : vector<11x1xf32> to vector<11x32xf32>
    %226 = arith.mulf %221, %225 : vector<11x32xf32>
    %227 = vector.broadcast %202 : vector<1x32xf32> to vector<11x32xf32>
    %228 = arith.mulf %226, %227 : vector<11x32xf32>
    %229 = vector.broadcast %203 : vector<1x32xf32> to vector<11x32xf32>
    %230 = arith.addf %228, %229 : vector<11x32xf32>
    %231 = vector.extract_strided_slice %2 {offsets = [1, 0, 0, 0], sizes = [1, 4, 1, 8], strides = [1, 1, 1, 1]} : vector<3x4x1x8xf32> to vector<1x4x1x8xf32>
    %232 = vector.shape_cast %231 : vector<1x4x1x8xf32> to vector<4x1x8xf32>
    %233 = vector.extract_strided_slice %3 {offsets = [1, 0, 0], sizes = [1, 64, 1], strides = [1, 1, 1]} : vector<3x64x1xf32> to vector<1x64x1xf32>
    %234 = vector.shape_cast %233 : vector<1x64x1xf32> to vector<64x1xf32>
    %cst_90 = arith.constant dense<0.000000e+00> : vector<64x11xf32>
    %235 = tpu.matmul %198, %230, %cst_90 {dimension_numbers = #tpu.dot_dimension_numbers<[1], [1], [0], [0], [0, 0, 1, 0], [], []>} : vector<64x32xf32>, vector<11x32xf32>, vector<64x11xf32> -> vector<64x11xf32>
    %236 = vector.broadcast %234 : vector<64x1xf32> to vector<64x11xf32>
    %237 = arith.addf %235, %236 : vector<64x11xf32>
    %238 = vector.extract_strided_slice %197 {offsets = [0, 0, 0], sizes = [1, 32, 8], strides = [1, 1, 1]} : vector<4x32x8xf32> to vector<1x32x8xf32>
    %239 = vector.shape_cast %238 : vector<1x32x8xf32> to vector<32x8xf32>
    %cst_91 = arith.constant dense<0.000000e+00> : vector<11x8xf32>
    %240 = tpu.matmul %230, %239, %cst_91 {dimension_numbers = #tpu.dot_dimension_numbers<[1], [0], [0], [1], [0, 0, 1, 1], [], []>} : vector<11x32xf32>, vector<32x8xf32>, vector<11x8xf32> -> vector<11x8xf32>
    %241 = vector.extract_strided_slice %232 {offsets = [0, 0, 0], sizes = [1, 1, 8], strides = [1, 1, 1]} : vector<4x1x8xf32> to vector<1x1x8xf32>
    %242 = vector.shape_cast %241 : vector<1x1x8xf32> to vector<1x8xf32>
    %243 = vector.broadcast %242 : vector<1x8xf32> to vector<11x8xf32>
    %244 = arith.addf %240, %243 : vector<11x8xf32>
    %245 = vector.extract_strided_slice %237 {offsets = [0, 0], sizes = [8, 11], strides = [1, 1]} : vector<64x11xf32> to vector<8x11xf32>
    %246 = vector.extract_strided_slice %237 {offsets = [32, 0], sizes = [8, 11], strides = [1, 1]} : vector<64x11xf32> to vector<8x11xf32>
    %cst_92 = arith.constant dense<0.000000e+00> : vector<11x11xf32>
    %247 = tpu.matmul %244, %245, %cst_92 {dimension_numbers = #tpu.dot_dimension_numbers<[1], [0], [0], [1], [0, 0, 1, 1], [], []>} : vector<11x8xf32>, vector<8x11xf32>, vector<11x11xf32> -> vector<11x11xf32>
    %cst_93 = arith.constant 0.353553385 : f32
    %248 = vector.broadcast %cst_93 : f32 to vector<11x11xf32>
    %249 = arith.mulf %247, %248 : vector<11x11xf32>
    %cst_94 = arith.constant dense<0xFF800000> : vector<11xf32>
    %250 = vector.multi_reduction <maximumf>, %249, %cst_94 [1] : vector<11x11xf32> to vector<11xf32>
    %251 = vector.shape_cast %250 : vector<11xf32> to vector<11x1xf32>
    %252 = vector.broadcast %251 : vector<11x1xf32> to vector<11x11xf32>
    %253 = arith.subf %249, %252 : vector<11x11xf32>
    %254 = math.exp %253 : vector<11x11xf32>
    %cst_95 = arith.constant dense<0.000000e+00> : vector<11xf32>
    %255 = vector.multi_reduction <add>, %254, %cst_95 [1] : vector<11x11xf32> to vector<11xf32>
    %256 = vector.shape_cast %255 : vector<11xf32> to vector<11x1xf32>
    %257 = vector.broadcast %256 : vector<11x1xf32> to vector<11x11xf32>
    %258 = arith.divf %254, %257 : vector<11x11xf32>
    %cst_96 = arith.constant dense<0.000000e+00> : vector<11x8xf32>
    %259 = tpu.matmul %258, %246, %cst_96 {dimension_numbers = #tpu.dot_dimension_numbers<[1], [1], [0], [0], [0, 0, 1, 0], [], []>} : vector<11x11xf32>, vector<8x11xf32>, vector<11x8xf32> -> vector<11x8xf32>
    %260 = vector.extract_strided_slice %199 {offsets = [0, 0, 0], sizes = [1, 8, 32], strides = [1, 1, 1]} : vector<4x8x32xf32> to vector<1x8x32xf32>
    %261 = vector.shape_cast %260 : vector<1x8x32xf32> to vector<8x32xf32>
    %cst_97 = arith.constant dense<0.000000e+00> : vector<11x32xf32>
    %262 = tpu.matmul %259, %261, %cst_97 {dimension_numbers = #tpu.dot_dimension_numbers<[1], [0], [0], [1], [0, 0, 1, 1], [], []>} : vector<11x8xf32>, vector<8x32xf32>, vector<11x32xf32> -> vector<11x32xf32>
    %263 = vector.broadcast %204 : vector<1x32xf32> to vector<11x32xf32>
    %264 = arith.addf %263, %262 : vector<11x32xf32>
    %265 = vector.extract_strided_slice %197 {offsets = [1, 0, 0], sizes = [1, 32, 8], strides = [1, 1, 1]} : vector<4x32x8xf32> to vector<1x32x8xf32>
    %266 = vector.shape_cast %265 : vector<1x32x8xf32> to vector<32x8xf32>
    %cst_98 = arith.constant dense<0.000000e+00> : vector<11x8xf32>
    %267 = tpu.matmul %230, %266, %cst_98 {dimension_numbers = #tpu.dot_dimension_numbers<[1], [0], [0], [1], [0, 0, 1, 1], [], []>} : vector<11x32xf32>, vector<32x8xf32>, vector<11x8xf32> -> vector<11x8xf32>
    %268 = vector.extract_strided_slice %232 {offsets = [1, 0, 0], sizes = [1, 1, 8], strides = [1, 1, 1]} : vector<4x1x8xf32> to vector<1x1x8xf32>
    %269 = vector.shape_cast %268 : vector<1x1x8xf32> to vector<1x8xf32>
    %270 = vector.broadcast %269 : vector<1x8xf32> to vector<11x8xf32>
    %271 = arith.addf %267, %270 : vector<11x8xf32>
    %272 = vector.extract_strided_slice %237 {offsets = [8, 0], sizes = [8, 11], strides = [1, 1]} : vector<64x11xf32> to vector<8x11xf32>
    %273 = vector.extract_strided_slice %237 {offsets = [40, 0], sizes = [8, 11], strides = [1, 1]} : vector<64x11xf32> to vector<8x11xf32>
    %cst_99 = arith.constant dense<0.000000e+00> : vector<11x11xf32>
    %274 = tpu.matmul %271, %272, %cst_99 {dimension_numbers = #tpu.dot_dimension_numbers<[1], [0], [0], [1], [0, 0, 1, 1], [], []>} : vector<11x8xf32>, vector<8x11xf32>, vector<11x11xf32> -> vector<11x11xf32>
    %cst_100 = arith.constant 0.353553385 : f32
    %275 = vector.broadcast %cst_100 : f32 to vector<11x11xf32>
    %276 = arith.mulf %274, %275 : vector<11x11xf32>
    %cst_101 = arith.constant dense<0xFF800000> : vector<11xf32>
    %277 = vector.multi_reduction <maximumf>, %276, %cst_101 [1] : vector<11x11xf32> to vector<11xf32>
    %278 = vector.shape_cast %277 : vector<11xf32> to vector<11x1xf32>
    %279 = vector.broadcast %278 : vector<11x1xf32> to vector<11x11xf32>
    %280 = arith.subf %276, %279 : vector<11x11xf32>
    %281 = math.exp %280 : vector<11x11xf32>
    %cst_102 = arith.constant dense<0.000000e+00> : vector<11xf32>
    %282 = vector.multi_reduction <add>, %281, %cst_102 [1] : vector<11x11xf32> to vector<11xf32>
    %283 = vector.shape_cast %282 : vector<11xf32> to vector<11x1xf32>
    %284 = vector.broadcast %283 : vector<11x1xf32> to vector<11x11xf32>
    %285 = arith.divf %281, %284 : vector<11x11xf32>
    %cst_103 = arith.constant dense<0.000000e+00> : vector<11x8xf32>
    %286 = tpu.matmul %285, %273, %cst_103 {dimension_numbers = #tpu.dot_dimension_numbers<[1], [1], [0], [0], [0, 0, 1, 0], [], []>} : vector<11x11xf32>, vector<8x11xf32>, vector<11x8xf32> -> vector<11x8xf32>
    %287 = vector.extract_strided_slice %199 {offsets = [1, 0, 0], sizes = [1, 8, 32], strides = [1, 1, 1]} : vector<4x8x32xf32> to vector<1x8x32xf32>
    %288 = vector.shape_cast %287 : vector<1x8x32xf32> to vector<8x32xf32>
    %cst_104 = arith.constant dense<0.000000e+00> : vector<11x32xf32>
    %289 = tpu.matmul %286, %288, %cst_104 {dimension_numbers = #tpu.dot_dimension_numbers<[1], [0], [0], [1], [0, 0, 1, 1], [], []>} : vector<11x8xf32>, vector<8x32xf32>, vector<11x32xf32> -> vector<11x32xf32>
    %290 = arith.addf %264, %289 : vector<11x32xf32>
    %291 = vector.extract_strided_slice %197 {offsets = [2, 0, 0], sizes = [1, 32, 8], strides = [1, 1, 1]} : vector<4x32x8xf32> to vector<1x32x8xf32>
    %292 = vector.shape_cast %291 : vector<1x32x8xf32> to vector<32x8xf32>
    %cst_105 = arith.constant dense<0.000000e+00> : vector<11x8xf32>
    %293 = tpu.matmul %230, %292, %cst_105 {dimension_numbers = #tpu.dot_dimension_numbers<[1], [0], [0], [1], [0, 0, 1, 1], [], []>} : vector<11x32xf32>, vector<32x8xf32>, vector<11x8xf32> -> vector<11x8xf32>
    %294 = vector.extract_strided_slice %232 {offsets = [2, 0, 0], sizes = [1, 1, 8], strides = [1, 1, 1]} : vector<4x1x8xf32> to vector<1x1x8xf32>
    %295 = vector.shape_cast %294 : vector<1x1x8xf32> to vector<1x8xf32>
    %296 = vector.broadcast %295 : vector<1x8xf32> to vector<11x8xf32>
    %297 = arith.addf %293, %296 : vector<11x8xf32>
    %298 = vector.extract_strided_slice %237 {offsets = [16, 0], sizes = [8, 11], strides = [1, 1]} : vector<64x11xf32> to vector<8x11xf32>
    %299 = vector.extract_strided_slice %237 {offsets = [48, 0], sizes = [8, 11], strides = [1, 1]} : vector<64x11xf32> to vector<8x11xf32>
    %cst_106 = arith.constant dense<0.000000e+00> : vector<11x11xf32>
    %300 = tpu.matmul %297, %298, %cst_106 {dimension_numbers = #tpu.dot_dimension_numbers<[1], [0], [0], [1], [0, 0, 1, 1], [], []>} : vector<11x8xf32>, vector<8x11xf32>, vector<11x11xf32> -> vector<11x11xf32>
    %cst_107 = arith.constant 0.353553385 : f32
    %301 = vector.broadcast %cst_107 : f32 to vector<11x11xf32>
    %302 = arith.mulf %300, %301 : vector<11x11xf32>
    %cst_108 = arith.constant dense<0xFF800000> : vector<11xf32>
    %303 = vector.multi_reduction <maximumf>, %302, %cst_108 [1] : vector<11x11xf32> to vector<11xf32>
    %304 = vector.shape_cast %303 : vector<11xf32> to vector<11x1xf32>
    %305 = vector.broadcast %304 : vector<11x1xf32> to vector<11x11xf32>
    %306 = arith.subf %302, %305 : vector<11x11xf32>
    %307 = math.exp %306 : vector<11x11xf32>
    %cst_109 = arith.constant dense<0.000000e+00> : vector<11xf32>
    %308 = vector.multi_reduction <add>, %307, %cst_109 [1] : vector<11x11xf32> to vector<11xf32>
    %309 = vector.shape_cast %308 : vector<11xf32> to vector<11x1xf32>
    %310 = vector.broadcast %309 : vector<11x1xf32> to vector<11x11xf32>
    %311 = arith.divf %307, %310 : vector<11x11xf32>
    %cst_110 = arith.constant dense<0.000000e+00> : vector<11x8xf32>
    %312 = tpu.matmul %311, %299, %cst_110 {dimension_numbers = #tpu.dot_dimension_numbers<[1], [1], [0], [0], [0, 0, 1, 0], [], []>} : vector<11x11xf32>, vector<8x11xf32>, vector<11x8xf32> -> vector<11x8xf32>
    %313 = vector.extract_strided_slice %199 {offsets = [2, 0, 0], sizes = [1, 8, 32], strides = [1, 1, 1]} : vector<4x8x32xf32> to vector<1x8x32xf32>
    %314 = vector.shape_cast %313 : vector<1x8x32xf32> to vector<8x32xf32>
    %cst_111 = arith.constant dense<0.000000e+00> : vector<11x32xf32>
    %315 = tpu.matmul %312, %314, %cst_111 {dimension_numbers = #tpu.dot_dimension_numbers<[1], [0], [0], [1], [0, 0, 1, 1], [], []>} : vector<11x8xf32>, vector<8x32xf32>, vector<11x32xf32> -> vector<11x32xf32>
    %316 = arith.addf %290, %315 : vector<11x32xf32>
    %317 = vector.extract_strided_slice %197 {offsets = [3, 0, 0], sizes = [1, 32, 8], strides = [1, 1, 1]} : vector<4x32x8xf32> to vector<1x32x8xf32>
    %318 = vector.shape_cast %317 : vector<1x32x8xf32> to vector<32x8xf32>
    %cst_112 = arith.constant dense<0.000000e+00> : vector<11x8xf32>
    %319 = tpu.matmul %230, %318, %cst_112 {dimension_numbers = #tpu.dot_dimension_numbers<[1], [0], [0], [1], [0, 0, 1, 1], [], []>} : vector<11x32xf32>, vector<32x8xf32>, vector<11x8xf32> -> vector<11x8xf32>
    %320 = vector.extract_strided_slice %232 {offsets = [3, 0, 0], sizes = [1, 1, 8], strides = [1, 1, 1]} : vector<4x1x8xf32> to vector<1x1x8xf32>
    %321 = vector.shape_cast %320 : vector<1x1x8xf32> to vector<1x8xf32>
    %322 = vector.broadcast %321 : vector<1x8xf32> to vector<11x8xf32>
    %323 = arith.addf %319, %322 : vector<11x8xf32>
    %324 = vector.extract_strided_slice %237 {offsets = [24, 0], sizes = [8, 11], strides = [1, 1]} : vector<64x11xf32> to vector<8x11xf32>
    %325 = vector.extract_strided_slice %237 {offsets = [56, 0], sizes = [8, 11], strides = [1, 1]} : vector<64x11xf32> to vector<8x11xf32>
    %cst_113 = arith.constant dense<0.000000e+00> : vector<11x11xf32>
    %326 = tpu.matmul %323, %324, %cst_113 {dimension_numbers = #tpu.dot_dimension_numbers<[1], [0], [0], [1], [0, 0, 1, 1], [], []>} : vector<11x8xf32>, vector<8x11xf32>, vector<11x11xf32> -> vector<11x11xf32>
    %cst_114 = arith.constant 0.353553385 : f32
    %327 = vector.broadcast %cst_114 : f32 to vector<11x11xf32>
    %328 = arith.mulf %326, %327 : vector<11x11xf32>
    %cst_115 = arith.constant dense<0xFF800000> : vector<11xf32>
    %329 = vector.multi_reduction <maximumf>, %328, %cst_115 [1] : vector<11x11xf32> to vector<11xf32>
    %330 = vector.shape_cast %329 : vector<11xf32> to vector<11x1xf32>
    %331 = vector.broadcast %330 : vector<11x1xf32> to vector<11x11xf32>
    %332 = arith.subf %328, %331 : vector<11x11xf32>
    %333 = math.exp %332 : vector<11x11xf32>
    %cst_116 = arith.constant dense<0.000000e+00> : vector<11xf32>
    %334 = vector.multi_reduction <add>, %333, %cst_116 [1] : vector<11x11xf32> to vector<11xf32>
    %335 = vector.shape_cast %334 : vector<11xf32> to vector<11x1xf32>
    %336 = vector.broadcast %335 : vector<11x1xf32> to vector<11x11xf32>
    %337 = arith.divf %333, %336 : vector<11x11xf32>
    %cst_117 = arith.constant dense<0.000000e+00> : vector<11x8xf32>
    %338 = tpu.matmul %337, %325, %cst_117 {dimension_numbers = #tpu.dot_dimension_numbers<[1], [1], [0], [0], [0, 0, 1, 0], [], []>} : vector<11x11xf32>, vector<8x11xf32>, vector<11x8xf32> -> vector<11x8xf32>
    %339 = vector.extract_strided_slice %199 {offsets = [3, 0, 0], sizes = [1, 8, 32], strides = [1, 1, 1]} : vector<4x8x32xf32> to vector<1x8x32xf32>
    %340 = vector.shape_cast %339 : vector<1x8x32xf32> to vector<8x32xf32>
    %cst_118 = arith.constant dense<0.000000e+00> : vector<11x32xf32>
    %341 = tpu.matmul %338, %340, %cst_118 {dimension_numbers = #tpu.dot_dimension_numbers<[1], [0], [0], [1], [0, 0, 1, 1], [], []>} : vector<11x8xf32>, vector<8x32xf32>, vector<11x32xf32> -> vector<11x32xf32>
    %342 = arith.addf %316, %341 : vector<11x32xf32>
    %343 = arith.addf %196, %342 : vector<11x32xf32>
    %cst_119 = arith.constant dense<0.000000e+00> : vector<11xf32>
    %344 = vector.multi_reduction <add>, %343, %cst_119 [1] : vector<11x32xf32> to vector<11xf32>
    %345 = vector.shape_cast %344 : vector<11xf32> to vector<11x1xf32>
    %cst_120 = arith.constant 3.200000e+01 : f32
    %346 = vector.broadcast %cst_120 : f32 to vector<11x1xf32>
    %347 = arith.divf %345, %346 : vector<11x1xf32>
    %348 = vector.broadcast %347 : vector<11x1xf32> to vector<11x32xf32>
    %349 = arith.subf %343, %348 : vector<11x32xf32>
    %350 = arith.mulf %349, %349 : vector<11x32xf32>
    %cst_121 = arith.constant dense<0.000000e+00> : vector<11xf32>
    %351 = vector.multi_reduction <add>, %350, %cst_121 [1] : vector<11x32xf32> to vector<11xf32>
    %352 = vector.shape_cast %351 : vector<11xf32> to vector<11x1xf32>
    %cst_122 = arith.constant 3.200000e+01 : f32
    %353 = vector.broadcast %cst_122 : f32 to vector<11x1xf32>
    %354 = arith.divf %352, %353 : vector<11x1xf32>
    %355 = vector.broadcast %347 : vector<11x1xf32> to vector<11x32xf32>
    %356 = arith.subf %343, %355 : vector<11x32xf32>
    %cst_123 = arith.constant 9.99999996E-13 : f32
    %357 = vector.broadcast %cst_123 : f32 to vector<11x1xf32>
    %358 = arith.addf %354, %357 : vector<11x1xf32>
    %359 = math.rsqrt %358 : vector<11x1xf32>
    %360 = vector.broadcast %359 : vector<11x1xf32> to vector<11x32xf32>
    %361 = arith.mulf %356, %360 : vector<11x32xf32>
    %362 = vector.broadcast %205 : vector<1x32xf32> to vector<11x32xf32>
    %363 = arith.mulf %361, %362 : vector<11x32xf32>
    %364 = vector.broadcast %206 : vector<1x32xf32> to vector<11x32xf32>
    %365 = arith.addf %363, %364 : vector<11x32xf32>
    %cst_124 = arith.constant dense<0.000000e+00> : vector<11x64xf32>
    %366 = tpu.matmul %365, %200, %cst_124 {dimension_numbers = #tpu.dot_dimension_numbers<[1], [0], [0], [1], [0, 0, 1, 1], [], []>} : vector<11x32xf32>, vector<32x64xf32>, vector<11x64xf32> -> vector<11x64xf32>
    %367 = vector.broadcast %208 : vector<1x64xf32> to vector<11x64xf32>
    %368 = arith.addf %366, %367 : vector<11x64xf32>
    %cst_125 = arith.constant 5.000000e-01 : f32
    %369 = vector.broadcast %cst_125 : f32 to vector<11x64xf32>
    %370 = arith.mulf %369, %368 : vector<11x64xf32>
    %cst_126 = arith.constant 0.707106769 : f32
    %371 = vector.broadcast %cst_126 : f32 to vector<11x64xf32>
    %372 = arith.mulf %368, %371 : vector<11x64xf32>
    %373 = math.erf %372 : vector<11x64xf32>
    %cst_127 = arith.constant 1.000000e+00 : f32
    %374 = vector.broadcast %cst_127 : f32 to vector<11x64xf32>
    %375 = arith.addf %374, %373 : vector<11x64xf32>
    %376 = arith.mulf %370, %375 : vector<11x64xf32>
    %cst_128 = arith.constant dense<0.000000e+00> : vector<11x32xf32>
    %377 = tpu.matmul %376, %201, %cst_128 {dimension_numbers = #tpu.dot_dimension_numbers<[1], [0], [0], [1], [0, 0, 1, 1], [], []>} : vector<11x64xf32>, vector<64x32xf32>, vector<11x32xf32> -> vector<11x32xf32>
    %378 = arith.addf %343, %377 : vector<11x32xf32>
    %379 = vector.broadcast %207 : vector<1x32xf32> to vector<11x32xf32>
    %380 = arith.addf %378, %379 : vector<11x32xf32>
    %381 = vector.extract_strided_slice %0 {offsets = [12, 0], sizes = [1, 32], strides = [1, 1]} : vector<26x32xf32> to vector<1x32xf32>
    %382 = vector.extract_strided_slice %0 {offsets = [13, 0], sizes = [1, 32], strides = [1, 1]} : vector<26x32xf32> to vector<1x32xf32>
    %383 = vector.extract_strided_slice %0 {offsets = [14, 0], sizes = [1, 32], strides = [1, 1]} : vector<26x32xf32> to vector<1x32xf32>
    %cst_129 = arith.constant dense<0.000000e+00> : vector<11xf32>
    %384 = vector.multi_reduction <add>, %380, %cst_129 [1] : vector<11x32xf32> to vector<11xf32>
    %385 = vector.shape_cast %384 : vector<11xf32> to vector<11x1xf32>
    %cst_130 = arith.constant 3.200000e+01 : f32
    %386 = vector.broadcast %cst_130 : f32 to vector<11x1xf32>
    %387 = arith.divf %385, %386 : vector<11x1xf32>
    %388 = vector.broadcast %387 : vector<11x1xf32> to vector<11x32xf32>
    %389 = arith.subf %380, %388 : vector<11x32xf32>
    %390 = arith.mulf %389, %389 : vector<11x32xf32>
    %cst_131 = arith.constant dense<0.000000e+00> : vector<11xf32>
    %391 = vector.multi_reduction <add>, %390, %cst_131 [1] : vector<11x32xf32> to vector<11xf32>
    %392 = vector.shape_cast %391 : vector<11xf32> to vector<11x1xf32>
    %cst_132 = arith.constant 3.200000e+01 : f32
    %393 = vector.broadcast %cst_132 : f32 to vector<11x1xf32>
    %394 = arith.divf %392, %393 : vector<11x1xf32>
    %395 = vector.broadcast %387 : vector<11x1xf32> to vector<11x32xf32>
    %396 = arith.subf %380, %395 : vector<11x32xf32>
    %cst_133 = arith.constant 9.99999996E-13 : f32
    %397 = vector.broadcast %cst_133 : f32 to vector<11x1xf32>
    %398 = arith.addf %394, %397 : vector<11x1xf32>
    %399 = math.rsqrt %398 : vector<11x1xf32>
    %400 = vector.broadcast %399 : vector<11x1xf32> to vector<11x32xf32>
    %401 = arith.mulf %396, %400 : vector<11x32xf32>
    %402 = vector.broadcast %381 : vector<1x32xf32> to vector<11x32xf32>
    %403 = arith.mulf %401, %402 : vector<11x32xf32>
    %404 = vector.broadcast %382 : vector<1x32xf32> to vector<11x32xf32>
    %405 = arith.addf %403, %404 : vector<11x32xf32>
    %406 = vector.extract_strided_slice %405 {offsets = [0, 0], sizes = [1, 32], strides = [1, 1]} : vector<11x32xf32> to vector<1x32xf32>
    %c0_134 = arith.constant 0 : index
    %c0_135 = arith.constant 0 : index
    %407 = vector.load %arg14[%c0_134, %c0_135] : memref<32x8xf32, #tpu.memory_space<vmem>>, vector<32x8xf32>
    %cst_136 = arith.constant dense<0.000000e+00> : vector<1x8xf32>
    %408 = tpu.matmul %406, %407, %cst_136 {dimension_numbers = #tpu.dot_dimension_numbers<[1], [0], [0], [1], [0, 0, 1, 1], [], []>} : vector<1x32xf32>, vector<32x8xf32>, vector<1x8xf32> -> vector<1x8xf32>
    %c0_137 = arith.constant 0 : index
    %c0_138 = arith.constant 0 : index
    %409 = vector.load %arg29[%c0_137, %c0_138] : memref<1x8xf32, #tpu.memory_space<vmem>>, vector<1x8xf32>
    %410 = arith.addf %408, %409 : vector<1x8xf32>
    %c0_139 = arith.constant 0 : index
    %c0_140 = arith.constant 0 : index
    %c0_141 = arith.constant 0 : index
    %411 = vector.load %arg32[%c0_139, %c0_140, %c0_141] : memref<1x1x8xf32, #tpu.memory_space<vmem>>, vector<1x1x8xf32>
    %412 = vector.shape_cast %411 : vector<1x1x8xf32> to vector<1x8xf32>
    %413 = vector.shape_cast %410 : vector<1x8xf32> to vector<1x1x8xf32>
    tpu.vector_store %arg32[%c0_139, %c0_140, %c0_141], %413 {strides = array<i32>} : memref<1x1x8xf32, #tpu.memory_space<vmem>>, vector<1x1x8xf32>,
    %c0_142 = arith.constant 0 : index
    %c0_143 = arith.constant 0 : index
    %414 = vector.load %arg15[%c0_142, %c0_143] : memref<8x32xf32, #tpu.memory_space<vmem>>, vector<8x32xf32>
    %cst_144 = arith.constant dense<0.000000e+00> : vector<1x32xf32>
    %415 = tpu.matmul %410, %414, %cst_144 {dimension_numbers = #tpu.dot_dimension_numbers<[1], [0], [0], [1], [0, 0, 1, 1], [], []>} : vector<1x8xf32>, vector<8x32xf32>, vector<1x32xf32> -> vector<1x32xf32>
    %416 = arith.addf %415, %383 : vector<1x32xf32>
    %c0_145 = arith.constant 0 : index
    %c0_146 = arith.constant 0 : index
    %c0_147 = arith.constant 0 : index
    %417 = vector.load %arg16[%c0_145, %c0_146, %c0_147] : memref<4x32x8xf32, #tpu.memory_space<vmem>>, vector<4x32x8xf32>
    %c0_148 = arith.constant 0 : index
    %c0_149 = arith.constant 0 : index
    %418 = vector.load %arg17[%c0_148, %c0_149] : memref<64x32xf32, #tpu.memory_space<vmem>>, vector<64x32xf32>
    %c0_150 = arith.constant 0 : index
    %c0_151 = arith.constant 0 : index
    %c0_152 = arith.constant 0 : index
    %419 = vector.load %arg18[%c0_150, %c0_151, %c0_152] : memref<4x8x32xf32, #tpu.memory_space<vmem>>, vector<4x8x32xf32>
    %c0_153 = arith.constant 0 : index
    %c0_154 = arith.constant 0 : index
    %420 = vector.load %arg19[%c0_153, %c0_154] : memref<32x32xf32, #tpu.memory_space<vmem>>, vector<32x32xf32>
    %c0_155 = arith.constant 0 : index
    %c0_156 = arith.constant 0 : index
    %421 = vector.load %arg20[%c0_155, %c0_156] : memref<32x32xf32, #tpu.memory_space<vmem>>, vector<32x32xf32>
    %c0_157 = arith.constant 0 : index
    %c0_158 = arith.constant 0 : index
    %422 = vector.load %arg21[%c0_157, %c0_158] : memref<32x64xf32, #tpu.memory_space<vmem>>, vector<32x64xf32>
    %c0_159 = arith.constant 0 : index
    %c0_160 = arith.constant 0 : index
    %423 = vector.load %arg22[%c0_159, %c0_160] : memref<64x32xf32, #tpu.memory_space<vmem>>, vector<64x32xf32>
    %424 = vector.extract_strided_slice %0 {offsets = [15, 0], sizes = [1, 32], strides = [1, 1]} : vector<26x32xf32> to vector<1x32xf32>
    %425 = vector.extract_strided_slice %0 {offsets = [16, 0], sizes = [1, 32], strides = [1, 1]} : vector<26x32xf32> to vector<1x32xf32>
    %426 = vector.extract_strided_slice %0 {offsets = [17, 0], sizes = [1, 32], strides = [1, 1]} : vector<26x32xf32> to vector<1x32xf32>
    %427 = vector.extract_strided_slice %0 {offsets = [18, 0], sizes = [1, 32], strides = [1, 1]} : vector<26x32xf32> to vector<1x32xf32>
    %428 = vector.extract_strided_slice %0 {offsets = [19, 0], sizes = [1, 32], strides = [1, 1]} : vector<26x32xf32> to vector<1x32xf32>
    %429 = vector.extract_strided_slice %0 {offsets = [20, 0], sizes = [1, 32], strides = [1, 1]} : vector<26x32xf32> to vector<1x32xf32>
    %430 = vector.extract_strided_slice %0 {offsets = [21, 0], sizes = [1, 32], strides = [1, 1]} : vector<26x32xf32> to vector<1x32xf32>
    %431 = vector.extract_strided_slice %0 {offsets = [22, 0], sizes = [1, 32], strides = [1, 1]} : vector<26x32xf32> to vector<1x32xf32>
    %432 = vector.extract_strided_slice %0 {offsets = [23, 0], sizes = [1, 32], strides = [1, 1]} : vector<26x32xf32> to vector<1x32xf32>
    %433 = vector.extract_strided_slice %0 {offsets = [24, 0], sizes = [1, 32], strides = [1, 1]} : vector<26x32xf32> to vector<1x32xf32>
    %434 = vector.extract_strided_slice %1 {offsets = [2, 0], sizes = [1, 64], strides = [1, 1]} : vector<3x64xf32> to vector<1x64xf32>
    %435 = vector.extract_strided_slice %2 {offsets = [2, 0, 0, 0], sizes = [1, 4, 1, 8], strides = [1, 1, 1, 1]} : vector<3x4x1x8xf32> to vector<1x4x1x8xf32>
    %436 = vector.shape_cast %435 : vector<1x4x1x8xf32> to vector<4x1x8xf32>
    %437 = vector.extract_strided_slice %3 {offsets = [2, 0, 0], sizes = [1, 64, 1], strides = [1, 1, 1]} : vector<3x64x1xf32> to vector<1x64x1xf32>
    %438 = vector.shape_cast %437 : vector<1x64x1xf32> to vector<64x1xf32>
    %cst_161 = arith.constant dense<0.000000e+00> : vector<64x11xf32>
    %439 = tpu.matmul %418, %405, %cst_161 {dimension_numbers = #tpu.dot_dimension_numbers<[1], [1], [0], [0], [0, 0, 1, 0], [], []>} : vector<64x32xf32>, vector<11x32xf32>, vector<64x11xf32> -> vector<64x11xf32>
    %440 = vector.broadcast %438 : vector<64x1xf32> to vector<64x11xf32>
    %441 = arith.addf %439, %440 : vector<64x11xf32>
    %442 = vector.extract_strided_slice %417 {offsets = [0, 0, 0], sizes = [1, 32, 8], strides = [1, 1, 1]} : vector<4x32x8xf32> to vector<1x32x8xf32>
    %443 = vector.shape_cast %442 : vector<1x32x8xf32> to vector<32x8xf32>
    %cst_162 = arith.constant dense<0.000000e+00> : vector<11x8xf32>
    %444 = tpu.matmul %405, %443, %cst_162 {dimension_numbers = #tpu.dot_dimension_numbers<[1], [0], [0], [1], [0, 0, 1, 1], [], []>} : vector<11x32xf32>, vector<32x8xf32>, vector<11x8xf32> -> vector<11x8xf32>
    %445 = vector.extract_strided_slice %436 {offsets = [0, 0, 0], sizes = [1, 1, 8], strides = [1, 1, 1]} : vector<4x1x8xf32> to vector<1x1x8xf32>
    %446 = vector.shape_cast %445 : vector<1x1x8xf32> to vector<1x8xf32>
    %447 = vector.broadcast %446 : vector<1x8xf32> to vector<11x8xf32>
    %448 = arith.addf %444, %447 : vector<11x8xf32>
    %449 = vector.extract_strided_slice %441 {offsets = [0, 0], sizes = [8, 11], strides = [1, 1]} : vector<64x11xf32> to vector<8x11xf32>
    %450 = vector.extract_strided_slice %441 {offsets = [32, 0], sizes = [8, 11], strides = [1, 1]} : vector<64x11xf32> to vector<8x11xf32>
    %cst_163 = arith.constant dense<0.000000e+00> : vector<11x11xf32>
    %451 = tpu.matmul %448, %449, %cst_163 {dimension_numbers = #tpu.dot_dimension_numbers<[1], [0], [0], [1], [0, 0, 1, 1], [], []>} : vector<11x8xf32>, vector<8x11xf32>, vector<11x11xf32> -> vector<11x11xf32>
    %cst_164 = arith.constant 0.353553385 : f32
    %452 = vector.broadcast %cst_164 : f32 to vector<11x11xf32>
    %453 = arith.mulf %451, %452 : vector<11x11xf32>
    %cst_165 = arith.constant dense<0xFF800000> : vector<11xf32>
    %454 = vector.multi_reduction <maximumf>, %453, %cst_165 [1] : vector<11x11xf32> to vector<11xf32>
    %455 = vector.shape_cast %454 : vector<11xf32> to vector<11x1xf32>
    %456 = vector.broadcast %455 : vector<11x1xf32> to vector<11x11xf32>
    %457 = arith.subf %453, %456 : vector<11x11xf32>
    %458 = math.exp %457 : vector<11x11xf32>
    %cst_166 = arith.constant dense<0.000000e+00> : vector<11xf32>
    %459 = vector.multi_reduction <add>, %458, %cst_166 [1] : vector<11x11xf32> to vector<11xf32>
    %460 = vector.shape_cast %459 : vector<11xf32> to vector<11x1xf32>
    %461 = vector.broadcast %460 : vector<11x1xf32> to vector<11x11xf32>
    %462 = arith.divf %458, %461 : vector<11x11xf32>
    %cst_167 = arith.constant dense<0.000000e+00> : vector<11x8xf32>
    %463 = tpu.matmul %462, %450, %cst_167 {dimension_numbers = #tpu.dot_dimension_numbers<[1], [1], [0], [0], [0, 0, 1, 0], [], []>} : vector<11x11xf32>, vector<8x11xf32>, vector<11x8xf32> -> vector<11x8xf32>
    %464 = vector.extract_strided_slice %419 {offsets = [0, 0, 0], sizes = [1, 8, 32], strides = [1, 1, 1]} : vector<4x8x32xf32> to vector<1x8x32xf32>
    %465 = vector.shape_cast %464 : vector<1x8x32xf32> to vector<8x32xf32>
    %cst_168 = arith.constant dense<0.000000e+00> : vector<11x32xf32>
    %466 = tpu.matmul %463, %465, %cst_168 {dimension_numbers = #tpu.dot_dimension_numbers<[1], [0], [0], [1], [0, 0, 1, 1], [], []>} : vector<11x8xf32>, vector<8x32xf32>, vector<11x32xf32> -> vector<11x32xf32>
    %467 = vector.broadcast %426 : vector<1x32xf32> to vector<11x32xf32>
    %468 = arith.addf %467, %466 : vector<11x32xf32>
    %469 = vector.extract_strided_slice %417 {offsets = [1, 0, 0], sizes = [1, 32, 8], strides = [1, 1, 1]} : vector<4x32x8xf32> to vector<1x32x8xf32>
    %470 = vector.shape_cast %469 : vector<1x32x8xf32> to vector<32x8xf32>
    %cst_169 = arith.constant dense<0.000000e+00> : vector<11x8xf32>
    %471 = tpu.matmul %405, %470, %cst_169 {dimension_numbers = #tpu.dot_dimension_numbers<[1], [0], [0], [1], [0, 0, 1, 1], [], []>} : vector<11x32xf32>, vector<32x8xf32>, vector<11x8xf32> -> vector<11x8xf32>
    %472 = vector.extract_strided_slice %436 {offsets = [1, 0, 0], sizes = [1, 1, 8], strides = [1, 1, 1]} : vector<4x1x8xf32> to vector<1x1x8xf32>
    %473 = vector.shape_cast %472 : vector<1x1x8xf32> to vector<1x8xf32>
    %474 = vector.broadcast %473 : vector<1x8xf32> to vector<11x8xf32>
    %475 = arith.addf %471, %474 : vector<11x8xf32>
    %476 = vector.extract_strided_slice %441 {offsets = [8, 0], sizes = [8, 11], strides = [1, 1]} : vector<64x11xf32> to vector<8x11xf32>
    %477 = vector.extract_strided_slice %441 {offsets = [40, 0], sizes = [8, 11], strides = [1, 1]} : vector<64x11xf32> to vector<8x11xf32>
    %cst_170 = arith.constant dense<0.000000e+00> : vector<11x11xf32>
    %478 = tpu.matmul %475, %476, %cst_170 {dimension_numbers = #tpu.dot_dimension_numbers<[1], [0], [0], [1], [0, 0, 1, 1], [], []>} : vector<11x8xf32>, vector<8x11xf32>, vector<11x11xf32> -> vector<11x11xf32>
    %cst_171 = arith.constant 0.353553385 : f32
    %479 = vector.broadcast %cst_171 : f32 to vector<11x11xf32>
    %480 = arith.mulf %478, %479 : vector<11x11xf32>
    %cst_172 = arith.constant dense<0xFF800000> : vector<11xf32>
    %481 = vector.multi_reduction <maximumf>, %480, %cst_172 [1] : vector<11x11xf32> to vector<11xf32>
    %482 = vector.shape_cast %481 : vector<11xf32> to vector<11x1xf32>
    %483 = vector.broadcast %482 : vector<11x1xf32> to vector<11x11xf32>
    %484 = arith.subf %480, %483 : vector<11x11xf32>
    %485 = math.exp %484 : vector<11x11xf32>
    %cst_173 = arith.constant dense<0.000000e+00> : vector<11xf32>
    %486 = vector.multi_reduction <add>, %485, %cst_173 [1] : vector<11x11xf32> to vector<11xf32>
    %487 = vector.shape_cast %486 : vector<11xf32> to vector<11x1xf32>
    %488 = vector.broadcast %487 : vector<11x1xf32> to vector<11x11xf32>
    %489 = arith.divf %485, %488 : vector<11x11xf32>
    %cst_174 = arith.constant dense<0.000000e+00> : vector<11x8xf32>
    %490 = tpu.matmul %489, %477, %cst_174 {dimension_numbers = #tpu.dot_dimension_numbers<[1], [1], [0], [0], [0, 0, 1, 0], [], []>} : vector<11x11xf32>, vector<8x11xf32>, vector<11x8xf32> -> vector<11x8xf32>
    %491 = vector.extract_strided_slice %419 {offsets = [1, 0, 0], sizes = [1, 8, 32], strides = [1, 1, 1]} : vector<4x8x32xf32> to vector<1x8x32xf32>
    %492 = vector.shape_cast %491 : vector<1x8x32xf32> to vector<8x32xf32>
    %cst_175 = arith.constant dense<0.000000e+00> : vector<11x32xf32>
    %493 = tpu.matmul %490, %492, %cst_175 {dimension_numbers = #tpu.dot_dimension_numbers<[1], [0], [0], [1], [0, 0, 1, 1], [], []>} : vector<11x8xf32>, vector<8x32xf32>, vector<11x32xf32> -> vector<11x32xf32>
    %494 = arith.addf %468, %493 : vector<11x32xf32>
    %495 = vector.extract_strided_slice %417 {offsets = [2, 0, 0], sizes = [1, 32, 8], strides = [1, 1, 1]} : vector<4x32x8xf32> to vector<1x32x8xf32>
    %496 = vector.shape_cast %495 : vector<1x32x8xf32> to vector<32x8xf32>
    %cst_176 = arith.constant dense<0.000000e+00> : vector<11x8xf32>
    %497 = tpu.matmul %405, %496, %cst_176 {dimension_numbers = #tpu.dot_dimension_numbers<[1], [0], [0], [1], [0, 0, 1, 1], [], []>} : vector<11x32xf32>, vector<32x8xf32>, vector<11x8xf32> -> vector<11x8xf32>
    %498 = vector.extract_strided_slice %436 {offsets = [2, 0, 0], sizes = [1, 1, 8], strides = [1, 1, 1]} : vector<4x1x8xf32> to vector<1x1x8xf32>
    %499 = vector.shape_cast %498 : vector<1x1x8xf32> to vector<1x8xf32>
    %500 = vector.broadcast %499 : vector<1x8xf32> to vector<11x8xf32>
    %501 = arith.addf %497, %500 : vector<11x8xf32>
    %502 = vector.extract_strided_slice %441 {offsets = [16, 0], sizes = [8, 11], strides = [1, 1]} : vector<64x11xf32> to vector<8x11xf32>
    %503 = vector.extract_strided_slice %441 {offsets = [48, 0], sizes = [8, 11], strides = [1, 1]} : vector<64x11xf32> to vector<8x11xf32>
    %cst_177 = arith.constant dense<0.000000e+00> : vector<11x11xf32>
    %504 = tpu.matmul %501, %502, %cst_177 {dimension_numbers = #tpu.dot_dimension_numbers<[1], [0], [0], [1], [0, 0, 1, 1], [], []>} : vector<11x8xf32>, vector<8x11xf32>, vector<11x11xf32> -> vector<11x11xf32>
    %cst_178 = arith.constant 0.353553385 : f32
    %505 = vector.broadcast %cst_178 : f32 to vector<11x11xf32>
    %506 = arith.mulf %504, %505 : vector<11x11xf32>
    %cst_179 = arith.constant dense<0xFF800000> : vector<11xf32>
    %507 = vector.multi_reduction <maximumf>, %506, %cst_179 [1] : vector<11x11xf32> to vector<11xf32>
    %508 = vector.shape_cast %507 : vector<11xf32> to vector<11x1xf32>
    %509 = vector.broadcast %508 : vector<11x1xf32> to vector<11x11xf32>
    %510 = arith.subf %506, %509 : vector<11x11xf32>
    %511 = math.exp %510 : vector<11x11xf32>
    %cst_180 = arith.constant dense<0.000000e+00> : vector<11xf32>
    %512 = vector.multi_reduction <add>, %511, %cst_180 [1] : vector<11x11xf32> to vector<11xf32>
    %513 = vector.shape_cast %512 : vector<11xf32> to vector<11x1xf32>
    %514 = vector.broadcast %513 : vector<11x1xf32> to vector<11x11xf32>
    %515 = arith.divf %511, %514 : vector<11x11xf32>
    %cst_181 = arith.constant dense<0.000000e+00> : vector<11x8xf32>
    %516 = tpu.matmul %515, %503, %cst_181 {dimension_numbers = #tpu.dot_dimension_numbers<[1], [1], [0], [0], [0, 0, 1, 0], [], []>} : vector<11x11xf32>, vector<8x11xf32>, vector<11x8xf32> -> vector<11x8xf32>
    %517 = vector.extract_strided_slice %419 {offsets = [2, 0, 0], sizes = [1, 8, 32], strides = [1, 1, 1]} : vector<4x8x32xf32> to vector<1x8x32xf32>
    %518 = vector.shape_cast %517 : vector<1x8x32xf32> to vector<8x32xf32>
    %cst_182 = arith.constant dense<0.000000e+00> : vector<11x32xf32>
    %519 = tpu.matmul %516, %518, %cst_182 {dimension_numbers = #tpu.dot_dimension_numbers<[1], [0], [0], [1], [0, 0, 1, 1], [], []>} : vector<11x8xf32>, vector<8x32xf32>, vector<11x32xf32> -> vector<11x32xf32>
    %520 = arith.addf %494, %519 : vector<11x32xf32>
    %521 = vector.extract_strided_slice %417 {offsets = [3, 0, 0], sizes = [1, 32, 8], strides = [1, 1, 1]} : vector<4x32x8xf32> to vector<1x32x8xf32>
    %522 = vector.shape_cast %521 : vector<1x32x8xf32> to vector<32x8xf32>
    %cst_183 = arith.constant dense<0.000000e+00> : vector<11x8xf32>
    %523 = tpu.matmul %405, %522, %cst_183 {dimension_numbers = #tpu.dot_dimension_numbers<[1], [0], [0], [1], [0, 0, 1, 1], [], []>} : vector<11x32xf32>, vector<32x8xf32>, vector<11x8xf32> -> vector<11x8xf32>
    %524 = vector.extract_strided_slice %436 {offsets = [3, 0, 0], sizes = [1, 1, 8], strides = [1, 1, 1]} : vector<4x1x8xf32> to vector<1x1x8xf32>
    %525 = vector.shape_cast %524 : vector<1x1x8xf32> to vector<1x8xf32>
    %526 = vector.broadcast %525 : vector<1x8xf32> to vector<11x8xf32>
    %527 = arith.addf %523, %526 : vector<11x8xf32>
    %528 = vector.extract_strided_slice %441 {offsets = [24, 0], sizes = [8, 11], strides = [1, 1]} : vector<64x11xf32> to vector<8x11xf32>
    %529 = vector.extract_strided_slice %441 {offsets = [56, 0], sizes = [8, 11], strides = [1, 1]} : vector<64x11xf32> to vector<8x11xf32>
    %cst_184 = arith.constant dense<0.000000e+00> : vector<11x11xf32>
    %530 = tpu.matmul %527, %528, %cst_184 {dimension_numbers = #tpu.dot_dimension_numbers<[1], [0], [0], [1], [0, 0, 1, 1], [], []>} : vector<11x8xf32>, vector<8x11xf32>, vector<11x11xf32> -> vector<11x11xf32>
    %cst_185 = arith.constant 0.353553385 : f32
    %531 = vector.broadcast %cst_185 : f32 to vector<11x11xf32>
    %532 = arith.mulf %530, %531 : vector<11x11xf32>
    %cst_186 = arith.constant dense<0xFF800000> : vector<11xf32>
    %533 = vector.multi_reduction <maximumf>, %532, %cst_186 [1] : vector<11x11xf32> to vector<11xf32>
    %534 = vector.shape_cast %533 : vector<11xf32> to vector<11x1xf32>
    %535 = vector.broadcast %534 : vector<11x1xf32> to vector<11x11xf32>
    %536 = arith.subf %532, %535 : vector<11x11xf32>
    %537 = math.exp %536 : vector<11x11xf32>
    %cst_187 = arith.constant dense<0.000000e+00> : vector<11xf32>
    %538 = vector.multi_reduction <add>, %537, %cst_187 [1] : vector<11x11xf32> to vector<11xf32>
    %539 = vector.shape_cast %538 : vector<11xf32> to vector<11x1xf32>
    %540 = vector.broadcast %539 : vector<11x1xf32> to vector<11x11xf32>
    %541 = arith.divf %537, %540 : vector<11x11xf32>
    %cst_188 = arith.constant dense<0.000000e+00> : vector<11x8xf32>
    %542 = tpu.matmul %541, %529, %cst_188 {dimension_numbers = #tpu.dot_dimension_numbers<[1], [1], [0], [0], [0, 0, 1, 0], [], []>} : vector<11x11xf32>, vector<8x11xf32>, vector<11x8xf32> -> vector<11x8xf32>
    %543 = vector.extract_strided_slice %419 {offsets = [3, 0, 0], sizes = [1, 8, 32], strides = [1, 1, 1]} : vector<4x8x32xf32> to vector<1x8x32xf32>
    %544 = vector.shape_cast %543 : vector<1x8x32xf32> to vector<8x32xf32>
    %cst_189 = arith.constant dense<0.000000e+00> : vector<11x32xf32>
    %545 = tpu.matmul %542, %544, %cst_189 {dimension_numbers = #tpu.dot_dimension_numbers<[1], [0], [0], [1], [0, 0, 1, 1], [], []>} : vector<11x8xf32>, vector<8x32xf32>, vector<11x32xf32> -> vector<11x32xf32>
    %546 = arith.addf %520, %545 : vector<11x32xf32>
    %547 = arith.addf %405, %546 : vector<11x32xf32>
    %cst_190 = arith.constant dense<0.000000e+00> : vector<11xf32>
    %548 = vector.multi_reduction <add>, %547, %cst_190 [1] : vector<11x32xf32> to vector<11xf32>
    %549 = vector.shape_cast %548 : vector<11xf32> to vector<11x1xf32>
    %cst_191 = arith.constant 3.200000e+01 : f32
    %550 = vector.broadcast %cst_191 : f32 to vector<11x1xf32>
    %551 = arith.divf %549, %550 : vector<11x1xf32>
    %552 = vector.broadcast %551 : vector<11x1xf32> to vector<11x32xf32>
    %553 = arith.subf %547, %552 : vector<11x32xf32>
    %554 = arith.mulf %553, %553 : vector<11x32xf32>
    %cst_192 = arith.constant dense<0.000000e+00> : vector<11xf32>
    %555 = vector.multi_reduction <add>, %554, %cst_192 [1] : vector<11x32xf32> to vector<11xf32>
    %556 = vector.shape_cast %555 : vector<11xf32> to vector<11x1xf32>
    %cst_193 = arith.constant 3.200000e+01 : f32
    %557 = vector.broadcast %cst_193 : f32 to vector<11x1xf32>
    %558 = arith.divf %556, %557 : vector<11x1xf32>
    %559 = vector.broadcast %551 : vector<11x1xf32> to vector<11x32xf32>
    %560 = arith.subf %547, %559 : vector<11x32xf32>
    %cst_194 = arith.constant 9.99999974E-6 : f32
    %561 = vector.broadcast %cst_194 : f32 to vector<11x1xf32>
    %562 = arith.addf %558, %561 : vector<11x1xf32>
    %563 = math.rsqrt %562 : vector<11x1xf32>
    %564 = vector.broadcast %563 : vector<11x1xf32> to vector<11x32xf32>
    %565 = arith.mulf %560, %564 : vector<11x32xf32>
    %566 = vector.broadcast %424 : vector<1x32xf32> to vector<11x32xf32>
    %567 = arith.mulf %565, %566 : vector<11x32xf32>
    %568 = vector.broadcast %425 : vector<1x32xf32> to vector<11x32xf32>
    %569 = arith.addf %567, %568 : vector<11x32xf32>
    %cst_195 = arith.constant dense<0.000000e+00> : vector<1x32xf32>
    %570 = tpu.matmul %416, %420, %cst_195 {dimension_numbers = #tpu.dot_dimension_numbers<[1], [0], [0], [1], [0, 0, 1, 1], [], []>} : vector<1x32xf32>, vector<32x32xf32>, vector<1x32xf32> -> vector<1x32xf32>
    %571 = arith.addf %570, %427 : vector<1x32xf32>
    %cst_196 = arith.constant dense<0.000000e+00> : vector<1x32xf32>
    %572 = tpu.matmul %571, %421, %cst_196 {dimension_numbers = #tpu.dot_dimension_numbers<[1], [0], [0], [1], [0, 0, 1, 1], [], []>} : vector<1x32xf32>, vector<32x32xf32>, vector<1x32xf32> -> vector<1x32xf32>
    %573 = arith.addf %572, %428 : vector<1x32xf32>
    %574 = vector.broadcast %573 : vector<1x32xf32> to vector<11x32xf32>
    %575 = arith.addf %569, %574 : vector<11x32xf32>
    %cst_197 = arith.constant dense<0.000000e+00> : vector<11xf32>
    %576 = vector.multi_reduction <add>, %575, %cst_197 [1] : vector<11x32xf32> to vector<11xf32>
    %577 = vector.shape_cast %576 : vector<11xf32> to vector<11x1xf32>
    %cst_198 = arith.constant 3.200000e+01 : f32
    %578 = vector.broadcast %cst_198 : f32 to vector<11x1xf32>
    %579 = arith.divf %577, %578 : vector<11x1xf32>
    %580 = vector.broadcast %579 : vector<11x1xf32> to vector<11x32xf32>
    %581 = arith.subf %575, %580 : vector<11x32xf32>
    %582 = arith.mulf %581, %581 : vector<11x32xf32>
    %cst_199 = arith.constant dense<0.000000e+00> : vector<11xf32>
    %583 = vector.multi_reduction <add>, %582, %cst_199 [1] : vector<11x32xf32> to vector<11xf32>
    %584 = vector.shape_cast %583 : vector<11xf32> to vector<11x1xf32>
    %cst_200 = arith.constant 3.200000e+01 : f32
    %585 = vector.broadcast %cst_200 : f32 to vector<11x1xf32>
    %586 = arith.divf %584, %585 : vector<11x1xf32>
    %587 = vector.broadcast %579 : vector<11x1xf32> to vector<11x32xf32>
    %588 = arith.subf %575, %587 : vector<11x32xf32>
    %cst_201 = arith.constant 9.99999974E-6 : f32
    %589 = vector.broadcast %cst_201 : f32 to vector<11x1xf32>
    %590 = arith.addf %586, %589 : vector<11x1xf32>
    %591 = math.rsqrt %590 : vector<11x1xf32>
    %592 = vector.broadcast %591 : vector<11x1xf32> to vector<11x32xf32>
    %593 = arith.mulf %588, %592 : vector<11x32xf32>
    %594 = vector.broadcast %429 : vector<1x32xf32> to vector<11x32xf32>
    %595 = arith.mulf %593, %594 : vector<11x32xf32>
    %596 = vector.broadcast %430 : vector<1x32xf32> to vector<11x32xf32>
    %597 = arith.addf %595, %596 : vector<11x32xf32>
    %cst_202 = arith.constant dense<0.000000e+00> : vector<11x64xf32>
    %598 = tpu.matmul %597, %422, %cst_202 {dimension_numbers = #tpu.dot_dimension_numbers<[1], [0], [0], [1], [0, 0, 1, 1], [], []>} : vector<11x32xf32>, vector<32x64xf32>, vector<11x64xf32> -> vector<11x64xf32>
    %599 = vector.broadcast %434 : vector<1x64xf32> to vector<11x64xf32>
    %600 = arith.addf %598, %599 : vector<11x64xf32>
    %cst_203 = arith.constant 0.000000e+00 : f32
    %601 = vector.broadcast %cst_203 : f32 to vector<11x64xf32>
    %602 = arith.maximumf %600, %601 : vector<11x64xf32>
    %cst_204 = arith.constant dense<0.000000e+00> : vector<11x32xf32>
    %603 = tpu.matmul %602, %423, %cst_204 {dimension_numbers = #tpu.dot_dimension_numbers<[1], [0], [0], [1], [0, 0, 1, 1], [], []>} : vector<11x64xf32>, vector<64x32xf32>, vector<11x32xf32> -> vector<11x32xf32>
    %604 = arith.addf %597, %603 : vector<11x32xf32>
    %605 = vector.broadcast %431 : vector<1x32xf32> to vector<11x32xf32>
    %606 = arith.addf %604, %605 : vector<11x32xf32>
    %cst_205 = arith.constant dense<0.000000e+00> : vector<11xf32>
    %607 = vector.multi_reduction <add>, %606, %cst_205 [1] : vector<11x32xf32> to vector<11xf32>
    %608 = vector.shape_cast %607 : vector<11xf32> to vector<11x1xf32>
    %cst_206 = arith.constant 3.200000e+01 : f32
    %609 = vector.broadcast %cst_206 : f32 to vector<11x1xf32>
    %610 = arith.divf %608, %609 : vector<11x1xf32>
    %611 = vector.broadcast %610 : vector<11x1xf32> to vector<11x32xf32>
    %612 = arith.subf %606, %611 : vector<11x32xf32>
    %613 = arith.mulf %612, %612 : vector<11x32xf32>
    %cst_207 = arith.constant dense<0.000000e+00> : vector<11xf32>
    %614 = vector.multi_reduction <add>, %613, %cst_207 [1] : vector<11x32xf32> to vector<11xf32>
    %615 = vector.shape_cast %614 : vector<11xf32> to vector<11x1xf32>
    %cst_208 = arith.constant 3.200000e+01 : f32
    %616 = vector.broadcast %cst_208 : f32 to vector<11x1xf32>
    %617 = arith.divf %615, %616 : vector<11x1xf32>
    %618 = vector.broadcast %610 : vector<11x1xf32> to vector<11x32xf32>
    %619 = arith.subf %606, %618 : vector<11x32xf32>
    %cst_209 = arith.constant 9.99999974E-6 : f32
    %620 = vector.broadcast %cst_209 : f32 to vector<11x1xf32>
    %621 = arith.addf %617, %620 : vector<11x1xf32>
    %622 = math.rsqrt %621 : vector<11x1xf32>
    %623 = vector.broadcast %622 : vector<11x1xf32> to vector<11x32xf32>
    %624 = arith.mulf %619, %623 : vector<11x32xf32>
    %625 = vector.broadcast %432 : vector<1x32xf32> to vector<11x32xf32>
    %626 = arith.mulf %624, %625 : vector<11x32xf32>
    %627 = vector.broadcast %433 : vector<1x32xf32> to vector<11x32xf32>
    %628 = arith.addf %626, %627 : vector<11x32xf32>
    %629 = vector.extract_strided_slice %0 {offsets = [25, 0], sizes = [1, 32], strides = [1, 1]} : vector<26x32xf32> to vector<1x32xf32>
    %c0_210 = arith.constant 0 : index
    %c0_211 = arith.constant 0 : index
    %630 = vector.load %arg23[%c0_210, %c0_211] : memref<32x32xf32, #tpu.memory_space<vmem>>, vector<32x32xf32>
    %cst_212 = arith.constant dense<0.000000e+00> : vector<11x32xf32>
    %631 = tpu.matmul %628, %630, %cst_212 {dimension_numbers = #tpu.dot_dimension_numbers<[1], [0], [0], [1], [0, 0, 1, 1], [], []>} : vector<11x32xf32>, vector<32x32xf32>, vector<11x32xf32> -> vector<11x32xf32>
    %632 = vector.broadcast %629 : vector<1x32xf32> to vector<11x32xf32>
    %633 = arith.addf %631, %632 : vector<11x32xf32>
    %cst_213 = arith.constant 0.000000e+00 : f32
    %634 = vector.broadcast %cst_213 : f32 to vector<11x32xf32>
    %635 = arith.maximumf %633, %634 : vector<11x32xf32>
    %c0_214 = arith.constant 0 : index
    %c0_215 = arith.constant 0 : index
    %636 = vector.load %arg24[%c0_214, %c0_215] : memref<16x32xf32, #tpu.memory_space<vmem>>, vector<16x32xf32>
    %cst_216 = arith.constant dense<0.000000e+00> : vector<16x11xf32>
    %637 = tpu.matmul %636, %635, %cst_216 {dimension_numbers = #tpu.dot_dimension_numbers<[1], [1], [0], [0], [0, 0, 1, 0], [], []>} : vector<16x32xf32>, vector<11x32xf32>, vector<16x11xf32> -> vector<16x11xf32>
    %c0_217 = arith.constant 0 : index
    %c0_218 = arith.constant 0 : index
    %638 = vector.load %arg30[%c0_217, %c0_218] : memref<16x1xf32, #tpu.memory_space<vmem>>, vector<16x1xf32>
    %639 = vector.broadcast %638 : vector<16x1xf32> to vector<16x11xf32>
    %640 = arith.addf %637, %639 : vector<16x11xf32>
    %c0_219 = arith.constant 0 : index
    %c0_220 = arith.constant 0 : index
    %c0_221 = arith.constant 0 : index
    %641 = vector.load %arg31[%c0_219, %c0_220, %c0_221] : memref<1x16x11xf32, #tpu.memory_space<vmem>>, vector<1x16x11xf32>
    %642 = vector.shape_cast %641 : vector<1x16x11xf32> to vector<16x11xf32>
    %643 = vector.shape_cast %640 : vector<16x11xf32> to vector<1x16x11xf32>
    tpu.vector_store %arg31[%c0_219, %c0_220, %c0_221], %643 {strides = array<i32>} : memref<1x16x11xf32, #tpu.memory_space<vmem>>, vector<1x16x11xf32>,
    return
  }
  func.func @transform_0(%arg0: i32) -> (i32, i32, i32) {
    %c0_i32 = arith.constant 0 : i32
    %c0_i32_0 = arith.constant 0 : i32
    %c0_i32_1 = arith.constant 0 : i32
    return %arg0, %c0_i32, %c0_i32_0 : i32, i32, i32
  }
  func.func @transform_1(%arg0: i32) -> (i32, i32) {
    %c0_i32 = arith.constant 0 : i32
    %c0_i32_0 = arith.constant 0 : i32
    %c0_i32_1 = arith.constant 0 : i32
    return %c0_i32, %c0_i32_0 : i32, i32
  }
  func.func @transform_2(%arg0: i32) -> (i32, i32) {
    %c0_i32 = arith.constant 0 : i32
    %c0_i32_0 = arith.constant 0 : i32
    %c0_i32_1 = arith.constant 0 : i32
    return %c0_i32, %c0_i32_0 : i32, i32
  }
  func.func @transform_3(%arg0: i32) -> (i32, i32, i32) {
    %c0_i32 = arith.constant 0 : i32
    %c0_i32_0 = arith.constant 0 : i32
    %c0_i32_1 = arith.constant 0 : i32
    %c0_i32_2 = arith.constant 0 : i32
    return %c0_i32, %c0_i32_0, %c0_i32_1 : i32, i32, i32
  }
  func.func @transform_4(%arg0: i32) -> (i32, i32) {
    %c0_i32 = arith.constant 0 : i32
    %c0_i32_0 = arith.constant 0 : i32
    %c0_i32_1 = arith.constant 0 : i32
    return %c0_i32, %c0_i32_0 : i32, i32
  }
  func.func @transform_5(%arg0: i32) -> (i32, i32, i32) {
    %c0_i32 = arith.constant 0 : i32
    %c0_i32_0 = arith.constant 0 : i32
    %c0_i32_1 = arith.constant 0 : i32
    %c0_i32_2 = arith.constant 0 : i32
    return %c0_i32, %c0_i32_0, %c0_i32_1 : i32, i32, i32
  }
  func.func @transform_6(%arg0: i32) -> (i32, i32) {
    %c0_i32 = arith.constant 0 : i32
    %c0_i32_0 = arith.constant 0 : i32
    %c0_i32_1 = arith.constant 0 : i32
    return %c0_i32, %c0_i32_0 : i32, i32
  }
  func.func @transform_7(%arg0: i32) -> (i32, i32) {
    %c0_i32 = arith.constant 0 : i32
    %c0_i32_0 = arith.constant 0 : i32
    %c0_i32_1 = arith.constant 0 : i32
    return %c0_i32, %c0_i32_0 : i32, i32
  }
  func.func @transform_8(%arg0: i32) -> (i32, i32, i32) {
    %c0_i32 = arith.constant 0 : i32
    %c0_i32_0 = arith.constant 0 : i32
    %c0_i32_1 = arith.constant 0 : i32
    %c0_i32_2 = arith.constant 0 : i32
    return %c0_i32, %c0_i32_0, %c0_i32_1 : i32, i32, i32
  }
  func.func @transform_9(%arg0: i32) -> (i32, i32) {
    %c0_i32 = arith.constant 0 : i32
    %c0_i32_0 = arith.constant 0 : i32
    %c0_i32_1 = arith.constant 0 : i32
    return %c0_i32, %c0_i32_0 : i32, i32
  }
  func.func @transform_10(%arg0: i32) -> (i32, i32, i32) {
    %c0_i32 = arith.constant 0 : i32
    %c0_i32_0 = arith.constant 0 : i32
    %c0_i32_1 = arith.constant 0 : i32
    %c0_i32_2 = arith.constant 0 : i32
    return %c0_i32, %c0_i32_0, %c0_i32_1 : i32, i32, i32
  }
  func.func @transform_11(%arg0: i32) -> (i32, i32) {
    %c0_i32 = arith.constant 0 : i32
    %c0_i32_0 = arith.constant 0 : i32
    %c0_i32_1 = arith.constant 0 : i32
    return %c0_i32, %c0_i32_0 : i32, i32
  }
  func.func @transform_12(%arg0: i32) -> (i32, i32) {
    %c0_i32 = arith.constant 0 : i32
    %c0_i32_0 = arith.constant 0 : i32
    %c0_i32_1 = arith.constant 0 : i32
    return %c0_i32, %c0_i32_0 : i32, i32
  }
  func.func @transform_13(%arg0: i32) -> (i32, i32) {
    %c0_i32 = arith.constant 0 : i32
    %c0_i32_0 = arith.constant 0 : i32
    %c0_i32_1 = arith.constant 0 : i32
    return %c0_i32, %c0_i32_0 : i32, i32
  }
  func.func @transform_14(%arg0: i32) -> (i32, i32) {
    %c0_i32 = arith.constant 0 : i32
    %c0_i32_0 = arith.constant 0 : i32
    %c0_i32_1 = arith.constant 0 : i32
    return %c0_i32, %c0_i32_0 : i32, i32
  }
  func.func @transform_15(%arg0: i32) -> (i32, i32, i32) {
    %c0_i32 = arith.constant 0 : i32
    %c0_i32_0 = arith.constant 0 : i32
    %c0_i32_1 = arith.constant 0 : i32
    %c0_i32_2 = arith.constant 0 : i32
    return %c0_i32, %c0_i32_0, %c0_i32_1 : i32, i32, i32
  }
  func.func @transform_16(%arg0: i32) -> (i32, i32) {
    %c0_i32 = arith.constant 0 : i32
    %c0_i32_0 = arith.constant 0 : i32
    %c0_i32_1 = arith.constant 0 : i32
    return %c0_i32, %c0_i32_0 : i32, i32
  }
  func.func @transform_17(%arg0: i32) -> (i32, i32, i32) {
    %c0_i32 = arith.constant 0 : i32
    %c0_i32_0 = arith.constant 0 : i32
    %c0_i32_1 = arith.constant 0 : i32
    %c0_i32_2 = arith.constant 0 : i32
    return %c0_i32, %c0_i32_0, %c0_i32_1 : i32, i32, i32
  }
  func.func @transform_18(%arg0: i32) -> (i32, i32) {
    %c0_i32 = arith.constant 0 : i32
    %c0_i32_0 = arith.constant 0 : i32
    %c0_i32_1 = arith.constant 0 : i32
    return %c0_i32, %c0_i32_0 : i32, i32
  }
  func.func @transform_19(%arg0: i32) -> (i32, i32) {
    %c0_i32 = arith.constant 0 : i32
    %c0_i32_0 = arith.constant 0 : i32
    %c0_i32_1 = arith.constant 0 : i32
    return %c0_i32, %c0_i32_0 : i32, i32
  }
  func.func @transform_20(%arg0: i32) -> (i32, i32) {
    %c0_i32 = arith.constant 0 : i32
    %c0_i32_0 = arith.constant 0 : i32
    %c0_i32_1 = arith.constant 0 : i32
    return %c0_i32, %c0_i32_0 : i32, i32
  }
  func.func @transform_21(%arg0: i32) -> (i32, i32) {
    %c0_i32 = arith.constant 0 : i32
    %c0_i32_0 = arith.constant 0 : i32
    %c0_i32_1 = arith.constant 0 : i32
    return %c0_i32, %c0_i32_0 : i32, i32
  }
  func.func @transform_22(%arg0: i32) -> (i32, i32) {
    %c0_i32 = arith.constant 0 : i32
    %c0_i32_0 = arith.constant 0 : i32
    %c0_i32_1 = arith.constant 0 : i32
    return %c0_i32, %c0_i32_0 : i32, i32
  }
  func.func @transform_23(%arg0: i32) -> (i32, i32) {
    %c0_i32 = arith.constant 0 : i32
    %c0_i32_0 = arith.constant 0 : i32
    %c0_i32_1 = arith.constant 0 : i32
    return %c0_i32, %c0_i32_0 : i32, i32
  }
  func.func @transform_24(%arg0: i32) -> (i32, i32) {
    %c0_i32 = arith.constant 0 : i32
    %c0_i32_0 = arith.constant 0 : i32
    %c0_i32_1 = arith.constant 0 : i32
    return %c0_i32, %c0_i32_0 : i32, i32
  }
  func.func @transform_25(%arg0: i32) -> (i32, i32) {
    %c0_i32 = arith.constant 0 : i32
    %c0_i32_0 = arith.constant 0 : i32
    %c0_i32_1 = arith.constant 0 : i32
    return %c0_i32, %c0_i32_0 : i32, i32
  }
  func.func @transform_26(%arg0: i32) -> (i32, i32, i32, i32) {
    %c0_i32 = arith.constant 0 : i32
    %c0_i32_0 = arith.constant 0 : i32
    %c0_i32_1 = arith.constant 0 : i32
    %c0_i32_2 = arith.constant 0 : i32
    %c0_i32_3 = arith.constant 0 : i32
    return %c0_i32, %c0_i32_0, %c0_i32_1, %c0_i32_2 : i32, i32, i32, i32
  }
  func.func @transform_27(%arg0: i32) -> (i32, i32, i32) {
    %c0_i32 = arith.constant 0 : i32
    %c0_i32_0 = arith.constant 0 : i32
    %c0_i32_1 = arith.constant 0 : i32
    %c0_i32_2 = arith.constant 0 : i32
    return %c0_i32, %c0_i32_0, %c0_i32_1 : i32, i32, i32
  }
  func.func @transform_28(%arg0: i32) -> (i32, i32) {
    %c0_i32 = arith.constant 0 : i32
    %c0_i32_0 = arith.constant 0 : i32
    %c0_i32_1 = arith.constant 0 : i32
    return %c0_i32, %c0_i32_0 : i32, i32
  }
  func.func @transform_29(%arg0: i32) -> (i32, i32) {
    %c0_i32 = arith.constant 0 : i32
    %c0_i32_0 = arith.constant 0 : i32
    %c0_i32_1 = arith.constant 0 : i32
    return %c0_i32, %c0_i32_0 : i32, i32
  }
  func.func @transform_30(%arg0: i32) -> (i32, i32, i32) {
    %c0_i32 = arith.constant 0 : i32
    %c0_i32_0 = arith.constant 0 : i32
    %c0_i32_1 = arith.constant 0 : i32
    return %arg0, %c0_i32, %c0_i32_0 : i32, i32, i32
  }
  func.func @transform_31(%arg0: i32) -> (i32, i32, i32) {
    %c0_i32 = arith.constant 0 : i32
    %c0_i32_0 = arith.constant 0 : i32
    %c0_i32_1 = arith.constant 0 : i32
    return %arg0, %c0_i32, %c0_i32_0 : i32, i32, i32
  }
}

</mosaic_0001>

<llo_original>
// kernel: branch_transformer_ae_forward.1
$region0: #{branch_transformer_ae_forward.1}
  #allocation0 [shape = 'u32[]', space=smem, size = 0x4, offset = 0x4, fixed_abs, tag = 'smem constant byte address 0x4 - core index']
  #allocation1 [shape = 'u32[72,128]{1,0:T(1,128)}', space=vmem, size = 0x9000, scoped, tag = 'internal scratch']
  %s0 = inlined_call_operand.smem [shape: u32[32], index: -1, kind: input, shape index: {}]
  %s1 = sld [smem:[%s0]]
  %s2 = scalar_lea.smem %s0, 1
  %s3 = sld [smem:[%s2]]
  %s4 = scalar_lea.smem %s0, 2
  %s5 = sld [smem:[%s4]]
  %s6 = scalar_lea.smem %s0, 3
  %s7 = sld [smem:[%s6]]
  %s8 = scalar_lea.smem %s0, 4
  %s9 = sld [smem:[%s8]]
  %s10 = scalar_lea.smem %s0, 5
  %s11 = sld [smem:[%s10]]
  %s12 = scalar_lea.smem %s0, 6
  %s13 = sld [smem:[%s12]]
  %s14 = scalar_lea.smem %s0, 7
  %s15 = sld [smem:[%s14]]
  %s16 = scalar_lea.smem %s0, 8
  %s17 = sld [smem:[%s16]]
  %s18 = scalar_lea.smem %s0, 9
  %s19 = sld [smem:[%s18]]
  %s20 = scalar_lea.smem %s0, 10
  %s21 = sld [smem:[%s20]]
  %s22 = scalar_lea.smem %s0, 11
  %s23 = sld [smem:[%s22]]
  %s24 = scalar_lea.smem %s0, 12
  %s25 = sld [smem:[%s24]]
  %s26 = scalar_lea.smem %s0, 13
  %s27 = sld [smem:[%s26]]
  %s28 = scalar_lea.smem %s0, 14
  %s29 = sld [smem:[%s28]]
  %s30 = scalar_lea.smem %s0, 15
  %s31 = sld [smem:[%s30]]
  %s32 = scalar_lea.smem %s0, 16
  %s33 = sld [smem:[%s32]]
  %s34 = scalar_lea.smem %s0, 17
  %s35 = sld [smem:[%s34]]
  %s36 = scalar_lea.smem %s0, 18
  %s37 = sld [smem:[%s36]]
  %s38 = scalar_lea.smem %s0, 19
  %s39 = sld [smem:[%s38]]
  %s40 = scalar_lea.smem %s0, 20
  %s41 = sld [smem:[%s40]]
  %s42 = scalar_lea.smem %s0, 21
  %s43 = sld [smem:[%s42]]
  %s44 = scalar_lea.smem %s0, 22
  %s45 = sld [smem:[%s44]]
  %s46 = scalar_lea.smem %s0, 23
  %s47 = sld [smem:[%s46]]
  %s48 = scalar_lea.smem %s0, 24
  %s49 = sld [smem:[%s48]]
  %s50 = scalar_lea.smem %s0, 25
  %s51 = sld [smem:[%s50]]
  %s52 = scalar_lea.smem %s0, 26
  %s53 = sld [smem:[%s52]]
  %s54 = scalar_lea.smem %s0, 27
  %s55 = sld [smem:[%s54]]
  %s56 = scalar_lea.smem %s0, 28
  %s57 = sld [smem:[%s56]]
  %s58 = scalar_lea.smem %s0, 29
  %s59 = sld [smem:[%s58]]
  %s60 = scalar_lea.smem %s0, 30
  %s61 = sld [smem:[%s60]]
  %s62 = scalar_lea.smem %s0, 31
  %s63 = sld [smem:[%s62]]
  %64 = xla_tuple %s61, %s63
  %s65 = sld [smem:[#allocation0]]
  $region161: #{branch_transformer_ae_forward.1} parent=0
    _
  %s67 = ssub.s32 1, %s65
  %s68 = scalar_select 0, %s67, %s65
  $region1: #{branch_transformer_ae_forward.1} parent=0
    #allocation2 [shape = 'u8[1024]{0}', space=vmem, size = 0x400, scoped, tag = 'output window, operand 1']
    #allocation3 [shape = 's32[2]{0}', space=sflag, size = 0x8, scoped, tag = 'scoped memory for branch_transformer_ae_forward.1']
    %69 = vsyncpa [#allocation3], 0
    %s70 = scalar_lea.sflag [#allocation3], 1
    %71 = vsyncpa %s70, 0
    loop: start=0, step=1, limit=4
    $region2: #{branch_transformer_ae_forward.1} parent=1 // loop_pre_header
      _
    $region3: #{branch_transformer_ae_forward.1} parent=1 // loop_header
      %s73 = sphi 0, %s77
      %p74 = scmp.ge.s32.totalorder %s73, 4
      %s83 = sphi 0, %s85
      %s86 = sphi 0, %s83
      %s87 = sphi 0, %s86
      %s103 = sphi 0, %s87
      %s107 = sphi 0, %s107
      %s109 = sphi 0, %s107
      %s110 = sphi 0, %s109
      %s124 = sphi 0, %s110
      %s128 = sphi 0, %s128
      %s130 = sphi 0, %s128
      %s131 = sphi 0, %s130
      %s145 = sphi 0, %s131
      %s149 = sphi 0, %s149
      %s151 = sphi 0, %s149
      %s152 = sphi 0, %s151
      %s166 = sphi 0, %s152
      %s170 = sphi 0, %s170
      %s172 = sphi 0, %s170
      %s173 = sphi 0, %s172
      %s187 = sphi 0, %s173
      %s191 = sphi 0, %s191
      %s193 = sphi 0, %s191
      %s194 = sphi 0, %s193
      %s208 = sphi 0, %s194
      %s212 = sphi 0, %s212
      %s214 = sphi 0, %s212
      %s215 = sphi 0, %s214
      %s229 = sphi 0, %s215
      %s233 = sphi 0, %s233
      %s235 = sphi 0, %s233
      %s236 = sphi 0, %s235
      %s250 = sphi 0, %s236
      %s254 = sphi 0, %s254
      %s256 = sphi 0, %s254
      %s257 = sphi 0, %s256
      %s271 = sphi 0, %s257
      %s275 = sphi 0, %s275
      %s277 = sphi 0, %s275
      %s278 = sphi 0, %s277
      %s292 = sphi 0, %s278
      %s296 = sphi 0, %s296
      %s298 = sphi 0, %s296
      %s299 = sphi 0, %s298
      %s313 = sphi 0, %s299
      %s317 = sphi 0, %s317
      %s319 = sphi 0, %s317
      %s320 = sphi 0, %s319
      %s334 = sphi 0, %s320
      %s338 = sphi 0, %s338
      %s340 = sphi 0, %s338
      %s341 = sphi 0, %s340
      %s355 = sphi 0, %s341
      %s359 = sphi 0, %s359
      %s361 = sphi 0, %s359
      %s362 = sphi 0, %s361
      %s376 = sphi 0, %s362
      %s380 = sphi 0, %s380
      %s382 = sphi 0, %s380
      %s383 = sphi 0, %s382
      %s397 = sphi 0, %s383
      %s401 = sphi 0, %s401
      %s403 = sphi 0, %s401
      %s404 = sphi 0, %s403
      %s418 = sphi 0, %s404
      %s422 = sphi 0, %s422
      %s424 = sphi 0, %s422
      %s425 = sphi 0, %s424
      %s439 = sphi 0, %s425
      %s443 = sphi 0, %s443
      %s445 = sphi 0, %s443
      %s446 = sphi 0, %s445
      %s460 = sphi 0, %s446
      %s464 = sphi 0, %s464
      %s466 = sphi 0, %s464
      %s467 = sphi 0, %s466
      %s481 = sphi 0, %s467
      %s485 = sphi 0, %s485
      %s487 = sphi 0, %s485
      %s488 = sphi 0, %s487
      %s502 = sphi 0, %s488
      %s506 = sphi 0, %s506
      %s508 = sphi 0, %s506
      %s509 = sphi 0, %s508
      %s523 = sphi 0, %s509
      %s527 = sphi 0, %s527
      %s529 = sphi 0, %s527
      %s530 = sphi 0, %s529
      %s544 = sphi 0, %s530
      %s548 = sphi 0, %s548
      %s550 = sphi 0, %s548
      %s551 = sphi 0, %s550
      %s565 = sphi 0, %s551
      %s569 = sphi 0, %s569
      %s571 = sphi 0, %s569
      %s572 = sphi 0, %s571
      %s586 = sphi 0, %s572
      %s590 = sphi 0, %s590
      %s592 = sphi 0, %s590
      %s593 = sphi 0, %s592
      %s607 = sphi 0, %s593
      %s611 = sphi 0, %s611
      %s613 = sphi 0, %s611
      %s614 = sphi 0, %s613
      %s628 = sphi 0, %s614
      %s632 = sphi 0, %s632
      %s634 = sphi 0, %s632
      %s635 = sphi 0, %s634
      %s649 = sphi 0, %s635
      %s653 = sphi 0, %s653
      %s655 = sphi 0, %s653
      %s656 = sphi 0, %s655
      %s670 = sphi 0, %s656
      %s674 = sphi 0, %s674
      %s676 = sphi 0, %s674
      %s677 = sphi 0, %s676
      %s691 = sphi 0, %s677
      %s695 = sphi 0, %s695
      %s697 = sphi 0, %s695
      %s698 = sphi 0, %s697
      %s712 = sphi 0, %s698
      %s718 = sphi 0, %s720
      %s721 = sphi 0, %s718
      %s722 = sphi 0, %s721
      %s738 = sphi 0, %s722
      %s744 = sphi 0, %s746
      %s747 = sphi 0, %s744
      %s748 = sphi 0, %s747
      %s764 = sphi 0, %s748
    $region4: #{branch_transformer_ae_forward.1} parent=1 // loop_header_branch
      %76 = sbr.rel (%p74) target = $region8
    $region5: #{branch_transformer_ae_forward.1} parent=1 // loop_body
      %s78 = ssub.s32 %s73, 1
      %s79 = ssub.s32 %s73, 2
      %s80 = sadd.s32 %s73, 1
      %s81 = ssub.s32 %s73, %s80
      %p82 = scmp.eq.s32.totalorder %s81, 0
      %s84 = sadd.s32 %s83, 1
      %s85 = scalar_select %p82, %s83, %s84
      %p88 = pneg %p82
      %p89 = scmp.eq.s32.totalorder %s73, 1
      %p90 = por %p88, %p89
      %p91 = scmp.ne.s32.totalorder %s83, %s86
      %p92 = scmp.eq.s32.totalorder %s73, 0
      %p93 = por %p91, %p92
      %p94 = scmp.ne.s32.totalorder %s83, %s86
      %p95 = scmp.eq.s32.totalorder %s78, 1
      %p96 = por %p94, %p95
      %p97 = scmp.ne.s32.totalorder %s86, %s87
      %p98 = scmp.eq.s32.totalorder %s78, 0
      %p99 = por %p97, %p98
      %p100 = scmp.ne.s32.totalorder %s86, %s87
      %p101 = scmp.eq.s32.totalorder %s79, 1
      %p102 = por %p100, %p101
      %p104 = scmp.ne.s32.totalorder %s87, %s103
      %p105 = scmp.eq.s32.totalorder %s79, 0
      %p106 = por %p104, %p105
      %s108 = sadd.s32 %s107, 1
      %p111 = scmp.eq.s32.totalorder %s73, 1
      %p112 = scmp.ne.s32.totalorder %s107, %s109
      %p113 = scmp.eq.s32.totalorder %s73, 0
      %p114 = por %p112, %p113
      %p115 = scmp.ne.s32.totalorder %s107, %s109
      %p116 = scmp.eq.s32.totalorder %s78, 1
      %p117 = por %p115, %p116
      %p118 = scmp.ne.s32.totalorder %s109, %s110
      %p119 = scmp.eq.s32.totalorder %s78, 0
      %p120 = por %p118, %p119
      %p121 = scmp.ne.s32.totalorder %s109, %s110
      %p122 = scmp.eq.s32.totalorder %s79, 1
      %p123 = por %p121, %p122
      %p125 = scmp.ne.s32.totalorder %s110, %s124
      %p126 = scmp.eq.s32.totalorder %s79, 0
      %p127 = por %p125, %p126
      %s129 = sadd.s32 %s128, 1
      %p132 = scmp.eq.s32.totalorder %s73, 1
      %p133 = scmp.ne.s32.totalorder %s128, %s130
      %p134 = scmp.eq.s32.totalorder %s73, 0
      %p135 = por %p133, %p134
      %p136 = scmp.ne.s32.totalorder %s128, %s130
      %p137 = scmp.eq.s32.totalorder %s78, 1
      %p138 = por %p136, %p137
      %p139 = scmp.ne.s32.totalorder %s130, %s131
      %p140 = scmp.eq.s32.totalorder %s78, 0
      %p141 = por %p139, %p140
      %p142 = scmp.ne.s32.totalorder %s130, %s131
      %p143 = scmp.eq.s32.totalorder %s79, 1
      %p144 = por %p142, %p143
      %p146 = scmp.ne.s32.totalorder %s131, %s145
      %p147 = scmp.eq.s32.totalorder %s79, 0
      %p148 = por %p146, %p147
      %s150 = sadd.s32 %s149, 1
      %p153 = scmp.eq.s32.totalorder %s73, 1
      %p154 = scmp.ne.s32.totalorder %s149, %s151
      %p155 = scmp.eq.s32.totalorder %s73, 0
      %p156 = por %p154, %p155
      %p157 = scmp.ne.s32.totalorder %s149, %s151
      %p158 = scmp.eq.s32.totalorder %s78, 1
      %p159 = por %p157, %p158
      %p160 = scmp.ne.s32.totalorder %s151, %s152
      %p161 = scmp.eq.s32.totalorder %s78, 0
      %p162 = por %p160, %p161
      %p163 = scmp.ne.s32.totalorder %s151, %s152
      %p164 = scmp.eq.s32.totalorder %s79, 1
      %p165 = por %p163, %p164
      %p167 = scmp.ne.s32.totalorder %s152, %s166
      %p168 = scmp.eq.s32.totalorder %s79, 0
      %p169 = por %p167, %p168
      %s171 = sadd.s32 %s170, 1
      %p174 = scmp.eq.s32.totalorder %s73, 1
      %p175 = scmp.ne.s32.totalorder %s170, %s172
      %p176 = scmp.eq.s32.totalorder %s73, 0
      %p177 = por %p175, %p176
      %p178 = scmp.ne.s32.totalorder %s170, %s172
      %p179 = scmp.eq.s32.totalorder %s78, 1
      %p180 = por %p178, %p179
      %p181 = scmp.ne.s32.totalorder %s172, %s173
      %p182 = scmp.eq.s32.totalorder %s78, 0
      %p183 = por %p181, %p182
      %p184 = scmp.ne.s32.totalorder %s172, %s173
      %p185 = scmp.eq.s32.totalorder %s79, 1
      %p186 = por %p184, %p185
      %p188 = scmp.ne.s32.totalorder %s173, %s187
      %p189 = scmp.eq.s32.totalorder %s79, 0
      %p190 = por %p188, %p189
      %s192 = sadd.s32 %s191, 1
      %p195 = scmp.eq.s32.totalorder %s73, 1
      %p196 = scmp.ne.s32.totalorder %s191, %s193
      %p197 = scmp.eq.s32.totalorder %s73, 0
      %p198 = por %p196, %p197
      %p199 = scmp.ne.s32.totalorder %s191, %s193
      %p200 = scmp.eq.s32.totalorder %s78, 1
      %p201 = por %p199, %p200
      %p202 = scmp.ne.s32.totalorder %s193, %s194
      %p203 = scmp.eq.s32.totalorder %s78, 0
      %p204 = por %p202, %p203
      %p205 = scmp.ne.s32.totalorder %s193, %s194
      %p206 = scmp.eq.s32.totalorder %s79, 1
      %p207 = por %p205, %p206
      %p209 = scmp.ne.s32.totalorder %s194, %s208
      %p210 = scmp.eq.s32.totalorder %s79, 0
      %p211 = por %p209, %p210
      %s213 = sadd.s32 %s212, 1
      %p216 = scmp.eq.s32.totalorder %s73, 1
      %p217 = scmp.ne.s32.totalorder %s212, %s214
      %p218 = scmp.eq.s32.totalorder %s73, 0
      %p219 = por %p217, %p218
      %p220 = scmp.ne.s32.totalorder %s212, %s214
      %p221 = scmp.eq.s32.totalorder %s78, 1
      %p222 = por %p220, %p221
      %p223 = scmp.ne.s32.totalorder %s214, %s215
      %p224 = scmp.eq.s32.totalorder %s78, 0
      %p225 = por %p223, %p224
      %p226 = scmp.ne.s32.totalorder %s214, %s215
      %p227 = scmp.eq.s32.totalorder %s79, 1
      %p228 = por %p226, %p227
      %p230 = scmp.ne.s32.totalorder %s215, %s229
      %p231 = scmp.eq.s32.totalorder %s79, 0
      %p232 = por %p230, %p231
      %s234 = sadd.s32 %s233, 1
      %p237 = scmp.eq.s32.totalorder %s73, 1
      %p238 = scmp.ne.s32.totalorder %s233, %s235
      %p239 = scmp.eq.s32.totalorder %s73, 0
      %p240 = por %p238, %p239
      %p241 = scmp.ne.s32.totalorder %s233, %s235
      %p242 = scmp.eq.s32.totalorder %s78, 1
      %p243 = por %p241, %p242
      %p244 = scmp.ne.s32.totalorder %s235, %s236
      %p245 = scmp.eq.s32.totalorder %s78, 0
      %p246 = por %p244, %p245
      %p247 = scmp.ne.s32.totalorder %s235, %s236
      %p248 = scmp.eq.s32.totalorder %s79, 1
      %p249 = por %p247, %p248
      %p251 = scmp.ne.s32.totalorder %s236, %s250
      %p252 = scmp.eq.s32.totalorder %s79, 0
      %p253 = por %p251, %p252
      %s255 = sadd.s32 %s254, 1
      %p258 = scmp.eq.s32.totalorder %s73, 1
      %p259 = scmp.ne.s32.totalorder %s254, %s256
      %p260 = scmp.eq.s32.totalorder %s73, 0
      %p261 = por %p259, %p260
      %p262 = scmp.ne.s32.totalorder %s254, %s256
      %p263 = scmp.eq.s32.totalorder %s78, 1
      %p264 = por %p262, %p263
      %p265 = scmp.ne.s32.totalorder %s256, %s257
      %p266 = scmp.eq.s32.totalorder %s78, 0
      %p267 = por %p265, %p266
      %p268 = scmp.ne.s32.totalorder %s256, %s257
      %p269 = scmp.eq.s32.totalorder %s79, 1
      %p270 = por %p268, %p269
      %p272 = scmp.ne.s32.totalorder %s257, %s271
      %p273 = scmp.eq.s32.totalorder %s79, 0
      %p274 = por %p272, %p273
      %s276 = sadd.s32 %s275, 1
      %p279 = scmp.eq.s32.totalorder %s73, 1
      %p280 = scmp.ne.s32.totalorder %s275, %s277
      %p281 = scmp.eq.s32.totalorder %s73, 0
      %p282 = por %p280, %p281
      %p283 = scmp.ne.s32.totalorder %s275, %s277
      %p284 = scmp.eq.s32.totalorder %s78, 1
      %p285 = por %p283, %p284
      %p286 = scmp.ne.s32.totalorder %s277, %s278
      %p287 = scmp.eq.s32.totalorder %s78, 0
      %p288 = por %p286, %p287
      %p289 = scmp.ne.s32.totalorder %s277, %s278
      %p290 = scmp.eq.s32.totalorder %s79, 1
      %p291 = por %p289, %p290
      %p293 = scmp.ne.s32.totalorder %s278, %s292
      %p294 = scmp.eq.s32.totalorder %s79, 0
      %p295 = por %p293, %p294
      %s297 = sadd.s32 %s296, 1
      %p300 = scmp.eq.s32.totalorder %s73, 1
      %p301 = scmp.ne.s32.totalorder %s296, %s298
      %p302 = scmp.eq.s32.totalorder %s73, 0
      %p303 = por %p301, %p302
      %p304 = scmp.ne.s32.totalorder %s296, %s298
      %p305 = scmp.eq.s32.totalorder %s78, 1
      %p306 = por %p304, %p305
      %p307 = scmp.ne.s32.totalorder %s298, %s299
      %p308 = scmp.eq.s32.totalorder %s78, 0
      %p309 = por %p307, %p308
      %p310 = scmp.ne.s32.totalorder %s298, %s299
      %p311 = scmp.eq.s32.totalorder %s79, 1
      %p312 = por %p310, %p311
      %p314 = scmp.ne.s32.totalorder %s299, %s313
      %p315 = scmp.eq.s32.totalorder %s79, 0
      %p316 = por %p314, %p315
      %s318 = sadd.s32 %s317, 1
      %p321 = scmp.eq.s32.totalorder %s73, 1
      %p322 = scmp.ne.s32.totalorder %s317, %s319
      %p323 = scmp.eq.s32.totalorder %s73, 0
      %p324 = por %p322, %p323
      %p325 = scmp.ne.s32.totalorder %s317, %s319
      %p326 = scmp.eq.s32.totalorder %s78, 1
      %p327 = por %p325, %p326
      %p328 = scmp.ne.s32.totalorder %s319, %s320
      %p329 = scmp.eq.s32.totalorder %s78, 0
      %p330 = por %p328, %p329
      %p331 = scmp.ne.s32.totalorder %s319, %s320
      %p332 = scmp.eq.s32.totalorder %s79, 1
      %p333 = por %p331, %p332
      %p335 = scmp.ne.s32.totalorder %s320, %s334
      %p336 = scmp.eq.s32.totalorder %s79, 0
      %p337 = por %p335, %p336
      %s339 = sadd.s32 %s338, 1
      %p342 = scmp.eq.s32.totalorder %s73, 1
      %p343 = scmp.ne.s32.totalorder %s338, %s340
      %p344 = scmp.eq.s32.totalorder %s73, 0
      %p345 = por %p343, %p344
      %p346 = scmp.ne.s32.totalorder %s338, %s340
      %p347 = scmp.eq.s32.totalorder %s78, 1
      %p348 = por %p346, %p347
      %p349 = scmp.ne.s32.totalorder %s340, %s341
      %p350 = scmp.eq.s32.totalorder %s78, 0
      %p351 = por %p349, %p350
      %p352 = scmp.ne.s32.totalorder %s340, %s341
      %p353 = scmp.eq.s32.totalorder %s79, 1
      %p354 = por %p352, %p353
      %p356 = scmp.ne.s32.totalorder %s341, %s355
      %p357 = scmp.eq.s32.totalorder %s79, 0
      %p358 = por %p356, %p357
      %s360 = sadd.s32 %s359, 1
      %p363 = scmp.eq.s32.totalorder %s73, 1
      %p364 = scmp.ne.s32.totalorder %s359, %s361
      %p365 = scmp.eq.s32.totalorder %s73, 0
      %p366 = por %p364, %p365
      %p367 = scmp.ne.s32.totalorder %s359, %s361
      %p368 = scmp.eq.s32.totalorder %s78, 1
      %p369 = por %p367, %p368
      %p370 = scmp.ne.s32.totalorder %s361, %s362
      %p371 = scmp.eq.s32.totalorder %s78, 0
      %p372 = por %p370, %p371
      %p373 = scmp.ne.s32.totalorder %s361, %s362
      %p374 = scmp.eq.s32.totalorder %s79, 1
      %p375 = por %p373, %p374
      %p377 = scmp.ne.s32.totalorder %s362, %s376
      %p378 = scmp.eq.s32.totalorder %s79, 0
      %p379 = por %p377, %p378
      %s381 = sadd.s32 %s380, 1
      %p384 = scmp.eq.s32.totalorder %s73, 1
      %p385 = scmp.ne.s32.totalorder %s380, %s382
      %p386 = scmp.eq.s32.totalorder %s73, 0
      %p387 = por %p385, %p386
      %p388 = scmp.ne.s32.totalorder %s380, %s382
      %p389 = scmp.eq.s32.totalorder %s78, 1
      %p390 = por %p388, %p389
      %p391 = scmp.ne.s32.totalorder %s382, %s383
      %p392 = scmp.eq.s32.totalorder %s78, 0
      %p393 = por %p391, %p392
      %p394 = scmp.ne.s32.totalorder %s382, %s383
      %p395 = scmp.eq.s32.totalorder %s79, 1
      %p396 = por %p394, %p395
      %p398 = scmp.ne.s32.totalorder %s383, %s397
      %p399 = scmp.eq.s32.totalorder %s79, 0
      %p400 = por %p398, %p399
      %s402 = sadd.s32 %s401, 1
      %p405 = scmp.eq.s32.totalorder %s73, 1
      %p406 = scmp.ne.s32.totalorder %s401, %s403
      %p407 = scmp.eq.s32.totalorder %s73, 0
      %p408 = por %p406, %p407
      %p409 = scmp.ne.s32.totalorder %s401, %s403
      %p410 = scmp.eq.s32.totalorder %s78, 1
      %p411 = por %p409, %p410
      %p412 = scmp.ne.s32.totalorder %s403, %s404
      %p413 = scmp.eq.s32.totalorder %s78, 0
      %p414 = por %p412, %p413
      %p415 = scmp.ne.s32.totalorder %s403, %s404
      %p416 = scmp.eq.s32.totalorder %s79, 1
      %p417 = por %p415, %p416
      %p419 = scmp.ne.s32.totalorder %s404, %s418
      %p420 = scmp.eq.s32.totalorder %s79, 0
      %p421 = por %p419, %p420
      %s423 = sadd.s32 %s422, 1
      %p426 = scmp.eq.s32.totalorder %s73, 1
      %p427 = scmp.ne.s32.totalorder %s422, %s424
      %p428 = scmp.eq.s32.totalorder %s73, 0
      %p429 = por %p427, %p428
      %p430 = scmp.ne.s32.totalorder %s422, %s424
      %p431 = scmp.eq.s32.totalorder %s78, 1
      %p432 = por %p430, %p431
      %p433 = scmp.ne.s32.totalorder %s424, %s425
      %p434 = scmp.eq.s32.totalorder %s78, 0
      %p435 = por %p433, %p434
      %p436 = scmp.ne.s32.totalorder %s424, %s425
      %p437 = scmp.eq.s32.totalorder %s79, 1
      %p438 = por %p436, %p437
      %p440 = scmp.ne.s32.totalorder %s425, %s439
      %p441 = scmp.eq.s32.totalorder %s79, 0
      %p442 = por %p440, %p441
      %s444 = sadd.s32 %s443, 1
      %p447 = scmp.eq.s32.totalorder %s73, 1
      %p448 = scmp.ne.s32.totalorder %s443, %s445
      %p449 = scmp.eq.s32.totalorder %s73, 0
      %p450 = por %p448, %p449
      %p451 = scmp.ne.s32.totalorder %s443, %s445
      %p452 = scmp.eq.s32.totalorder %s78, 1
      %p453 = por %p451, %p452
      %p454 = scmp.ne.s32.totalorder %s445, %s446
      %p455 = scmp.eq.s32.totalorder %s78, 0
      %p456 = por %p454, %p455
      %p457 = scmp.ne.s32.totalorder %s445, %s446
      %p458 = scmp.eq.s32.totalorder %s79, 1
      %p459 = por %p457, %p458
      %p461 = scmp.ne.s32.totalorder %s446, %s460
      %p462 = scmp.eq.s32.totalorder %s79, 0
      %p463 = por %p461, %p462
      %s465 = sadd.s32 %s464, 1
      %p468 = scmp.eq.s32.totalorder %s73, 1
      %p469 = scmp.ne.s32.totalorder %s464, %s466
      %p470 = scmp.eq.s32.totalorder %s73, 0
      %p471 = por %p469, %p470
      %p472 = scmp.ne.s32.totalorder %s464, %s466
      %p473 = scmp.eq.s32.totalorder %s78, 1
      %p474 = por %p472, %p473
      %p475 = scmp.ne.s32.totalorder %s466, %s467
      %p476 = scmp.eq.s32.totalorder %s78, 0
      %p477 = por %p475, %p476
      %p478 = scmp.ne.s32.totalorder %s466, %s467
      %p479 = scmp.eq.s32.totalorder %s79, 1
      %p480 = por %p478, %p479
      %p482 = scmp.ne.s32.totalorder %s467, %s481
      %p483 = scmp.eq.s32.totalorder %s79, 0
      %p484 = por %p482, %p483
      %s486 = sadd.s32 %s485, 1
      %p489 = scmp.eq.s32.totalorder %s73, 1
      %p490 = scmp.ne.s32.totalorder %s485, %s487
      %p491 = scmp.eq.s32.totalorder %s73, 0
      %p492 = por %p490, %p491
      %p493 = scmp.ne.s32.totalorder %s485, %s487
      %p494 = scmp.eq.s32.totalorder %s78, 1
      %p495 = por %p493, %p494
      %p496 = scmp.ne.s32.totalorder %s487, %s488
      %p497 = scmp.eq.s32.totalorder %s78, 0
      %p498 = por %p496, %p497
      %p499 = scmp.ne.s32.totalorder %s487, %s488
      %p500 = scmp.eq.s32.totalorder %s79, 1
      %p501 = por %p499, %p500
      %p503 = scmp.ne.s32.totalorder %s488, %s502
      %p504 = scmp.eq.s32.totalorder %s79, 0
      %p505 = por %p503, %p504
      %s507 = sadd.s32 %s506, 1
      %p510 = scmp.eq.s32.totalorder %s73, 1
      %p511 = scmp.ne.s32.totalorder %s506, %s508
      %p512 = scmp.eq.s32.totalorder %s73, 0
      %p513 = por %p511, %p512
      %p514 = scmp.ne.s32.totalorder %s506, %s508
      %p515 = scmp.eq.s32.totalorder %s78, 1
      %p516 = por %p514, %p515
      %p517 = scmp.ne.s32.totalorder %s508, %s509
      %p518 = scmp.eq.s32.totalorder %s78, 0
      %p519 = por %p517, %p518
      %p520 = scmp.ne.s32.totalorder %s508, %s509
      %p521 = scmp.eq.s32.totalorder %s79, 1
      %p522 = por %p520, %p521
      %p524 = scmp.ne.s32.totalorder %s509, %s523
      %p525 = scmp.eq.s32.totalorder %s79, 0
      %p526 = por %p524, %p525
      %s528 = sadd.s32 %s527, 1
      %p531 = scmp.eq.s32.totalorder %s73, 1
      %p532 = scmp.ne.s32.totalorder %s527, %s529
      %p533 = scmp.eq.s32.totalorder %s73, 0
      %p534 = por %p532, %p533
      %p535 = scmp.ne.s32.totalorder %s527, %s529
      %p536 = scmp.eq.s32.totalorder %s78, 1
      %p537 = por %p535, %p536
      %p538 = scmp.ne.s32.totalorder %s529, %s530
      %p539 = scmp.eq.s32.totalorder %s78, 0
      %p540 = por %p538, %p539
      %p541 = scmp.ne.s32.totalorder %s529, %s530
      %p542 = scmp.eq.s32.totalorder %s79, 1
      %p543 = por %p541, %p542
      %p545 = scmp.ne.s32.totalorder %s530, %s544
      %p546 = scmp.eq.s32.totalorder %s79, 0
      %p547 = por %p545, %p546
      %s549 = sadd.s32 %s548, 1
      %p552 = scmp.eq.s32.totalorder %s73, 1
      %p553 = scmp.ne.s32.totalorder %s548, %s550
      %p554 = scmp.eq.s32.totalorder %s73, 0
      %p555 = por %p553, %p554
      %p556 = scmp.ne.s32.totalorder %s548, %s550
      %p557 = scmp.eq.s32.totalorder %s78, 1
      %p558 = por %p556, %p557
      %p559 = scmp.ne.s32.totalorder %s550, %s551
      %p560 = scmp.eq.s32.totalorder %s78, 0
      %p561 = por %p559, %p560
      %p562 = scmp.ne.s32.totalorder %s550, %s551
      %p563 = scmp.eq.s32.totalorder %s79, 1
      %p564 = por %p562, %p563
      %p566 = scmp.ne.s32.totalorder %s551, %s565
      %p567 = scmp.eq.s32.totalorder %s79, 0
      %p568 = por %p566, %p567
      %s570 = sadd.s32 %s569, 1
      %p573 = scmp.eq.s32.totalorder %s73, 1
      %p574 = scmp.ne.s32.totalorder %s569, %s571
      %p575 = scmp.eq.s32.totalorder %s73, 0
      %p576 = por %p574, %p575
      %p577 = scmp.ne.s32.totalorder %s569, %s571
      %p578 = scmp.eq.s32.totalorder %s78, 1
      %p579 = por %p577, %p578
      %p580 = scmp.ne.s32.totalorder %s571, %s572
      %p581 = scmp.eq.s32.totalorder %s78, 0
      %p582 = por %p580, %p581
      %p583 = scmp.ne.s32.totalorder %s571, %s572
      %p584 = scmp.eq.s32.totalorder %s79, 1
      %p585 = por %p583, %p584
      %p587 = scmp.ne.s32.totalorder %s572, %s586
      %p588 = scmp.eq.s32.totalorder %s79, 0
      %p589 = por %p587, %p588
      %s591 = sadd.s32 %s590, 1
      %p594 = scmp.eq.s32.totalorder %s73, 1
      %p595 = scmp.ne.s32.totalorder %s590, %s592
      %p596 = scmp.eq.s32.totalorder %s73, 0
      %p597 = por %p595, %p596
      %p598 = scmp.ne.s32.totalorder %s590, %s592
      %p599 = scmp.eq.s32.totalorder %s78, 1
      %p600 = por %p598, %p599
      %p601 = scmp.ne.s32.totalorder %s592, %s593
      %p602 = scmp.eq.s32.totalorder %s78, 0
      %p603 = por %p601, %p602
      %p604 = scmp.ne.s32.totalorder %s592, %s593
      %p605 = scmp.eq.s32.totalorder %s79, 1
      %p606 = por %p604, %p605
      %p608 = scmp.ne.s32.totalorder %s593, %s607
      %p609 = scmp.eq.s32.totalorder %s79, 0
      %p610 = por %p608, %p609
      %s612 = sadd.s32 %s611, 1
      %p615 = scmp.eq.s32.totalorder %s73, 1
      %p616 = scmp.ne.s32.totalorder %s611, %s613
      %p617 = scmp.eq.s32.totalorder %s73, 0
      %p618 = por %p616, %p617
      %p619 = scmp.ne.s32.totalorder %s611, %s613
      %p620 = scmp.eq.s32.totalorder %s78, 1
      %p621 = por %p619, %p620
      %p622 = scmp.ne.s32.totalorder %s613, %s614
      %p623 = scmp.eq.s32.totalorder %s78, 0
      %p624 = por %p622, %p623
      %p625 = scmp.ne.s32.totalorder %s613, %s614
      %p626 = scmp.eq.s32.totalorder %s79, 1
      %p627 = por %p625, %p626
      %p629 = scmp.ne.s32.totalorder %s614, %s628
      %p630 = scmp.eq.s32.totalorder %s79, 0
      %p631 = por %p629, %p630
      %s633 = sadd.s32 %s632, 1
      %p636 = scmp.eq.s32.totalorder %s73, 1
      %p637 = scmp.ne.s32.totalorder %s632, %s634
      %p638 = scmp.eq.s32.totalorder %s73, 0
      %p639 = por %p637, %p638
      %p640 = scmp.ne.s32.totalorder %s632, %s634
      %p641 = scmp.eq.s32.totalorder %s78, 1
      %p642 = por %p640, %p641
      %p643 = scmp.ne.s32.totalorder %s634, %s635
      %p644 = scmp.eq.s32.totalorder %s78, 0
      %p645 = por %p643, %p644
      %p646 = scmp.ne.s32.totalorder %s634, %s635
      %p647 = scmp.eq.s32.totalorder %s79, 1
      %p648 = por %p646, %p647
      %p650 = scmp.ne.s32.totalorder %s635, %s649
      %p651 = scmp.eq.s32.totalorder %s79, 0
      %p652 = por %p650, %p651
      %s654 = sadd.s32 %s653, 1
      %p657 = scmp.eq.s32.totalorder %s73, 1
      %p658 = scmp.ne.s32.totalorder %s653, %s655
      %p659 = scmp.eq.s32.totalorder %s73, 0
      %p660 = por %p658, %p659
      %p661 = scmp.ne.s32.totalorder %s653, %s655
      %p662 = scmp.eq.s32.totalorder %s78, 1
      %p663 = por %p661, %p662
      %p664 = scmp.ne.s32.totalorder %s655, %s656
      %p665 = scmp.eq.s32.totalorder %s78, 0
      %p666 = por %p664, %p665
      %p667 = scmp.ne.s32.totalorder %s655, %s656
      %p668 = scmp.eq.s32.totalorder %s79, 1
      %p669 = por %p667, %p668
      %p671 = scmp.ne.s32.totalorder %s656, %s670
      %p672 = scmp.eq.s32.totalorder %s79, 0
      %p673 = por %p671, %p672
      %s675 = sadd.s32 %s674, 1
      %p678 = scmp.eq.s32.totalorder %s73, 1
      %p679 = scmp.ne.s32.totalorder %s674, %s676
      %p680 = scmp.eq.s32.totalorder %s73, 0
      %p681 = por %p679, %p680
      %p682 = scmp.ne.s32.totalorder %s674, %s676
      %p683 = scmp.eq.s32.totalorder %s78, 1
      %p684 = por %p682, %p683
      %p685 = scmp.ne.s32.totalorder %s676, %s677
      %p686 = scmp.eq.s32.totalorder %s78, 0
      %p687 = por %p685, %p686
      %p688 = scmp.ne.s32.totalorder %s676, %s677
      %p689 = scmp.eq.s32.totalorder %s79, 1
      %p690 = por %p688, %p689
      %p692 = scmp.ne.s32.totalorder %s677, %s691
      %p693 = scmp.eq.s32.totalorder %s79, 0
      %p694 = por %p692, %p693
      %s696 = sadd.s32 %s695, 1
      %p699 = scmp.eq.s32.totalorder %s73, 1
      %p700 = scmp.ne.s32.totalorder %s695, %s697
      %p701 = scmp.eq.s32.totalorder %s73, 0
      %p702 = por %p700, %p701
      %p703 = scmp.ne.s32.totalorder %s695, %s697
      %p704 = scmp.eq.s32.totalorder %s78, 1
      %p705 = por %p703, %p704
      %p706 = scmp.ne.s32.totalorder %s697, %s698
      %p707 = scmp.eq.s32.totalorder %s78, 0
      %p708 = por %p706, %p707
      %p709 = scmp.ne.s32.totalorder %s697, %s698
      %p710 = scmp.eq.s32.totalorder %s79, 1
      %p711 = por %p709, %p710
      %p713 = scmp.ne.s32.totalorder %s698, %s712
      %p714 = scmp.eq.s32.totalorder %s79, 0
      %p715 = por %p713, %p714
      %s716 = ssub.s32 %s73, %s80
      %p717 = scmp.eq.s32.totalorder %s716, 0
      %s719 = sadd.s32 %s718, 1
      %s720 = scalar_select %p717, %s718, %s719
      %p723 = pneg %p717
      %p724 = scmp.eq.s32.totalorder %s73, 1
      %p725 = por %p723, %p724
      %p726 = scmp.ne.s32.totalorder %s718, %s721
      %p727 = scmp.eq.s32.totalorder %s73, 0
      %p728 = por %p726, %p727
      %p729 = scmp.ne.s32.totalorder %s718, %s721
      %p730 = scmp.eq.s32.totalorder %s78, 1
      %p731 = por %p729, %p730
      %p732 = scmp.ne.s32.totalorder %s721, %s722
      %p733 = scmp.eq.s32.totalorder %s78, 0
      %p734 = por %p732, %p733
      %p735 = scmp.ne.s32.totalorder %s721, %s722
      %p736 = scmp.eq.s32.totalorder %s79, 1
      %p737 = por %p735, %p736
      %p739 = scmp.ne.s32.totalorder %s722, %s738
      %p740 = scmp.eq.s32.totalorder %s79, 0
      %p741 = por %p739, %p740
      %s742 = ssub.s32 %s73, %s80
      %p743 = scmp.eq.s32.totalorder %s742, 0
      %s745 = sadd.s32 %s744, 1
      %s746 = scalar_select %p743, %s744, %s745
      %p749 = pneg %p743
      %p750 = scmp.eq.s32.totalorder %s73, 1
      %p751 = por %p749, %p750
      %p752 = scmp.ne.s32.totalorder %s744, %s747
      %p753 = scmp.eq.s32.totalorder %s73, 0
      %p754 = por %p752, %p753
      %p755 = scmp.ne.s32.totalorder %s744, %s747
      %p756 = scmp.eq.s32.totalorder %s78, 1
      %p757 = por %p755, %p756
      %p758 = scmp.ne.s32.totalorder %s747, %s748
      %p759 = scmp.eq.s32.totalorder %s78, 0
      %p760 = por %p758, %p759
      %p761 = scmp.ne.s32.totalorder %s747, %s748
      %p762 = scmp.eq.s32.totalorder %s79, 1
      %p763 = por %p761, %p762
      %p765 = scmp.ne.s32.totalorder %s748, %s764
      %p766 = scmp.eq.s32.totalorder %s79, 0
      %p767 = por %p765, %p766
      %p768 = scmp.le.s32.totalorder 1, %s73
      %p769 = scmp.lt.s32.totalorder %s73, 3
      %p770 = pnand %p768, %p769
      %p771 = pneg %p770
      // Predicated region
      $region9: #{branch_transformer_ae_forward.1} parent=5 // pred_check
        _
      $region10: #{branch_transformer_ae_forward.1} parent=5 // pred_check_branch
        %773 = sbr.rel (%p770) target = $region12
      $region11: #{branch_transformer_ae_forward.1} parent=5 // pred_region
        %s774 = ssub.s32 %s73, 1
        // Predicated region
        $region13: #{branch_transformer_ae_forward.1} parent=11 // pred_check
          %p775 = pneg %p120
        $region14: #{branch_transformer_ae_forward.1} parent=11 // pred_check_branch
          %777 = sbr.rel (%p775) target = $region16
        $region15: #{branch_transformer_ae_forward.1} parent=11 // pred_region
          _
        $region16: #{branch_transformer_ae_forward.1} parent=11 // pred_fallthru
          _
        // Predicated region
        $region17: #{branch_transformer_ae_forward.1} parent=11 // pred_check
          %p778 = pneg %p141
        $region18: #{branch_transformer_ae_forward.1} parent=11 // pred_check_branch
          %780 = sbr.rel (%p778) target = $region20
        $region19: #{branch_transformer_ae_forward.1} parent=11 // pred_region
          _
        $region20: #{branch_transformer_ae_forward.1} parent=11 // pred_fallthru
          _
        // Predicated region
        $region21: #{branch_transformer_ae_forward.1} parent=11 // pred_check
          %p781 = pneg %p162
        $region22: #{branch_transformer_ae_forward.1} parent=11 // pred_check_branch
          %783 = sbr.rel (%p781) target = $region24
        $region23: #{branch_transformer_ae_forward.1} parent=11 // pred_region
          _
        $region24: #{branch_transformer_ae_forward.1} parent=11 // pred_fallthru
          _
        // Predicated region
        $region25: #{branch_transformer_ae_forward.1} parent=11 // pred_check
          %p784 = pneg %p183
        $region26: #{branch_transformer_ae_forward.1} parent=11 // pred_check_branch
          %786 = sbr.rel (%p784) target = $region28
        $region27: #{branch_transformer_ae_forward.1} parent=11 // pred_region
          _
        $region28: #{branch_transformer_ae_forward.1} parent=11 // pred_fallthru
          _
        // Predicated region
        $region29: #{branch_transformer_ae_forward.1} parent=11 // pred_check
          %p787 = pneg %p204
        $region30: #{branch_transformer_ae_forward.1} parent=11 // pred_check_branch
          %789 = sbr.rel (%p787) target = $region32
        $region31: #{branch_transformer_ae_forward.1} parent=11 // pred_region
          _
        $region32: #{branch_transformer_ae_forward.1} parent=11 // pred_fallthru
          _
        // Predicated region
        $region33: #{branch_transformer_ae_forward.1} parent=11 // pred_check
          %p790 = pneg %p225
        $region34: #{branch_transformer_ae_forward.1} parent=11 // pred_check_branch
          %792 = sbr.rel (%p790) target = $region36
        $region35: #{branch_transformer_ae_forward.1} parent=11 // pred_region
          _
        $region36: #{branch_transformer_ae_forward.1} parent=11 // pred_fallthru
          _
        // Predicated region
        $region37: #{branch_transformer_ae_forward.1} parent=11 // pred_check
          %p793 = pneg %p246
        $region38: #{branch_transformer_ae_forward.1} parent=11 // pred_check_branch
          %795 = sbr.rel (%p793) target = $region40
        $region39: #{branch_transformer_ae_forward.1} parent=11 // pred_region
          _
        $region40: #{branch_transformer_ae_forward.1} parent=11 // pred_fallthru
          _
        // Predicated region
        $region41: #{branch_transformer_ae_forward.1} parent=11 // pred_check
          %p796 = pneg %p267
        $region42: #{branch_transformer_ae_forward.1} parent=11 // pred_check_branch
          %798 = sbr.rel (%p796) target = $region44
        $region43: #{branch_transformer_ae_forward.1} parent=11 // pred_region
          _
        $region44: #{branch_transformer_ae_forward.1} parent=11 // pred_fallthru
          _
        // Predicated region
        $region45: #{branch_transformer_ae_forward.1} parent=11 // pred_check
          %p799 = pneg %p288
        $region46: #{branch_transformer_ae_forward.1} parent=11 // pred_check_branch
          %801 = sbr.rel (%p799) target = $region48
        $region47: #{branch_transformer_ae_forward.1} parent=11 // pred_region
          _
        $region48: #{branch_transformer_ae_forward.1} parent=11 // pred_fallthru
          _
        // Predicated region
        $region49: #{branch_transformer_ae_forward.1} parent=11 // pred_check
          %p802 = pneg %p309
        $region50: #{branch_transformer_ae_forward.1} parent=11 // pred_check_branch
          %804 = sbr.rel (%p802) target = $region52
        $region51: #{branch_transformer_ae_forward.1} parent=11 // pred_region
          _
        $region52: #{branch_transformer_ae_forward.1} parent=11 // pred_fallthru
          _
        // Predicated region
        $region53: #{branch_transformer_ae_forward.1} parent=11 // pred_check
          %p805 = pneg %p330
        $region54: #{branch_transformer_ae_forward.1} parent=11 // pred_check_branch
          %807 = sbr.rel (%p805) target = $region56
        $region55: #{branch_transformer_ae_forward.1} parent=11 // pred_region
          _
        $region56: #{branch_transformer_ae_forward.1} parent=11 // pred_fallthru
          _
        // Predicated region
        $region57: #{branch_transformer_ae_forward.1} parent=11 // pred_check
          %p808 = pneg %p351
        $region58: #{branch_transformer_ae_forward.1} parent=11 // pred_check_branch
          %810 = sbr.rel (%p808) target = $region60
        $region59: #{branch_transformer_ae_forward.1} parent=11 // pred_region
          _
        $region60: #{branch_transformer_ae_forward.1} parent=11 // pred_fallthru
          _
        // Predicated region
        $region61: #{branch_transformer_ae_forward.1} parent=11 // pred_check
          %p811 = pneg %p372
        $region62: #{branch_transformer_ae_forward.1} parent=11 // pred_check_branch
          %813 = sbr.rel (%p811) target = $region64
        $region63: #{branch_transformer_ae_forward.1} parent=11 // pred_region
          _
        $region64: #{branch_transformer_ae_forward.1} parent=11 // pred_fallthru
          _
        // Predicated region
        $region65: #{branch_transformer_ae_forward.1} parent=11 // pred_check
          %p814 = pneg %p393
        $region66: #{branch_transformer_ae_forward.1} parent=11 // pred_check_branch
          %816 = sbr.rel (%p814) target = $region68
        $region67: #{branch_transformer_ae_forward.1} parent=11 // pred_region
          _
        $region68: #{branch_transformer_ae_forward.1} parent=11 // pred_fallthru
          _
        // Predicated region
        $region69: #{branch_transformer_ae_forward.1} parent=11 // pred_check
          %p817 = pneg %p414
        $region70: #{branch_transformer_ae_forward.1} parent=11 // pred_check_branch
          %819 = sbr.rel (%p817) target = $region72
        $region71: #{branch_transformer_ae_forward.1} parent=11 // pred_region
          _
        $region72: #{branch_transformer_ae_forward.1} parent=11 // pred_fallthru
          _
        // Predicated region
        $region73: #{branch_transformer_ae_forward.1} parent=11 // pred_check
          %p820 = pneg %p435
        $region74: #{branch_transformer_ae_forward.1} parent=11 // pred_check_branch
          %822 = sbr.rel (%p820) target = $region76
        $region75: #{branch_transformer_ae_forward.1} parent=11 // pred_region
          _
        $region76: #{branch_transformer_ae_forward.1} parent=11 // pred_fallthru
          _
        // Predicated region
        $region77: #{branch_transformer_ae_forward.1} parent=11 // pred_check
          %p823 = pneg %p456
        $region78: #{branch_transformer_ae_forward.1} parent=11 // pred_check_branch
          %825 = sbr.rel (%p823) target = $region80
        $region79: #{branch_transformer_ae_forward.1} parent=11 // pred_region
          _
        $region80: #{branch_transformer_ae_forward.1} parent=11 // pred_fallthru
          _
        // Predicated region
        $region81: #{branch_transformer_ae_forward.1} parent=11 // pred_check
          %p826 = pneg %p477
        $region82: #{branch_transformer_ae_forward.1} parent=11 // pred_check_branch
          %828 = sbr.rel (%p826) target = $region84
        $region83: #{branch_transformer_ae_forward.1} parent=11 // pred_region
          _
        $region84: #{branch_transformer_ae_forward.1} parent=11 // pred_fallthru
          _
        // Predicated region
        $region85: #{branch_transformer_ae_forward.1} parent=11 // pred_check
          %p829 = pneg %p498
        $region86: #{branch_transformer_ae_forward.1} parent=11 // pred_check_branch
          %831 = sbr.rel (%p829) target = $region88
        $region87: #{branch_transformer_ae_forward.1} parent=11 // pred_region
          _
        $region88: #{branch_transformer_ae_forward.1} parent=11 // pred_fallthru
          _
        // Predicated region
        $region89: #{branch_transformer_ae_forward.1} parent=11 // pred_check
          %p832 = pneg %p519
        $region90: #{branch_transformer_ae_forward.1} parent=11 // pred_check_branch
          %834 = sbr.rel (%p832) target = $region92
        $region91: #{branch_transformer_ae_forward.1} parent=11 // pred_region
          _
        $region92: #{branch_transformer_ae_forward.1} parent=11 // pred_fallthru
          _
        // Predicated region
        $region93: #{branch_transformer_ae_forward.1} parent=11 // pred_check
          %p835 = pneg %p540
        $region94: #{branch_transformer_ae_forward.1} parent=11 // pred_check_branch
          %837 = sbr.rel (%p835) target = $region96
        $region95: #{branch_transformer_ae_forward.1} parent=11 // pred_region
          _
        $region96: #{branch_transformer_ae_forward.1} parent=11 // pred_fallthru
          _
        // Predicated region
        $region97: #{branch_transformer_ae_forward.1} parent=11 // pred_check
          %p838 = pneg %p561
        $region98: #{branch_transformer_ae_forward.1} parent=11 // pred_check_branch
          %840 = sbr.rel (%p838) target = $region100
        $region99: #{branch_transformer_ae_forward.1} parent=11 // pred_region
          _
        $region100: #{branch_transformer_ae_forward.1} parent=11 // pred_fallthru
          _
        // Predicated region
        $region101: #{branch_transformer_ae_forward.1} parent=11 // pred_check
          %p841 = pneg %p582
        $region102: #{branch_transformer_ae_forward.1} parent=11 // pred_check_branch
          %843 = sbr.rel (%p841) target = $region104
        $region103: #{branch_transformer_ae_forward.1} parent=11 // pred_region
          _
        $region104: #{branch_transformer_ae_forward.1} parent=11 // pred_fallthru
          _
        // Predicated region
        $region105: #{branch_transformer_ae_forward.1} parent=11 // pred_check
          %p844 = pneg %p603
        $region106: #{branch_transformer_ae_forward.1} parent=11 // pred_check_branch
          %846 = sbr.rel (%p844) target = $region108
        $region107: #{branch_transformer_ae_forward.1} parent=11 // pred_region
          _
        $region108: #{branch_transformer_ae_forward.1} parent=11 // pred_fallthru
          _
        // Predicated region
        $region109: #{branch_transformer_ae_forward.1} parent=11 // pred_check
          %p847 = pneg %p624
        $region110: #{branch_transformer_ae_forward.1} parent=11 // pred_check_branch
          %849 = sbr.rel (%p847) target = $region112
        $region111: #{branch_transformer_ae_forward.1} parent=11 // pred_region
          _
        $region112: #{branch_transformer_ae_forward.1} parent=11 // pred_fallthru
          _
        // Predicated region
        $region113: #{branch_transformer_ae_forward.1} parent=11 // pred_check
          %p850 = pneg %p645
        $region114: #{branch_transformer_ae_forward.1} parent=11 // pred_check_branch
          %852 = sbr.rel (%p850) target = $region116
        $region115: #{branch_transformer_ae_forward.1} parent=11 // pred_region
          _
        $region116: #{branch_transformer_ae_forward.1} parent=11 // pred_fallthru
          _
        // Predicated region
        $region117: #{branch_transformer_ae_forward.1} parent=11 // pred_check
          %p853 = pneg %p666
        $region118: #{branch_transformer_ae_forward.1} parent=11 // pred_check_branch
          %855 = sbr.rel (%p853) target = $region120
        $region119: #{branch_transformer_ae_forward.1} parent=11 // pred_region
          _
        $region120: #{branch_transformer_ae_forward.1} parent=11 // pred_fallthru
          _
        // Predicated region
        $region121: #{branch_transformer_ae_forward.1} parent=11 // pred_check
          %p856 = pneg %p687
        $region122: #{branch_transformer_ae_forward.1} parent=11 // pred_check_branch
          %858 = sbr.rel (%p856) target = $region124
        $region123: #{branch_transformer_ae_forward.1} parent=11 // pred_region
          _
        $region124: #{branch_transformer_ae_forward.1} parent=11 // pred_fallthru
          _
        // Predicated region
        $region125: #{branch_transformer_ae_forward.1} parent=11 // pred_check
          %p859 = pneg %p708
        $region126: #{branch_transformer_ae_forward.1} parent=11 // pred_check_branch
          %861 = sbr.rel (%p859) target = $region128
        $region127: #{branch_transformer_ae_forward.1} parent=11 // pred_region
          _
        $region128: #{branch_transformer_ae_forward.1} parent=11 // pred_fallthru
          _
      $region12: #{branch_transformer_ae_forward.1} parent=5 // pred_fallthru
        _
      %p862 = scmp.lt.s32.totalorder %s73, 2
      // Predicated region
      $region129: #{branch_transformer_ae_forward.1} parent=5 // pred_check
        %p863 = pneg %p862
      $region130: #{branch_transformer_ae_forward.1} parent=5 // pred_check_branch
        %865 = sbr.rel (%p863) target = $region132
      $region131: #{branch_transformer_ae_forward.1} parent=5 // pred_region
        // Predicated region
        $region133: #{branch_transformer_ae_forward.1} parent=131 // pred_check
          %p866 = pneg %p93
        $region134: #{branch_transformer_ae_forward.1} parent=131 // pred_check_branch
          %868 = sbr.rel (%p866) target = $region136
        $region135: #{branch_transformer_ae_forward.1} parent=131 // pred_region
          %p869 = scmp.lt.s32.totalorder %s73, 1
          %s870 = scalar_select %p869, %s73, 1
          %s871 = smul.addr %s870, 4
          %s872 = smul.addr %s871, 8
          %s873 = scalar_lea.vmem %s1, %s872
        $region136: #{branch_transformer_ae_forward.1} parent=131 // pred_fallthru
          _
      $region132: #{branch_transformer_ae_forward.1} parent=5 // pred_fallthru
        _
      %p874 = scmp.le.s32.totalorder 1, %s73
      %p875 = scmp.lt.s32.totalorder %s73, 3
      %p876 = pnand %p874, %p875
      %p877 = pneg %p876
      // Predicated region
      $region137: #{branch_transformer_ae_forward.1} parent=5 // pred_check
        _
      $region138: #{branch_transformer_ae_forward.1} parent=5 // pred_check_branch
        %879 = sbr.rel (%p876) target = $region140
      $region139: #{branch_transformer_ae_forward.1} parent=5 // pred_region
        %s880 = ssub.s32 %s73, 1
        %p881 = scmp.lt.s32.totalorder %s78, 1
        %s882 = scalar_select %p881, %s78, 1
        %s883 = smul.addr %s882, 4
        %s884 = smul.addr %s883, 8
        %s885 = scalar_lea.vmem %s1, %s884
        %p886 = pneg %p99
        %p887 = pneg %p96
        %p888 = pneg %p120
        %p889 = pneg %p117
        %p890 = pneg %p141
        %p891 = pneg %p138
        %p892 = pneg %p162
        %p893 = pneg %p159
        %p894 = pneg %p183
        %p895 = pneg %p180
        %p896 = pneg %p204
        %p897 = pneg %p201
        %p898 = pneg %p225
        %p899 = pneg %p222
        %p900 = pneg %p246
        %p901 = pneg %p243
        %p902 = pneg %p267
        %p903 = pneg %p264
        %p904 = pneg %p288
        %p905 = pneg %p285
        %p906 = pneg %p309
        %p907 = pneg %p306
        %p908 = pneg %p330
        %p909 = pneg %p327
        %p910 = pneg %p351
        %p911 = pneg %p348
        %p912 = pneg %p372
        %p913 = pneg %p369
        %p914 = pneg %p393
        %p915 = pneg %p390
        %p916 = pneg %p414
        %p917 = pneg %p411
        %p918 = pneg %p435
        %p919 = pneg %p432
        %p920 = pneg %p456
        %p921 = pneg %p453
        %p922 = pneg %p477
        %p923 = pneg %p474
        %p924 = pneg %p498
        %p925 = pneg %p495
        %p926 = pneg %p519
        %p927 = pneg %p516
        %p928 = pneg %p540
        %p929 = pneg %p537
        %p930 = pneg %p561
        %p931 = pneg %p558
        %p932 = pneg %p582
        %p933 = pneg %p579
        %p934 = pneg %p603
        %p935 = pneg %p600
        %p936 = pneg %p624
        %p937 = pneg %p621
        %p938 = pneg %p645
        %p939 = pneg %p642
        %p940 = pneg %p666
        %p941 = pneg %p663
        %p942 = pneg %p687
        %p943 = pneg %p684
        %p944 = pneg %p708
        %p945 = pneg %p705
        %p946 = pneg %p734
        %p947 = pneg %p731
        %p948 = scmp.lt.s32.totalorder %s78, 1
        %s949 = scalar_select %p948, %s78, 1
        %s950 = smul.addr %s949, 2
        %s951 = smul.addr %s950, 8
        %s952 = scalar_lea.vmem %s61, %s951
        %p953 = pneg %p760
        %p954 = pneg %p757
        %s955 = sand.u32 %s747, 1
        %s956 = scalar_lea.sflag [#allocation3], %s955
        %s957 = sand.u32 %s747, 1
        %s958 = scalar_lea.vmem [#allocation2], %s957
        %p959 = scmp.lt.s32.totalorder %s78, 1
        %s960 = scalar_select %p959, %s78, 1
        %s961 = smul.addr %s960, 4
        %s962 = smul.addr %s961, 8
        %s963 = scalar_lea.vmem %s1, %s962
        %p964 = scmp.lt.s32.totalorder %s78, 1
        %s965 = scalar_select %p964, %s78, 1
        %s966 = smul.addr %s965, 2
        %s967 = smul.addr %s966, 8
        %s968 = scalar_lea.vmem %s61, %s967
        %v969 = vld [vmem:[%s49] sm:$0xff]
        %v970 = vld [vmem:[%s49 + $0x8] sm:$0xff]
        %v971 = vld [vmem:[%s49 + $0x10] sm:$0xff]
        %v972 = vld [vmem:[%s49 + $0x18] sm:$0x3]
        %v973 = vld [vmem:[%s51] sm:$0x7]
        %v974 = vld [vmem:[%s53] sm:$0x1]
        %v975 = vld [vmem:[%s53 + $0x1] sm:$0x1]
        %v976 = vld [vmem:[%s53 + $0x2] sm:$0x1]
        %v977 = vld [vmem:[%s53 + $0x3] sm:$0x1]
        %v978 = vld [vmem:[%s53 + $0x4] sm:$0x1]
        %v979 = vld [vmem:[%s53 + $0x5] sm:$0x1]
        %v980 = vld [vmem:[%s53 + $0x6] sm:$0x1]
        %v981 = vld [vmem:[%s53 + $0x7] sm:$0x1]
        %v982 = vld [vmem:[%s53 + $0x8] sm:$0x1]
        %v983 = vld [vmem:[%s53 + $0x9] sm:$0x1]
        %v984 = vld [vmem:[%s53 + $0xa] sm:$0x1]
        %v985 = vld [vmem:[%s53 + $0xb] sm:$0x1]
        %v986 = vld [vmem:[%s55] sm:$0xff]
        %v987 = vld [vmem:[%s55 + $0x8] sm:$0xff]
        %v988 = vld [vmem:[%s55 + $0x10] sm:$0xff]
        %v989 = vld [vmem:[%s55 + $0x18] sm:$0xff]
        %v990 = vld [vmem:[%s55 + $0x20] sm:$0xff]
        %v991 = vld [vmem:[%s55 + $0x28] sm:$0xff]
        %v992 = vld [vmem:[%s55 + $0x30] sm:$0xff]
        %v993 = vld [vmem:[%s55 + $0x38] sm:$0xff]
        %v994 = vld [vmem:[%s55 + $0x40] sm:$0xff]
        %v995 = vld [vmem:[%s55 + $0x48] sm:$0xff]
        %v996 = vld [vmem:[%s55 + $0x50] sm:$0xff]
        %v997 = vld [vmem:[%s55 + $0x58] sm:$0xff]
        %v998 = vld [vmem:[%s55 + $0x60] sm:$0xff]
        %v999 = vld [vmem:[%s55 + $0x68] sm:$0xff]
        %v1000 = vld [vmem:[%s55 + $0x70] sm:$0xff]
        %v1001 = vld [vmem:[%s55 + $0x78] sm:$0xff]
        %v1002 = vld [vmem:[%s55 + $0x80] sm:$0xff]
        %v1003 = vld [vmem:[%s55 + $0x88] sm:$0xff]
        %v1004 = vld [vmem:[%s55 + $0x90] sm:$0xff]
        %v1005 = vld [vmem:[%s55 + $0x98] sm:$0xff]
        %v1006 = vld [vmem:[%s55 + $0xa0] sm:$0xff]
        %v1007 = vld [vmem:[%s55 + $0xa8] sm:$0xff]
        %v1008 = vld [vmem:[%s55 + $0xb0] sm:$0xff]
        %v1009 = vld [vmem:[%s55 + $0xb8] sm:$0xff]
        %v1010 = vld [vmem:[%s963] sm:$0xff]
        %v1011 = vld [vmem:[%s963 + $0x8] sm:$0xff]
        %v1012 = vld [vmem:[%s963 + $0x10] sm:$0x1]
        %v1013 = vld [vmem:[%s963 + $0x18] sm:$0x1]
        %v1014 = vld [vmem:[%s5] sm:$0xff]
        %v1015 = vld [vmem:[%s5 + $0x8] sm:$0xff]
        %v1016 = vld [vmem:[%s5 + $0x10] sm:$0xff]
        %v1017 = vld [vmem:[%s5 + $0x18] sm:$0xff]
        %v1018 = vld [vmem:[%s5 + $0x20] sm:$0xff]
        %v1019 = vld [vmem:[%s5 + $0x28] sm:$0xff]
        %v1020 = vld [vmem:[%s5 + $0x30] sm:$0xff]
        %v1021 = vld [vmem:[%s5 + $0x38] sm:$0xff]
        %v1022 = vld [vmem:[%s5 + $0x40] sm:$0xff]
        %v1023 = vld [vmem:[%s5 + $0x48] sm:$0xff]
        %v1024 = vld [vmem:[%s5 + $0x50] sm:$0xff]
        %v1025 = vld [vmem:[%s5 + $0x58] sm:$0xff]
        %v1026 = vld [vmem:[%s5 + $0x60] sm:$0xff]
        %v1027 = vld [vmem:[%s5 + $0x68] sm:$0xff]
        %v1028 = vld [vmem:[%s5 + $0x70] sm:$0xff]
        %v1029 = vld [vmem:[%s5 + $0x78] sm:$0xff]
        %v1030 = vld [vmem:[%s5 + $0x80] sm:$0xff]
        %v1031 = vld [vmem:[%s5 + $0x88] sm:$0xff]
        %v1032 = vld [vmem:[%s5 + $0x90] sm:$0xff]
        %v1033 = vld [vmem:[%s5 + $0x98] sm:$0xff]
        %v1034 = vld [vmem:[%s5 + $0xa0] sm:$0xff]
        %v1035 = vld [vmem:[%s5 + $0xa8] sm:$0xff]
        %v1036 = vld [vmem:[%s5 + $0xb0] sm:$0xff]
        %v1037 = vld [vmem:[%s5 + $0xb8] sm:$0xff]
        %v1038 = vld [vmem:[%s5 + $0xc0] sm:$0xff]
        %v1039 = vld [vmem:[%s5 + $0xc8] sm:$0xff]
        %v1040 = vld [vmem:[%s5 + $0xd0] sm:$0xff]
        %v1041 = vld [vmem:[%s5 + $0xd8] sm:$0xff]
        %v1042 = vld [vmem:[%s5 + $0xe0] sm:$0xff]
        %v1043 = vld [vmem:[%s5 + $0xe8] sm:$0xff]
        %v1044 = vld [vmem:[%s5 + $0xf0] sm:$0xff]
        %v1045 = vld [vmem:[%s5 + $0xf8] sm:$0xff]
        %1046 = vmatpush.msra.mxu0 %v1029
        %1047 = vmatpush.msra.mxu0 %v1028
        %1048 = vmatpush.msra.mxu0 %v1027
        %1049 = vmatpush.msra.mxu0 %v1026
        %1050 = vmatpush.msra.mxu0 %v1025
        %1051 = vmatpush.msra.mxu0 %v1024
        %1052 = vmatpush.msra.mxu0 %v1023
        %1053 = vmatpush.msra.mxu0 %v1022
        %1054 = vmatpush.msra.mxu0 %v1021
        %1055 = vmatpush.msra.mxu0 %v1020
        %1056 = vmatpush.msra.mxu0 %v1019
        %1057 = vmatpush.msra.mxu0 %v1018
        %1058 = vmatpush.msra.mxu0 %v1017
        %1059 = vmatpush.msra.mxu0 %v1016
        %1060 = vmatpush.msra.mxu0 %v1015
        %1061 = vmatpush.msra.mxu0 %v1014
        %1062 = vmatmul.f32.gmra.mxu0 %v1010
        %v1063 = vpop.f32.mrf.mxu0
        %v1064 = vadd.f32 0.0, %v1063
        %1065 = vmatmul.f32.gmra.mxu0 %v1012
        %v1066 = vpop.f32.mrf.mxu0
        %v1067 = vadd.f32 0.0, %v1066
        %1068 = vdwg.mxu0
        %1069 = vmatpush.msra.mxu0 %v1045
        %1070 = vmatpush.msra.mxu0 %v1044
        %1071 = vmatpush.msra.mxu0 %v1043
        %1072 = vmatpush.msra.mxu0 %v1042
        %1073 = vmatpush.msra.mxu0 %v1041
        %1074 = vmatpush.msra.mxu0 %v1040
        %1075 = vmatpush.msra.mxu0 %v1039
        %1076 = vmatpush.msra.mxu0 %v1038
        %1077 = vmatpush.msra.mxu0 %v1037
        %1078 = vmatpush.msra.mxu0 %v1036
        %1079 = vmatpush.msra.mxu0 %v1035
        %1080 = vmatpush.msra.mxu0 %v1034
        %1081 = vmatpush.msra.mxu0 %v1033
        %1082 = vmatpush.msra.mxu0 %v1032
        %1083 = vmatpush.msra.mxu0 %v1031
        %1084 = vmatpush.msra.mxu0 %v1030
        %1085 = vmatmul.f32.gmra.mxu0 %v1011
        %v1086 = vpop.f32.mrf.mxu0
        %v1087 = vadd.f32 %v1064, %v1086
        %1088 = vmatmul.f32.gmra.mxu0 %v1013
        %v1089 = vpop.f32.mrf.mxu0
        %v1090 = vadd.f32 %v1067, %v1089
        %1091 = vdwg.mxu0
        %v1092 = vld [vmem:[%s3] sm:$0xff]
        %v1093 = vld [vmem:[%s3 + $0x8] sm:$0x7]
        %vm1096 = vcmask 1041408
        %v1097 = vrot.slane %v1087, 6
        %v1098 = vrot.slane %v1090, 6
        %v1099 = vsel %vm1096, %v1097, %v1098
        %v1102 = vadd.f32 %v1092, %v1097
        %v1103 = vadd.f32 %v1093, %v1099
        %v1104 = vsel %vm1096, %v1092, %v1102
        %v1105 = vld [vmem:[%s7] sm:$0xff]
        %v1106 = vld [vmem:[%s7 + $0x8] sm:$0xff]
        %v1107 = vld [vmem:[%s7 + $0x10] sm:$0xff]
        %v1108 = vld [vmem:[%s7 + $0x18] sm:$0xff]
        %v1109 = vld [vmem:[%s7 + $0x20] sm:$0xff]
        %v1110 = vld [vmem:[%s7 + $0x28] sm:$0xff]
        %v1111 = vld [vmem:[%s7 + $0x30] sm:$0xff]
        %v1112 = vld [vmem:[%s7 + $0x38] sm:$0xff]
        %v1113 = vld [vmem:[%s7 + $0x40] sm:$0xff]
        %v1114 = vld [vmem:[%s7 + $0x48] sm:$0xff]
        %v1115 = vld [vmem:[%s7 + $0x50] sm:$0xff]
        %v1116 = vld [vmem:[%s7 + $0x58] sm:$0xff]
        %v1117 = vld [vmem:[%s7 + $0x60] sm:$0xff]
        %v1118 = vld [vmem:[%s7 + $0x68] sm:$0xff]
        %v1119 = vld [vmem:[%s7 + $0x70] sm:$0xff]
        %v1120 = vld [vmem:[%s7 + $0x78] sm:$0xff]
        %v1121 = vld [vmem:[%s9] sm:$0xff]
        %v1122 = vld [vmem:[%s9 + $0x8] sm:$0xff]
        %v1123 = vld [vmem:[%s9 + $0x10] sm:$0xff]
        %v1124 = vld [vmem:[%s9 + $0x18] sm:$0xff]
        %v1125 = vld [vmem:[%s9 + $0x20] sm:$0xff]
        %v1126 = vld [vmem:[%s9 + $0x28] sm:$0xff]
        %v1127 = vld [vmem:[%s9 + $0x30] sm:$0xff]
        %v1128 = vld [vmem:[%s9 + $0x38] sm:$0xff]
        %v1129 = vld [vmem:[%s11] sm:$0xff]
        %v1130 = vld [vmem:[%s11 + $0x8] sm:$0xff]
        %v1131 = vld [vmem:[%s11 + $0x10] sm:$0xff]
        %v1132 = vld [vmem:[%s11 + $0x18] sm:$0xff]
        %v1133 = vld [vmem:[%s13] sm:$0xff]
        %v1134 = vld [vmem:[%s13 + $0x8] sm:$0xff]
        %v1135 = vld [vmem:[%s13 + $0x10] sm:$0xff]
        %v1136 = vld [vmem:[%s13 + $0x18] sm:$0xff]
        %v1137 = vld [vmem:[%s15] sm:$0xff]
        %v1138 = vld [vmem:[%s15 + $0x8] sm:$0xff]
        %v1139 = vld [vmem:[%s15 + $0x10] sm:$0xff]
        %v1140 = vld [vmem:[%s15 + $0x18] sm:$0xff]
        %v1141 = vld [vmem:[%s15 + $0x20] sm:$0xff]
        %v1142 = vld [vmem:[%s15 + $0x28] sm:$0xff]
        %v1143 = vld [vmem:[%s15 + $0x30] sm:$0xff]
        %v1144 = vld [vmem:[%s15 + $0x38] sm:$0xff]
        %vm1145 = vcmask 261120
        %v1146 = vsel %vm1145, %v1104, 0.0
        %1147 = vadd.xlane.f32.xlu0 %v1146
        %v1148 = vpop.xlane.xlu0 %1147
        %vm1149 = vcmask 256000
        %v1150 = vsel %vm1149, %v1103, 0.0
        %1151 = vadd.xlane.f32.xlu0 %v1150
        %v1152 = vpop.xlane.xlu0 %1151
        %v1153 = vrcp.pop 32.0
        %v1154 = vmul.f32 32.0, %v1153
        %v1155 = vsub.f32 1.0, %v1154
        %v1156 = vmul.f32 %v1153, %v1155
        %v1157 = vadd.f32 %v1153, %v1156
        %vm1158 = vweird.f32 %v1153
        %v1159 = vsel %vm1158, %v1153, %v1157
        %v1160 = vmul.f32 %v1148, %v1159
        %v1161 = vmul.f32 %v1152, %v1159
        %v1162 = vsub.f32 %v1104, %v1160
        %v1163 = vsub.f32 %v1103, %v1161
        %v1164 = vmul.f32 %v1162, %v1162
        %v1165 = vmul.f32 %v1163, %v1163
        %v1166 = vsel %vm1145, %v1164, 0.0
        %1167 = vadd.xlane.f32.xlu0 %v1166
        %v1168 = vpop.xlane.xlu0 %1167
        %v1169 = vsel %vm1149, %v1165, 0.0
        %1170 = vadd.xlane.f32.xlu0 %v1169
        %v1171 = vpop.xlane.xlu0 %1170
        %v1172 = vmul.f32 %v1168, %v1159
        %v1173 = vmul.f32 %v1171, %v1159
        %v1174 = vadd.f32 %v1172, 1e-12
        %v1175 = vadd.f32 %v1173, 1e-12
        %v1176 = vrsqrt.pop %v1174
        %v1177 = vmul.f32 %v1176, %v1174
        %v1178 = vmul.f32 %v1177, %v1176
        %v1179 = vmul.f32 0.5, %v1178
        %v1180 = vsub.f32 1.5, %v1179
        %v1181 = vmul.f32 %v1176, %v1180
        %vm1182 = vweird.f32 %v1174
        %vm1183 = vweird.f32 %v1176
        %vm1184 = vmor %vm1182, %vm1183
        %v1185 = vsel %vm1184, %v1176, %v1181
        %v1186 = vrsqrt.pop %v1175
        %v1187 = vmul.f32 %v1186, %v1175
        %v1188 = vmul.f32 %v1187, %v1186
        %v1189 = vmul.f32 0.5, %v1188
        %v1190 = vsub.f32 1.5, %v1189
        %v1191 = vmul.f32 %v1186, %v1190
        %vm1192 = vweird.f32 %v1175
        %vm1193 = vweird.f32 %v1186
        %vm1194 = vmor %vm1192, %vm1193
        %v1195 = vsel %vm1194, %v1186, %v1191
        %v1196 = vmul.f32 %v1162, %v1185
        %v1197 = vmul.f32 %v1163, %v1195
        %v1198 = vperm.slane %v969, 0
        %v1199 = vmul.f32 %v1196, %v1198
        %v1200 = vmul.f32 %v1197, %v1198
        %v1201 = vperm.slane %v969, 1
        %v1202 = vadd.f32 %v1199, %v1201
        %v1203 = vadd.f32 %v1200, %v1201
        %1205 = vset.pattern.permute.xlu0 0
        %1206 = vperm.xlu0 %1205, %v986
        %v1207 = vpop.permute.xlu0 %1206
        %1210 = vset.pattern.permute.xlu0 0
        %1211 = vperm.xlu0 %1210, %v987
        %v1212 = vpop.permute.xlu0 %1211
        %1215 = vset.pattern.permute.xlu0 0
        %1216 = vperm.xlu0 %1215, %v988
        %v1217 = vpop.permute.xlu0 %1216
        %1220 = vset.pattern.permute.xlu0 0
        %1221 = vperm.xlu0 %1220, %v989
        %v1222 = vpop.permute.xlu0 %1221
        %1225 = vset.pattern.permute.xlu0 0
        %1226 = vperm.xlu0 %1225, %v990
        %v1227 = vpop.permute.xlu0 %1226
        %1230 = vset.pattern.permute.xlu0 0
        %1231 = vperm.xlu0 %1230, %v991
        %v1232 = vpop.permute.xlu0 %1231
        %1235 = vset.pattern.permute.xlu0 0
        %1236 = vperm.xlu0 %1235, %v992
        %v1237 = vpop.permute.xlu0 %1236
        %1240 = vset.pattern.permute.xlu0 0
        %1241 = vperm.xlu0 %1240, %v993
        %v1242 = vpop.permute.xlu0 %1241
        %v1245 = vsel %vm1145, %v1121, 0
        %v1248 = vsel %vm1145, %v1122, 0
        %v1251 = vsel %vm1145, %v1123, 0
        %v1254 = vsel %vm1145, %v1124, 0
        %v1257 = vsel %vm1145, %v1125, 0
        %v1260 = vsel %vm1145, %v1126, 0
        %v1263 = vsel %vm1145, %v1127, 0
        %v1266 = vsel %vm1145, %v1128, 0
        %v1269 = vsel %vm1145, %v1202, 0
        %v1272 = vsel %vm1145, %v1203, 0
        %1274 = vmatpush.xpose.msra.mxu0 0.0
        %1275 = vmatpush.xpose.msra.mxu0 0.0
        %1276 = vmatpush.xpose.msra.mxu0 0.0
        %1277 = vmatpush.xpose.msra.mxu0 0.0
        %1278 = vmatpush.xpose.msra.mxu0 0.0
        %1279 = vmatpush.xpose.msra.mxu0 0.0
        %1280 = vmatpush.xpose.msra.mxu0 0.0
        %1281 = vmatpush.xpose.msra.mxu0 0.0
        %1282 = vmatpush.xpose.msra.mxu0 0.0
        %1283 = vmatpush.xpose.msra.mxu0 0.0
        %1284 = vmatpush.xpose.msra.mxu0 0.0
        %1285 = vmatpush.xpose.msra.mxu0 0.0
        %1286 = vmatpush.xpose.msra.mxu0 0.0
        %1287 = vmatpush.xpose.msra.mxu0 0.0
        %1288 = vmatpush.xpose.msra.mxu0 %v1272
        %1289 = vmatpush.xpose.msra.mxu0 %v1269
        %1290 = vmatmul.f32.gmra.mxu0 %v1245
        %v1291 = vpop.f32.mrf.mxu0
        %v1292 = vadd.f32 %v1207, %v1291
        %1293 = vmatmul.f32.gmra.mxu0 %v1248
        %v1294 = vpop.f32.mrf.mxu0
        %v1295 = vadd.f32 %v1212, %v1294
        %1296 = vmatmul.f32.gmra.mxu0 %v1251
        %v1297 = vpop.f32.mrf.mxu0
        %v1298 = vadd.f32 %v1217, %v1297
        %1299 = vmatmul.f32.gmra.mxu0 %v1254
        %v1300 = vpop.f32.mrf.mxu0
        %v1301 = vadd.f32 %v1222, %v1300
        %1302 = vmatmul.f32.gmra.mxu0 %v1257
        %v1303 = vpop.f32.mrf.mxu0
        %v1304 = vadd.f32 %v1227, %v1303
        %1305 = vmatmul.f32.gmra.mxu0 %v1260
        %v1306 = vpop.f32.mrf.mxu0
        %v1307 = vadd.f32 %v1232, %v1306
        %1308 = vmatmul.f32.gmra.mxu0 %v1263
        %v1309 = vpop.f32.mrf.mxu0
        %v1310 = vadd.f32 %v1237, %v1309
        %1311 = vmatmul.f32.gmra.mxu0 %v1266
        %v1312 = vpop.f32.mrf.mxu0
        %v1313 = vadd.f32 %v1242, %v1312
        %1314 = vdwg.mxu0
        %v1316 = vperm.slane %v974, 0
        %1318 = vmatpush.msra.mxu0 0.0
        %1319 = vmatpush.msra.mxu0 0.0
        %1320 = vmatpush.msra.mxu0 0.0
        %1321 = vmatpush.msra.mxu0 0.0
        %1322 = vmatpush.msra.mxu0 0.0
        %1323 = vmatpush.msra.mxu0 0.0
        %1324 = vmatpush.msra.mxu0 0.0
        %1325 = vmatpush.msra.mxu0 0.0
        %1326 = vmatpush.msra.mxu0 0.0
        %1327 = vmatpush.msra.mxu0 0.0
        %1328 = vmatpush.msra.mxu0 0.0
        %1329 = vmatpush.msra.mxu0 0.0
        %1330 = vmatpush.msra.mxu0 %v1108
        %1331 = vmatpush.msra.mxu0 %v1107
        %1332 = vmatpush.msra.mxu0 %v1106
        %1333 = vmatpush.msra.mxu0 %v1105
        %1334 = vmatmul.f32.gmra.mxu0 %v1269
        %v1335 = vpop.f32.mrf.mxu0
        %v1336 = vadd.f32 %v1316, %v1335
        %1337 = vmatmul.f32.gmra.mxu0 %v1272
        %v1338 = vpop.f32.mrf.mxu0
        %v1339 = vadd.f32 %v1316, %v1338
        %1340 = vdwg.mxu0
        %vm1341 = vcmask 64512
        %v1343 = vsel %vm1341, %v1336, 0
        %v1346 = vsel %vm1341, %v1339, 0
        %1348 = vmatpush.msra.mxu0 0.0
        %1349 = vmatpush.msra.mxu0 0.0
        %1350 = vmatpush.msra.mxu0 0.0
        %1351 = vmatpush.msra.mxu0 0.0
        %1352 = vmatpush.msra.mxu0 0.0
        %1353 = vmatpush.msra.mxu0 0.0
        %1354 = vmatpush.msra.mxu0 0.0
        %1355 = vmatpush.msra.mxu0 0.0
        %1356 = vmatpush.msra.mxu0 0.0
        %1357 = vmatpush.msra.mxu0 0.0
        %1358 = vmatpush.msra.mxu0 0.0
        %1359 = vmatpush.msra.mxu0 0.0
        %1360 = vmatpush.msra.mxu0 0.0
        %1361 = vmatpush.msra.mxu0 0.0
        %1362 = vmatpush.msra.mxu0 0.0
        %1363 = vmatpush.msra.mxu0 %v1292
        %1364 = vmatmul.f32.gmra.mxu0 %v1343
        %v1365 = vpop.f32.mrf.mxu0
        %v1366 = vadd.f32 0.0, %v1365
        %1367 = vmatmul.f32.gmra.mxu0 %v1346
        %v1368 = vpop.f32.mrf.mxu0
        %v1369 = vadd.f32 0.0, %v1368
        %1370 = vdwg.mxu0
        %v1371 = vmul.f32 %v1366, 0.35355338
        %v1372 = vmul.f32 %v1369, 0.35355338
        %vm1373 = vcmask 89088
        %v1374 = vsel %vm1373, %v1371, -inf
        %1375 = vmax.xlane.f32.xlu0 %v1374
        %v1376 = vpop.xlane.xlu0 %1375
        %vm1377 = vcmask 83968
        %v1378 = vsel %vm1377, %v1372, -inf
        %1379 = vmax.xlane.f32.xlu0 %v1378
        %v1380 = vpop.xlane.xlu0 %1379
        %v1381 = vsub.f32 %v1371, %v1376
        %v1382 = vsub.f32 %v1372, %v1380
        %v1383 = vmul.f32 %v1381, 1.442695
        %v1384 = vpow.pop %v1383
        %v1385 = vmul.f32 %v1382, 1.442695
        %v1386 = vpow.pop %v1385
        %v1387 = vsel %vm1373, %v1384, 0.0
        %1388 = vadd.xlane.f32.xlu0 %v1387
        %v1389 = vpop.xlane.xlu0 %1388
        %v1390 = vsel %vm1377, %v1386, 0.0
        %1391 = vadd.xlane.f32.xlu0 %v1390
        %v1392 = vpop.xlane.xlu0 %1391
        %v1393 = vrcp.pop %v1389
        %v1394 = vmul.f32 %v1389, %v1393
        %v1395 = vsub.f32 1.0, %v1394
        %v1396 = vmul.f32 %v1393, %v1395
        %v1397 = vadd.f32 %v1393, %v1396
        %vm1398 = vweird.f32 %v1389
        %vm1399 = vweird.f32 %v1393
        %vm1400 = vmor %vm1398, %vm1399
        %v1401 = vsel %vm1400, %v1393, %v1397
        %v1402 = vand.u32 2147483647, %v1389
        %vm1403 = vcmp.eq.f32.partialorder %v1402, 8.507059e+37
        %v1404 = vand.u32 %v1389, 2147483648
        %v1405 = vor.u32 1.1754944e-38, %v1404
        %v1406 = vsel %vm1403, %v1405, %v1401
        %v1407 = vmul.f32 %v1384, %v1406
        %v1408 = vrcp.pop %v1392
        %v1409 = vmul.f32 %v1392, %v1408
        %v1410 = vsub.f32 1.0, %v1409
        %v1411 = vmul.f32 %v1408, %v1410
        %v1412 = vadd.f32 %v1408, %v1411
        %vm1413 = vweird.f32 %v1392
        %vm1414 = vweird.f32 %v1408
        %vm1415 = vmor %vm1413, %vm1414
        %v1416 = vsel %vm1415, %v1408, %v1412
        %v1417 = vand.u32 2147483647, %v1392
        %vm1418 = vcmp.eq.f32.partialorder %v1417, 8.507059e+37
        %v1419 = vand.u32 %v1392, 2147483648
        %v1420 = vor.u32 1.1754944e-38, %v1419
        %v1421 = vsel %vm1418, %v1420, %v1416
        %v1422 = vmul.f32 %v1386, %v1421
        %v1424 = vsel %vm1373, %v1407, 0
        %v1427 = vsel %vm1373, %v1422, 0
        %v1430 = vsel %vm1373, %v1304, 0
        %1432 = vmatpush.xpose.msra.mxu0 0.0
        %1433 = vmatpush.xpose.msra.mxu0 0.0
        %1434 = vmatpush.xpose.msra.mxu0 0.0
        %1435 = vmatpush.xpose.msra.mxu0 0.0
        %1436 = vmatpush.xpose.msra.mxu0 0.0
        %1437 = vmatpush.xpose.msra.mxu0 0.0
        %1438 = vmatpush.xpose.msra.mxu0 0.0
        %1439 = vmatpush.xpose.msra.mxu0 0.0
        %1440 = vmatpush.xpose.msra.mxu0 0.0
        %1441 = vmatpush.xpose.msra.mxu0 0.0
        %1442 = vmatpush.xpose.msra.mxu0 0.0
        %1443 = vmatpush.xpose.msra.mxu0 0.0
        %1444 = vmatpush.xpose.msra.mxu0 0.0
        %1445 = vmatpush.xpose.msra.mxu0 0.0
        %1446 = vmatpush.xpose.msra.mxu0 0.0
        %1447 = vmatpush.xpose.msra.mxu0 %v1430
        %1448 = vmatmul.f32.gmra.mxu0 %v1424
        %v1449 = vpop.f32.mrf.mxu0
        %v1450 = vadd.f32 0.0, %v1449
        %1451 = vmatmul.f32.gmra.mxu0 %v1427
        %v1452 = vpop.f32.mrf.mxu0
        %v1453 = vadd.f32 0.0, %v1452
        %1454 = vdwg.mxu0
        %v1456 = vsel %vm1341, %v1450, 0
        %v1459 = vsel %vm1341, %v1453, 0
        %1461 = vmatpush.msra.mxu0 0.0
        %1462 = vmatpush.msra.mxu0 0.0
        %1463 = vmatpush.msra.mxu0 0.0
        %1464 = vmatpush.msra.mxu0 0.0
        %1465 = vmatpush.msra.mxu0 0.0
        %1466 = vmatpush.msra.mxu0 0.0
        %1467 = vmatpush.msra.mxu0 0.0
        %1468 = vmatpush.msra.mxu0 0.0
        %1469 = vmatpush.msra.mxu0 0.0
        %1470 = vmatpush.msra.mxu0 0.0
        %1471 = vmatpush.msra.mxu0 0.0
        %1472 = vmatpush.msra.mxu0 0.0
        %1473 = vmatpush.msra.mxu0 0.0
        %1474 = vmatpush.msra.mxu0 0.0
        %1475 = vmatpush.msra.mxu0 0.0
        %1476 = vmatpush.msra.mxu0 %v1129
        %1477 = vmatmul.f32.gmra.mxu0 %v1456
        %v1478 = vpop.f32.mrf.mxu0
        %v1479 = vadd.f32 0.0, %v1478
        %1480 = vmatmul.f32.gmra.mxu0 %v1459
        %v1481 = vpop.f32.mrf.mxu0
        %v1482 = vadd.f32 0.0, %v1481
        %1483 = vdwg.mxu0
        %v1484 = vperm.slane %v969, 2
        %v1485 = vadd.f32 %v1484, %v1479
        %v1486 = vadd.f32 %v1484, %v1482
        %v1488 = vperm.slane %v975, 0
        %1490 = vmatpush.msra.mxu0 0.0
        %1491 = vmatpush.msra.mxu0 0.0
        %1492 = vmatpush.msra.mxu0 0.0
        %1493 = vmatpush.msra.mxu0 0.0
        %1494 = vmatpush.msra.mxu0 0.0
        %1495 = vmatpush.msra.mxu0 0.0
        %1496 = vmatpush.msra.mxu0 0.0
        %1497 = vmatpush.msra.mxu0 0.0
        %1498 = vmatpush.msra.mxu0 0.0
        %1499 = vmatpush.msra.mxu0 0.0
        %1500 = vmatpush.msra.mxu0 0.0
        %1501 = vmatpush.msra.mxu0 0.0
        %1502 = vmatpush.msra.mxu0 %v1112
        %1503 = vmatpush.msra.mxu0 %v1111
        %1504 = vmatpush.msra.mxu0 %v1110
        %1505 = vmatpush.msra.mxu0 %v1109
        %1506 = vmatmul.f32.gmra.mxu0 %v1269
        %v1507 = vpop.f32.mrf.mxu0
        %v1508 = vadd.f32 %v1488, %v1507
        %1509 = vmatmul.f32.gmra.mxu0 %v1272
        %v1510 = vpop.f32.mrf.mxu0
        %v1511 = vadd.f32 %v1488, %v1510
        %1512 = vdwg.mxu0
        %v1514 = vsel %vm1341, %v1508, 0
        %v1517 = vsel %vm1341, %v1511, 0
        %1519 = vmatpush.msra.mxu0 0.0
        %1520 = vmatpush.msra.mxu0 0.0
        %1521 = vmatpush.msra.mxu0 0.0
        %1522 = vmatpush.msra.mxu0 0.0
        %1523 = vmatpush.msra.mxu0 0.0
        %1524 = vmatpush.msra.mxu0 0.0
        %1525 = vmatpush.msra.mxu0 0.0
        %1526 = vmatpush.msra.mxu0 0.0
        %1527 = vmatpush.msra.mxu0 0.0
        %1528 = vmatpush.msra.mxu0 0.0
        %1529 = vmatpush.msra.mxu0 0.0
        %1530 = vmatpush.msra.mxu0 0.0
        %1531 = vmatpush.msra.mxu0 0.0
        %1532 = vmatpush.msra.mxu0 0.0
        %1533 = vmatpush.msra.mxu0 0.0
        %1534 = vmatpush.msra.mxu0 %v1295
        %1535 = vmatmul.f32.gmra.mxu0 %v1514
        %v1536 = vpop.f32.mrf.mxu0
        %v1537 = vadd.f32 0.0, %v1536
        %1538 = vmatmul.f32.gmra.mxu0 %v1517
        %v1539 = vpop.f32.mrf.mxu0
        %v1540 = vadd.f32 0.0, %v1539
        %1541 = vdwg.mxu0
        %v1542 = vmul.f32 %v1537, 0.35355338
        %v1543 = vmul.f32 %v1540, 0.35355338
        %v1544 = vsel %vm1373, %v1542, -inf
        %1545 = vmax.xlane.f32.xlu0 %v1544
        %v1546 = vpop.xlane.xlu0 %1545
        %v1547 = vsel %vm1377, %v1543, -inf
        %1548 = vmax.xlane.f32.xlu0 %v1547
        %v1549 = vpop.xlane.xlu0 %1548
        %v1550 = vsub.f32 %v1542, %v1546
        %v1551 = vsub.f32 %v1543, %v1549
        %v1552 = vmul.f32 %v1550, 1.442695
        %v1553 = vpow.pop %v1552
        %v1554 = vmul.f32 %v1551, 1.442695
        %v1555 = vpow.pop %v1554
        %v1556 = vsel %vm1373, %v1553, 0.0
        %1557 = vadd.xlane.f32.xlu0 %v1556
        %v1558 = vpop.xlane.xlu0 %1557
        %v1559 = vsel %vm1377, %v1555, 0.0
        %1560 = vadd.xlane.f32.xlu0 %v1559
        %v1561 = vpop.xlane.xlu0 %1560
        %v1562 = vrcp.pop %v1558
        %v1563 = vmul.f32 %v1558, %v1562
        %v1564 = vsub.f32 1.0, %v1563
        %v1565 = vmul.f32 %v1562, %v1564
        %v1566 = vadd.f32 %v1562, %v1565
        %vm1567 = vweird.f32 %v1558
        %vm1568 = vweird.f32 %v1562
        %vm1569 = vmor %vm1567, %vm1568
        %v1570 = vsel %vm1569, %v1562, %v1566
        %v1571 = vand.u32 2147483647, %v1558
        %vm1572 = vcmp.eq.f32.partialorder %v1571, 8.507059e+37
        %v1573 = vand.u32 %v1558, 2147483648
        %v1574 = vor.u32 1.1754944e-38, %v1573
        %v1575 = vsel %vm1572, %v1574, %v1570
        %v1576 = vmul.f32 %v1553, %v1575
        %v1577 = vrcp.pop %v1561
        %v1578 = vmul.f32 %v1561, %v1577
        %v1579 = vsub.f32 1.0, %v1578
        %v1580 = vmul.f32 %v1577, %v1579
        %v1581 = vadd.f32 %v1577, %v1580
        %vm1582 = vweird.f32 %v1561
        %vm1583 = vweird.f32 %v1577
        %vm1584 = vmor %vm1582, %vm1583
        %v1585 = vsel %vm1584, %v1577, %v1581
        %v1586 = vand.u32 2147483647, %v1561
        %vm1587 = vcmp.eq.f32.partialorder %v1586, 8.507059e+37
        %v1588 = vand.u32 %v1561, 2147483648
        %v1589 = vor.u32 1.1754944e-38, %v1588
        %v1590 = vsel %vm1587, %v1589, %v1585
        %v1591 = vmul.f32 %v1555, %v1590
        %v1593 = vsel %vm1373, %v1576, 0
        %v1596 = vsel %vm1373, %v1591, 0
        %v1599 = vsel %vm1373, %v1307, 0
        %1601 = vmatpush.xpose.msra.mxu0 0.0
        %1602 = vmatpush.xpose.msra.mxu0 0.0
        %1603 = vmatpush.xpose.msra.mxu0 0.0
        %1604 = vmatpush.xpose.msra.mxu0 0.0
        %1605 = vmatpush.xpose.msra.mxu0 0.0
        %1606 = vmatpush.xpose.msra.mxu0 0.0
        %1607 = vmatpush.xpose.msra.mxu0 0.0
        %1608 = vmatpush.xpose.msra.mxu0 0.0
        %1609 = vmatpush.xpose.msra.mxu0 0.0
        %1610 = vmatpush.xpose.msra.mxu0 0.0
        %1611 = vmatpush.xpose.msra.mxu0 0.0
        %1612 = vmatpush.xpose.msra.mxu0 0.0
        %1613 = vmatpush.xpose.msra.mxu0 0.0
        %1614 = vmatpush.xpose.msra.mxu0 0.0
        %1615 = vmatpush.xpose.msra.mxu0 0.0
        %1616 = vmatpush.xpose.msra.mxu0 %v1599
        %1617 = vmatmul.f32.gmra.mxu0 %v1593
        %v1618 = vpop.f32.mrf.mxu0
        %v1619 = vadd.f32 0.0, %v1618
        %1620 = vmatmul.f32.gmra.mxu0 %v1596
        %v1621 = vpop.f32.mrf.mxu0
        %v1622 = vadd.f32 0.0, %v1621
        %1623 = vdwg.mxu0
        %v1625 = vsel %vm1341, %v1619, 0
        %v1628 = vsel %vm1341, %v1622, 0
        %1630 = vmatpush.msra.mxu0 0.0
        %1631 = vmatpush.msra.mxu0 0.0
        %1632 = vmatpush.msra.mxu0 0.0
        %1633 = vmatpush.msra.mxu0 0.0
        %1634 = vmatpush.msra.mxu0 0.0
        %1635 = vmatpush.msra.mxu0 0.0
        %1636 = vmatpush.msra.mxu0 0.0
        %1637 = vmatpush.msra.mxu0 0.0
        %1638 = vmatpush.msra.mxu0 0.0
        %1639 = vmatpush.msra.mxu0 0.0
        %1640 = vmatpush.msra.mxu0 0.0
        %1641 = vmatpush.msra.mxu0 0.0
        %1642 = vmatpush.msra.mxu0 0.0
        %1643 = vmatpush.msra.mxu0 0.0
        %1644 = vmatpush.msra.mxu0 0.0
        %1645 = vmatpush.msra.mxu0 %v1130
        %1646 = vmatmul.f32.gmra.mxu0 %v1625
        %v1647 = vpop.f32.mrf.mxu0
        %v1648 = vadd.f32 0.0, %v1647
        %1649 = vmatmul.f32.gmra.mxu0 %v1628
        %v1650 = vpop.f32.mrf.mxu0
        %v1651 = vadd.f32 0.0, %v1650
        %1652 = vdwg.mxu0
        %v1653 = vadd.f32 %v1485, %v1648
        %v1654 = vadd.f32 %v1486, %v1651
        %v1656 = vperm.slane %v976, 0
        %1658 = vmatpush.msra.mxu0 0.0
        %1659 = vmatpush.msra.mxu0 0.0
        %1660 = vmatpush.msra.mxu0 0.0
        %1661 = vmatpush.msra.mxu0 0.0
        %1662 = vmatpush.msra.mxu0 0.0
        %1663 = vmatpush.msra.mxu0 0.0
        %1664 = vmatpush.msra.mxu0 0.0
        %1665 = vmatpush.msra.mxu0 0.0
        %1666 = vmatpush.msra.mxu0 0.0
        %1667 = vmatpush.msra.mxu0 0.0
        %1668 = vmatpush.msra.mxu0 0.0
        %1669 = vmatpush.msra.mxu0 0.0
        %1670 = vmatpush.msra.mxu0 %v1116
        %1671 = vmatpush.msra.mxu0 %v1115
        %1672 = vmatpush.msra.mxu0 %v1114
        %1673 = vmatpush.msra.mxu0 %v1113
        %1674 = vmatmul.f32.gmra.mxu0 %v1269
        %v1675 = vpop.f32.mrf.mxu0
        %v1676 = vadd.f32 %v1656, %v1675
        %1677 = vmatmul.f32.gmra.mxu0 %v1272
        %v1678 = vpop.f32.mrf.mxu0
        %v1679 = vadd.f32 %v1656, %v1678
        %1680 = vdwg.mxu0
        %v1682 = vsel %vm1341, %v1676, 0
        %v1685 = vsel %vm1341, %v1679, 0
        %1687 = vmatpush.msra.mxu0 0.0
        %1688 = vmatpush.msra.mxu0 0.0
        %1689 = vmatpush.msra.mxu0 0.0
        %1690 = vmatpush.msra.mxu0 0.0
        %1691 = vmatpush.msra.mxu0 0.0
        %1692 = vmatpush.msra.mxu0 0.0
        %1693 = vmatpush.msra.mxu0 0.0
        %1694 = vmatpush.msra.mxu0 0.0
        %1695 = vmatpush.msra.mxu0 0.0
        %1696 = vmatpush.msra.mxu0 0.0
        %1697 = vmatpush.msra.mxu0 0.0
        %1698 = vmatpush.msra.mxu0 0.0
        %1699 = vmatpush.msra.mxu0 0.0
        %1700 = vmatpush.msra.mxu0 0.0
        %1701 = vmatpush.msra.mxu0 0.0
        %1702 = vmatpush.msra.mxu0 %v1298
        %1703 = vmatmul.f32.gmra.mxu0 %v1682
        %v1704 = vpop.f32.mrf.mxu0
        %v1705 = vadd.f32 0.0, %v1704
        %1706 = vmatmul.f32.gmra.mxu0 %v1685
        %v1707 = vpop.f32.mrf.mxu0
        %v1708 = vadd.f32 0.0, %v1707
        %1709 = vdwg.mxu0
        %v1710 = vmul.f32 %v1705, 0.35355338
        %v1711 = vmul.f32 %v1708, 0.35355338
        %v1712 = vsel %vm1373, %v1710, -inf
        %1713 = vmax.xlane.f32.xlu0 %v1712
        %v1714 = vpop.xlane.xlu0 %1713
        %v1715 = vsel %vm1377, %v1711, -inf
        %1716 = vmax.xlane.f32.xlu0 %v1715
        %v1717 = vpop.xlane.xlu0 %1716
        %v1718 = vsub.f32 %v1710, %v1714
        %v1719 = vsub.f32 %v1711, %v1717
        %v1720 = vmul.f32 %v1718, 1.442695
        %v1721 = vpow.pop %v1720
        %v1722 = vmul.f32 %v1719, 1.442695
        %v1723 = vpow.pop %v1722
        %v1724 = vsel %vm1373, %v1721, 0.0
        %1725 = vadd.xlane.f32.xlu0 %v1724
        %v1726 = vpop.xlane.xlu0 %1725
        %v1727 = vsel %vm1377, %v1723, 0.0
        %1728 = vadd.xlane.f32.xlu0 %v1727
        %v1729 = vpop.xlane.xlu0 %1728
        %v1730 = vrcp.pop %v1726
        %v1731 = vmul.f32 %v1726, %v1730
        %v1732 = vsub.f32 1.0, %v1731
        %v1733 = vmul.f32 %v1730, %v1732
        %v1734 = vadd.f32 %v1730, %v1733
        %vm1735 = vweird.f32 %v1726
        %vm1736 = vweird.f32 %v1730
        %vm1737 = vmor %vm1735, %vm1736
        %v1738 = vsel %vm1737, %v1730, %v1734
        %v1739 = vand.u32 2147483647, %v1726
        %vm1740 = vcmp.eq.f32.partialorder %v1739, 8.507059e+37
        %v1741 = vand.u32 %v1726, 2147483648
        %v1742 = vor.u32 1.1754944e-38, %v1741
        %v1743 = vsel %vm1740, %v1742, %v1738
        %v1744 = vmul.f32 %v1721, %v1743
        %v1745 = vrcp.pop %v1729
        %v1746 = vmul.f32 %v1729, %v1745
        %v1747 = vsub.f32 1.0, %v1746
        %v1748 = vmul.f32 %v1745, %v1747
        %v1749 = vadd.f32 %v1745, %v1748
        %vm1750 = vweird.f32 %v1729
        %vm1751 = vweird.f32 %v1745
        %vm1752 = vmor %vm1750, %vm1751
        %v1753 = vsel %vm1752, %v1745, %v1749
        %v1754 = vand.u32 2147483647, %v1729
        %vm1755 = vcmp.eq.f32.partialorder %v1754, 8.507059e+37
        %v1756 = vand.u32 %v1729, 2147483648
        %v1757 = vor.u32 1.1754944e-38, %v1756
        %v1758 = vsel %vm1755, %v1757, %v1753
        %v1759 = vmul.f32 %v1723, %v1758
        %v1761 = vsel %vm1373, %v1744, 0
        %v1764 = vsel %vm1373, %v1759, 0
        %v1767 = vsel %vm1373, %v1310, 0
        %1769 = vmatpush.xpose.msra.mxu0 0.0
        %1770 = vmatpush.xpose.msra.mxu0 0.0
        %1771 = vmatpush.xpose.msra.mxu0 0.0
        %1772 = vmatpush.xpose.msra.mxu0 0.0
        %1773 = vmatpush.xpose.msra.mxu0 0.0
        %1774 = vmatpush.xpose.msra.mxu0 0.0
        %1775 = vmatpush.xpose.msra.mxu0 0.0
        %1776 = vmatpush.xpose.msra.mxu0 0.0
        %1777 = vmatpush.xpose.msra.mxu0 0.0
        %1778 = vmatpush.xpose.msra.mxu0 0.0
        %1779 = vmatpush.xpose.msra.mxu0 0.0
        %1780 = vmatpush.xpose.msra.mxu0 0.0
        %1781 = vmatpush.xpose.msra.mxu0 0.0
        %1782 = vmatpush.xpose.msra.mxu0 0.0
        %1783 = vmatpush.xpose.msra.mxu0 0.0
        %1784 = vmatpush.xpose.msra.mxu0 %v1767
        %1785 = vmatmul.f32.gmra.mxu0 %v1761
        %v1786 = vpop.f32.mrf.mxu0
        %v1787 = vadd.f32 0.0, %v1786
        %1788 = vmatmul.f32.gmra.mxu0 %v1764
        %v1789 = vpop.f32.mrf.mxu0
        %v1790 = vadd.f32 0.0, %v1789
        %1791 = vdwg.mxu0
        %v1793 = vsel %vm1341, %v1787, 0
        %v1796 = vsel %vm1341, %v1790, 0
        %1798 = vmatpush.msra.mxu0 0.0
        %1799 = vmatpush.msra.mxu0 0.0
        %1800 = vmatpush.msra.mxu0 0.0
        %1801 = vmatpush.msra.mxu0 0.0
        %1802 = vmatpush.msra.mxu0 0.0
        %1803 = vmatpush.msra.mxu0 0.0
        %1804 = vmatpush.msra.mxu0 0.0
        %1805 = vmatpush.msra.mxu0 0.0
        %1806 = vmatpush.msra.mxu0 0.0
        %1807 = vmatpush.msra.mxu0 0.0
        %1808 = vmatpush.msra.mxu0 0.0
        %1809 = vmatpush.msra.mxu0 0.0
        %1810 = vmatpush.msra.mxu0 0.0
        %1811 = vmatpush.msra.mxu0 0.0
        %1812 = vmatpush.msra.mxu0 0.0
        %1813 = vmatpush.msra.mxu0 %v1131
        %1814 = vmatmul.f32.gmra.mxu0 %v1793
        %v1815 = vpop.f32.mrf.mxu0
        %v1816 = vadd.f32 0.0, %v1815
        %1817 = vmatmul.f32.gmra.mxu0 %v1796
        %v1818 = vpop.f32.mrf.mxu0
        %v1819 = vadd.f32 0.0, %v1818
        %1820 = vdwg.mxu0
        %v1821 = vadd.f32 %v1653, %v1816
        %v1822 = vadd.f32 %v1654, %v1819
        %v1824 = vperm.slane %v977, 0
        %1826 = vmatpush.msra.mxu0 0.0
        %1827 = vmatpush.msra.mxu0 0.0
        %1828 = vmatpush.msra.mxu0 0.0
        %1829 = vmatpush.msra.mxu0 0.0
        %1830 = vmatpush.msra.mxu0 0.0
        %1831 = vmatpush.msra.mxu0 0.0
        %1832 = vmatpush.msra.mxu0 0.0
        %1833 = vmatpush.msra.mxu0 0.0
        %1834 = vmatpush.msra.mxu0 0.0
        %1835 = vmatpush.msra.mxu0 0.0
        %1836 = vmatpush.msra.mxu0 0.0
        %1837 = vmatpush.msra.mxu0 0.0
        %1838 = vmatpush.msra.mxu0 %v1120
        %1839 = vmatpush.msra.mxu0 %v1119
        %1840 = vmatpush.msra.mxu0 %v1118
        %1841 = vmatpush.msra.mxu0 %v1117
        %1842 = vmatmul.f32.gmra.mxu0 %v1269
        %v1843 = vpop.f32.mrf.mxu0
        %v1844 = vadd.f32 %v1824, %v1843
        %1845 = vmatmul.f32.gmra.mxu0 %v1272
        %v1846 = vpop.f32.mrf.mxu0
        %v1847 = vadd.f32 %v1824, %v1846
        %1848 = vdwg.mxu0
        %v1850 = vsel %vm1341, %v1844, 0
        %v1853 = vsel %vm1341, %v1847, 0
        %1855 = vmatpush.msra.mxu0 0.0
        %1856 = vmatpush.msra.mxu0 0.0
        %1857 = vmatpush.msra.mxu0 0.0
        %1858 = vmatpush.msra.mxu0 0.0
        %1859 = vmatpush.msra.mxu0 0.0
        %1860 = vmatpush.msra.mxu0 0.0
        %1861 = vmatpush.msra.mxu0 0.0
        %1862 = vmatpush.msra.mxu0 0.0
        %1863 = vmatpush.msra.mxu0 0.0
        %1864 = vmatpush.msra.mxu0 0.0
        %1865 = vmatpush.msra.mxu0 0.0
        %1866 = vmatpush.msra.mxu0 0.0
        %1867 = vmatpush.msra.mxu0 0.0
        %1868 = vmatpush.msra.mxu0 0.0
        %1869 = vmatpush.msra.mxu0 0.0
        %1870 = vmatpush.msra.mxu0 %v1301
        %1871 = vmatmul.f32.gmra.mxu0 %v1850
        %v1872 = vpop.f32.mrf.mxu0
        %v1873 = vadd.f32 0.0, %v1872
        %1874 = vmatmul.f32.gmra.mxu0 %v1853
        %v1875 = vpop.f32.mrf.mxu0
        %v1876 = vadd.f32 0.0, %v1875
        %1877 = vdwg.mxu0
        %v1878 = vmul.f32 %v1873, 0.35355338
        %v1879 = vmul.f32 %v1876, 0.35355338
        %v1880 = vsel %vm1373, %v1878, -inf
        %1881 = vmax.xlane.f32.xlu0 %v1880
        %v1882 = vpop.xlane.xlu0 %1881
        %v1883 = vsel %vm1377, %v1879, -inf
        %1884 = vmax.xlane.f32.xlu0 %v1883
        %v1885 = vpop.xlane.xlu0 %1884
        %v1886 = vsub.f32 %v1878, %v1882
        %v1887 = vsub.f32 %v1879, %v1885
        %v1888 = vmul.f32 %v1886, 1.442695
        %v1889 = vpow.pop %v1888
        %v1890 = vmul.f32 %v1887, 1.442695
        %v1891 = vpow.pop %v1890
        %v1892 = vsel %vm1373, %v1889, 0.0
        %1893 = vadd.xlane.f32.xlu0 %v1892
        %v1894 = vpop.xlane.xlu0 %1893
        %v1895 = vsel %vm1377, %v1891, 0.0
        %1896 = vadd.xlane.f32.xlu0 %v1895
        %v1897 = vpop.xlane.xlu0 %1896
        %v1898 = vrcp.pop %v1894
        %v1899 = vmul.f32 %v1894, %v1898
        %v1900 = vsub.f32 1.0, %v1899
        %v1901 = vmul.f32 %v1898, %v1900
        %v1902 = vadd.f32 %v1898, %v1901
        %vm1903 = vweird.f32 %v1894
        %vm1904 = vweird.f32 %v1898
        %vm1905 = vmor %vm1903, %vm1904
        %v1906 = vsel %vm1905, %v1898, %v1902
        %v1907 = vand.u32 2147483647, %v1894
        %vm1908 = vcmp.eq.f32.partialorder %v1907, 8.507059e+37
        %v1909 = vand.u32 %v1894, 2147483648
        %v1910 = vor.u32 1.1754944e-38, %v1909
        %v1911 = vsel %vm1908, %v1910, %v1906
        %v1912 = vmul.f32 %v1889, %v1911
        %v1913 = vrcp.pop %v1897
        %v1914 = vmul.f32 %v1897, %v1913
        %v1915 = vsub.f32 1.0, %v1914
        %v1916 = vmul.f32 %v1913, %v1915
        %v1917 = vadd.f32 %v1913, %v1916
        %vm1918 = vweird.f32 %v1897
        %vm1919 = vweird.f32 %v1913
        %vm1920 = vmor %vm1918, %vm1919
        %v1921 = vsel %vm1920, %v1913, %v1917
        %v1922 = vand.u32 2147483647, %v1897
        %vm1923 = vcmp.eq.f32.partialorder %v1922, 8.507059e+37
        %v1924 = vand.u32 %v1897, 2147483648
        %v1925 = vor.u32 1.1754944e-38, %v1924
        %v1926 = vsel %vm1923, %v1925, %v1921
        %v1927 = vmul.f32 %v1891, %v1926
        %v1929 = vsel %vm1373, %v1912, 0
        %v1932 = vsel %vm1373, %v1927, 0
        %v1935 = vsel %vm1373, %v1313, 0
        %1937 = vmatpush.xpose.msra.mxu0 0.0
        %1938 = vmatpush.xpose.msra.mxu0 0.0
        %1939 = vmatpush.xpose.msra.mxu0 0.0
        %1940 = vmatpush.xpose.msra.mxu0 0.0
        %1941 = vmatpush.xpose.msra.mxu0 0.0
        %1942 = vmatpush.xpose.msra.mxu0 0.0
        %1943 = vmatpush.xpose.msra.mxu0 0.0
        %1944 = vmatpush.xpose.msra.mxu0 0.0
        %1945 = vmatpush.xpose.msra.mxu0 0.0
        %1946 = vmatpush.xpose.msra.mxu0 0.0
        %1947 = vmatpush.xpose.msra.mxu0 0.0
        %1948 = vmatpush.xpose.msra.mxu0 0.0
        %1949 = vmatpush.xpose.msra.mxu0 0.0
        %1950 = vmatpush.xpose.msra.mxu0 0.0
        %1951 = vmatpush.xpose.msra.mxu0 0.0
        %1952 = vmatpush.xpose.msra.mxu0 %v1935
        %1953 = vmatmul.f32.gmra.mxu0 %v1929
        %v1954 = vpop.f32.mrf.mxu0
        %v1955 = vadd.f32 0.0, %v1954
        %1956 = vmatmul.f32.gmra.mxu0 %v1932
        %v1957 = vpop.f32.mrf.mxu0
        %v1958 = vadd.f32 0.0, %v1957
        %1959 = vdwg.mxu0
        %v1961 = vsel %vm1341, %v1955, 0
        %v1964 = vsel %vm1341, %v1958, 0
        %1966 = vmatpush.msra.mxu0 0.0
        %1967 = vmatpush.msra.mxu0 0.0
        %1968 = vmatpush.msra.mxu0 0.0
        %1969 = vmatpush.msra.mxu0 0.0
        %1970 = vmatpush.msra.mxu0 0.0
        %1971 = vmatpush.msra.mxu0 0.0
        %1972 = vmatpush.msra.mxu0 0.0
        %1973 = vmatpush.msra.mxu0 0.0
        %1974 = vmatpush.msra.mxu0 0.0
        %1975 = vmatpush.msra.mxu0 0.0
        %1976 = vmatpush.msra.mxu0 0.0
        %1977 = vmatpush.msra.mxu0 0.0
        %1978 = vmatpush.msra.mxu0 0.0
        %1979 = vmatpush.msra.mxu0 0.0
        %1980 = vmatpush.msra.mxu0 0.0
        %1981 = vmatpush.msra.mxu0 %v1132
        %1982 = vmatmul.f32.gmra.mxu0 %v1961
        %v1983 = vpop.f32.mrf.mxu0
        %v1984 = vadd.f32 0.0, %v1983
        %1985 = vmatmul.f32.gmra.mxu0 %v1964
        %v1986 = vpop.f32.mrf.mxu0
        %v1987 = vadd.f32 0.0, %v1986
        %1988 = vdwg.mxu0
        %v1989 = vadd.f32 %v1821, %v1984
        %v1990 = vadd.f32 %v1822, %v1987
        %v1991 = vadd.f32 %v1104, %v1989
        %v1992 = vadd.f32 %v1103, %v1990
        %v1993 = vsel %vm1145, %v1991, 0.0
        %1994 = vadd.xlane.f32.xlu0 %v1993
        %v1995 = vpop.xlane.xlu0 %1994
        %v1996 = vsel %vm1149, %v1992, 0.0
        %1997 = vadd.xlane.f32.xlu0 %v1996
        %v1998 = vpop.xlane.xlu0 %1997
        %v1999 = vmul.f32 %v1995, %v1159
        %v2000 = vmul.f32 %v1998, %v1159
        %v2001 = vsub.f32 %v1991, %v1999
        %v2002 = vsub.f32 %v1992, %v2000
        %v2003 = vmul.f32 %v2001, %v2001
        %v2004 = vmul.f32 %v2002, %v2002
        %v2005 = vsel %vm1145, %v2003, 0.0
        %2006 = vadd.xlane.f32.xlu0 %v2005
        %v2007 = vpop.xlane.xlu0 %2006
        %v2008 = vsel %vm1149, %v2004, 0.0
        %2009 = vadd.xlane.f32.xlu0 %v2008
        %v2010 = vpop.xlane.xlu0 %2009
        %v2011 = vmul.f32 %v2007, %v1159
        %v2012 = vmul.f32 %v2010, %v1159
        %v2013 = vadd.f32 %v2011, 1e-12
        %v2014 = vadd.f32 %v2012, 1e-12
        %v2015 = vrsqrt.pop %v2013
        %v2016 = vmul.f32 %v2015, %v2013
        %v2017 = vmul.f32 %v2016, %v2015
        %v2018 = vmul.f32 0.5, %v2017
        %v2019 = vsub.f32 1.5, %v2018
        %v2020 = vmul.f32 %v2015, %v2019
        %vm2021 = vweird.f32 %v2013
        %vm2022 = vweird.f32 %v2015
        %vm2023 = vmor %vm2021, %vm2022
        %v2024 = vsel %vm2023, %v2015, %v2020
        %v2025 = vrsqrt.pop %v2014
        %v2026 = vmul.f32 %v2025, %v2014
        %v2027 = vmul.f32 %v2026, %v2025
        %v2028 = vmul.f32 0.5, %v2027
        %v2029 = vsub.f32 1.5, %v2028
        %v2030 = vmul.f32 %v2025, %v2029
        %vm2031 = vweird.f32 %v2014
        %vm2032 = vweird.f32 %v2025
        %vm2033 = vmor %vm2031, %vm2032
        %v2034 = vsel %vm2033, %v2025, %v2030
        %v2035 = vmul.f32 %v2001, %v2024
        %v2036 = vmul.f32 %v2002, %v2034
        %v2037 = vperm.slane %v969, 3
        %v2038 = vmul.f32 %v2035, %v2037
        %v2039 = vmul.f32 %v2036, %v2037
        %v2040 = vperm.slane %v969, 4
        %v2041 = vadd.f32 %v2038, %v2040
        %v2042 = vadd.f32 %v2039, %v2040
        %v2043 = vperm.slane %v973, 0
        %v2045 = vsel %vm1145, %v2041, 0
        %v2048 = vsel %vm1145, %v2042, 0
        %2050 = vmatpush.msra.mxu0 0.0
        %2051 = vmatpush.msra.mxu0 0.0
        %2052 = vmatpush.msra.mxu0 0.0
        %2053 = vmatpush.msra.mxu0 0.0
        %2054 = vmatpush.msra.mxu0 0.0
        %2055 = vmatpush.msra.mxu0 0.0
        %2056 = vmatpush.msra.mxu0 0.0
        %2057 = vmatpush.msra.mxu0 0.0
        %2058 = vmatpush.msra.mxu0 0.0
        %2059 = vmatpush.msra.mxu0 0.0
        %2060 = vmatpush.msra.mxu0 0.0
        %2061 = vmatpush.msra.mxu0 0.0
        %2062 = vmatpush.msra.mxu0 %v1136
        %2063 = vmatpush.msra.mxu0 %v1135
        %2064 = vmatpush.msra.mxu0 %v1134
        %2065 = vmatpush.msra.mxu0 %v1133
        %2066 = vmatmul.f32.gmra.mxu0 %v2045
        %v2067 = vpop.f32.mrf.mxu0
        %v2068 = vadd.f32 %v2043, %v2067
        %2069 = vmatmul.f32.gmra.mxu0 %v2048
        %v2070 = vpop.f32.mrf.mxu0
        %v2071 = vadd.f32 %v2043, %v2070
        %2072 = vdwg.mxu0
        %v2073 = vmul.f32 %v2068, 0.5
        %v2074 = vmul.f32 %v2071, 0.5
        %v2075 = vmul.f32 %v2068, 0.70710677
        %v2076 = vmul.f32 %v2071, 0.70710677
        %v2077 = vmul.f32 %v2075, %v2075
        %v2078 = vmin.f32 16.0, %v2077
        %v2079 = vmul.f32 %v2078, 2.1237322e-06
        %v2080 = vadd.f32 %v2079, 0.00028619796
        %v2081 = vmul.f32 %v2078, %v2080
        %v2082 = vadd.f32 %v2081, 0.0036580483
        %v2083 = vmul.f32 %v2078, %v2082
        %v2084 = vadd.f32 %v2083, 0.05243302
        %v2085 = vmul.f32 %v2078, %v2084
        %v2086 = vadd.f32 %v2085, 0.18741608
        %v2087 = vmul.f32 %v2078, %v2086
        %v2088 = vadd.f32 %v2087, 1.1283791
        %v2089 = vmul.f32 %v2075, %v2088
        %v2090 = vmul.f32 %v2078, 3.8918573e-05
        %v2091 = vadd.f32 %v2090, 0.001143296
        %v2092 = vmul.f32 %v2078, %v2091
        %v2093 = vadd.f32 %v2092, 0.014752088
        %v2094 = vmul.f32 %v2078, %v2093
        %v2095 = vadd.f32 %v2094, 0.112945676
        %v2096 = vmul.f32 %v2078, %v2095
        %v2097 = vadd.f32 %v2096, 0.4994258
        %v2098 = vmul.f32 %v2078, %v2097
        %v2099 = vadd.f32 %v2098, 1.0
        %v2100 = vrcp.pop %v2099
        %v2101 = vmul.f32 %v2099, %v2100
        %v2102 = vsub.f32 1.0, %v2101
        %v2103 = vmul.f32 %v2100, %v2102
        %v2104 = vadd.f32 %v2100, %v2103
        %vm2105 = vweird.f32 %v2099
        %vm2106 = vweird.f32 %v2100
        %vm2107 = vmor %vm2105, %vm2106
        %v2108 = vsel %vm2107, %v2100, %v2104
        %v2109 = vand.u32 2147483647, %v2099
        %vm2110 = vcmp.eq.f32.partialorder %v2109, 8.507059e+37
        %v2111 = vand.u32 %v2099, 2147483648
        %v2112 = vor.u32 1.1754944e-38, %v2111
        %v2113 = vsel %vm2110, %v2112, %v2108
        %v2114 = vmul.f32 %v2089, %v2113
        %v2115 = vmin.f32 %v2114, 1.0
        %v2116 = vmax.f32 %v2115, -1.0
        %v2117 = vmul.f32 %v2076, %v2076
        %v2118 = vmin.f32 16.0, %v2117
        %v2119 = vmul.f32 %v2118, 2.1237322e-06
        %v2120 = vadd.f32 %v2119, 0.00028619796
        %v2121 = vmul.f32 %v2118, %v2120
        %v2122 = vadd.f32 %v2121, 0.0036580483
        %v2123 = vmul.f32 %v2118, %v2122
        %v2124 = vadd.f32 %v2123, 0.05243302
        %v2125 = vmul.f32 %v2118, %v2124
        %v2126 = vadd.f32 %v2125, 0.18741608
        %v2127 = vmul.f32 %v2118, %v2126
        %v2128 = vadd.f32 %v2127, 1.1283791
        %v2129 = vmul.f32 %v2076, %v2128
        %v2130 = vmul.f32 %v2118, 3.8918573e-05
        %v2131 = vadd.f32 %v2130, 0.001143296
        %v2132 = vmul.f32 %v2118, %v2131
        %v2133 = vadd.f32 %v2132, 0.014752088
        %v2134 = vmul.f32 %v2118, %v2133
        %v2135 = vadd.f32 %v2134, 0.112945676
        %v2136 = vmul.f32 %v2118, %v2135
        %v2137 = vadd.f32 %v2136, 0.4994258
        %v2138 = vmul.f32 %v2118, %v2137
        %v2139 = vadd.f32 %v2138, 1.0
        %v2140 = vrcp.pop %v2139
        %v2141 = vmul.f32 %v2139, %v2140
        %v2142 = vsub.f32 1.0, %v2141
        %v2143 = vmul.f32 %v2140, %v2142
        %v2144 = vadd.f32 %v2140, %v2143
        %vm2145 = vweird.f32 %v2139
        %vm2146 = vweird.f32 %v2140
        %vm2147 = vmor %vm2145, %vm2146
        %v2148 = vsel %vm2147, %v2140, %v2144
        %v2149 = vand.u32 2147483647, %v2139
        %vm2150 = vcmp.eq.f32.partialorder %v2149, 8.507059e+37
        %v2151 = vand.u32 %v2139, 2147483648
        %v2152 = vor.u32 1.1754944e-38, %v2151
        %v2153 = vsel %vm2150, %v2152, %v2148
        %v2154 = vmul.f32 %v2129, %v2153
        %v2155 = vmin.f32 %v2154, 1.0
        %v2156 = vmax.f32 %v2155, -1.0
        %v2157 = vadd.f32 %v2116, 1.0
        %v2158 = vadd.f32 %v2156, 1.0
        %v2159 = vmul.f32 %v2073, %v2157
        %v2160 = vmul.f32 %v2074, %v2158
        %vm2161 = vcmask 523264
        %v2163 = vsel %vm2161, %v2159, 0
        %v2166 = vsel %vm2161, %v2160, 0
        %2168 = vmatpush.msra.mxu0 0.0
        %2169 = vmatpush.msra.mxu0 0.0
        %2170 = vmatpush.msra.mxu0 0.0
        %2171 = vmatpush.msra.mxu0 0.0
        %2172 = vmatpush.msra.mxu0 0.0
        %2173 = vmatpush.msra.mxu0 0.0
        %2174 = vmatpush.msra.mxu0 0.0
        %2175 = vmatpush.msra.mxu0 0.0
        %2176 = vmatpush.msra.mxu0 %v1144
        %2177 = vmatpush.msra.mxu0 %v1143
        %2178 = vmatpush.msra.mxu0 %v1142
        %2179 = vmatpush.msra.mxu0 %v1141
        %2180 = vmatpush.msra.mxu0 %v1140
        %2181 = vmatpush.msra.mxu0 %v1139
        %2182 = vmatpush.msra.mxu0 %v1138
        %2183 = vmatpush.msra.mxu0 %v1137
        %2184 = vmatmul.f32.gmra.mxu0 %v2163
        %v2185 = vpop.f32.mrf.mxu0
        %v2186 = vadd.f32 0.0, %v2185
        %2187 = vmatmul.f32.gmra.mxu0 %v2166
        %v2188 = vpop.f32.mrf.mxu0
        %v2189 = vadd.f32 0.0, %v2188
        %2190 = vdwg.mxu0
        %v2191 = vadd.f32 %v1991, %v2186
        %v2192 = vadd.f32 %v1992, %v2189
        %v2193 = vperm.slane %v969, 5
        %v2194 = vadd.f32 %v2191, %v2193
        %v2195 = vadd.f32 %v2192, %v2193
        %v2196 = vld [vmem:[%s17] sm:$0xff]
        %v2197 = vld [vmem:[%s17 + $0x8] sm:$0xff]
        %v2198 = vld [vmem:[%s17 + $0x10] sm:$0xff]
        %v2199 = vld [vmem:[%s17 + $0x18] sm:$0xff]
        %v2200 = vld [vmem:[%s17 + $0x20] sm:$0xff]
        %v2201 = vld [vmem:[%s17 + $0x28] sm:$0xff]
        %v2202 = vld [vmem:[%s17 + $0x30] sm:$0xff]
        %v2203 = vld [vmem:[%s17 + $0x38] sm:$0xff]
        %v2204 = vld [vmem:[%s17 + $0x40] sm:$0xff]
        %v2205 = vld [vmem:[%s17 + $0x48] sm:$0xff]
        %v2206 = vld [vmem:[%s17 + $0x50] sm:$0xff]
        %v2207 = vld [vmem:[%s17 + $0x58] sm:$0xff]
        %v2208 = vld [vmem:[%s17 + $0x60] sm:$0xff]
        %v2209 = vld [vmem:[%s17 + $0x68] sm:$0xff]
        %v2210 = vld [vmem:[%s17 + $0x70] sm:$0xff]
        %v2211 = vld [vmem:[%s17 + $0x78] sm:$0xff]
        %v2212 = vld [vmem:[%s19] sm:$0xff]
        %v2213 = vld [vmem:[%s19 + $0x8] sm:$0xff]
        %v2214 = vld [vmem:[%s19 + $0x10] sm:$0xff]
        %v2215 = vld [vmem:[%s19 + $0x18] sm:$0xff]
        %v2216 = vld [vmem:[%s19 + $0x20] sm:$0xff]
        %v2217 = vld [vmem:[%s19 + $0x28] sm:$0xff]
        %v2218 = vld [vmem:[%s19 + $0x30] sm:$0xff]
        %v2219 = vld [vmem:[%s19 + $0x38] sm:$0xff]
        %v2220 = vld [vmem:[%s21] sm:$0xff]
        %v2221 = vld [vmem:[%s21 + $0x8] sm:$0xff]
        %v2222 = vld [vmem:[%s21 + $0x10] sm:$0xff]
        %v2223 = vld [vmem:[%s21 + $0x18] sm:$0xff]
        %v2224 = vld [vmem:[%s23] sm:$0xff]
        %v2225 = vld [vmem:[%s23 + $0x8] sm:$0xff]
        %v2226 = vld [vmem:[%s23 + $0x10] sm:$0xff]
        %v2227 = vld [vmem:[%s23 + $0x18] sm:$0xff]
        %v2228 = vld [vmem:[%s25] sm:$0xff]
        %v2229 = vld [vmem:[%s25 + $0x8] sm:$0xff]
        %v2230 = vld [vmem:[%s25 + $0x10] sm:$0xff]
        %v2231 = vld [vmem:[%s25 + $0x18] sm:$0xff]
        %v2232 = vld [vmem:[%s25 + $0x20] sm:$0xff]
        %v2233 = vld [vmem:[%s25 + $0x28] sm:$0xff]
        %v2234 = vld [vmem:[%s25 + $0x30] sm:$0xff]
        %v2235 = vld [vmem:[%s25 + $0x38] sm:$0xff]
        %v2236 = vsel %vm1145, %v2194, 0.0
        %2237 = vadd.xlane.f32.xlu0 %v2236
        %v2238 = vpop.xlane.xlu0 %2237
        %v2239 = vsel %vm1149, %v2195, 0.0
        %2240 = vadd.xlane.f32.xlu0 %v2239
        %v2241 = vpop.xlane.xlu0 %2240
        %v2242 = vmul.f32 %v2238, %v1159
        %v2243 = vmul.f32 %v2241, %v1159
        %v2244 = vsub.f32 %v2194, %v2242
        %v2245 = vsub.f32 %v2195, %v2243
        %v2246 = vmul.f32 %v2244, %v2244
        %v2247 = vmul.f32 %v2245, %v2245
        %v2248 = vsel %vm1145, %v2246, 0.0
        %2249 = vadd.xlane.f32.xlu0 %v2248
        %v2250 = vpop.xlane.xlu0 %2249
        %v2251 = vsel %vm1149, %v2247, 0.0
        %2252 = vadd.xlane.f32.xlu0 %v2251
        %v2253 = vpop.xlane.xlu0 %2252
        %v2254 = vmul.f32 %v2250, %v1159
        %v2255 = vmul.f32 %v2253, %v1159
        %v2256 = vadd.f32 %v2254, 1e-12
        %v2257 = vadd.f32 %v2255, 1e-12
        %v2258 = vrsqrt.pop %v2256
        %v2259 = vmul.f32 %v2258, %v2256
        %v2260 = vmul.f32 %v2259, %v2258
        %v2261 = vmul.f32 0.5, %v2260
        %v2262 = vsub.f32 1.5, %v2261
        %v2263 = vmul.f32 %v2258, %v2262
        %vm2264 = vweird.f32 %v2256
        %vm2265 = vweird.f32 %v2258
        %vm2266 = vmor %vm2264, %vm2265
        %v2267 = vsel %vm2266, %v2258, %v2263
        %v2268 = vrsqrt.pop %v2257
        %v2269 = vmul.f32 %v2268, %v2257
        %v2270 = vmul.f32 %v2269, %v2268
        %v2271 = vmul.f32 0.5, %v2270
        %v2272 = vsub.f32 1.5, %v2271
        %v2273 = vmul.f32 %v2268, %v2272
        %vm2274 = vweird.f32 %v2257
        %vm2275 = vweird.f32 %v2268
        %vm2276 = vmor %vm2274, %vm2275
        %v2277 = vsel %vm2276, %v2268, %v2273
        %v2278 = vmul.f32 %v2244, %v2267
        %v2279 = vmul.f32 %v2245, %v2277
        %v2280 = vperm.slane %v969, 6
        %v2281 = vmul.f32 %v2278, %v2280
        %v2282 = vmul.f32 %v2279, %v2280
        %v2283 = vperm.slane %v969, 7
        %v2284 = vadd.f32 %v2281, %v2283
        %v2285 = vadd.f32 %v2282, %v2283
        %2287 = vset.pattern.permute.xlu0 0
        %2288 = vperm.xlu0 %2287, %v994
        %v2289 = vpop.permute.xlu0 %2288
        %2292 = vset.pattern.permute.xlu0 0
        %2293 = vperm.xlu0 %2292, %v995
        %v2294 = vpop.permute.xlu0 %2293
        %2297 = vset.pattern.permute.xlu0 0
        %2298 = vperm.xlu0 %2297, %v996
        %v2299 = vpop.permute.xlu0 %2298
        %2302 = vset.pattern.permute.xlu0 0
        %2303 = vperm.xlu0 %2302, %v997
        %v2304 = vpop.permute.xlu0 %2303
        %2307 = vset.pattern.permute.xlu0 0
        %2308 = vperm.xlu0 %2307, %v998
        %v2309 = vpop.permute.xlu0 %2308
        %2312 = vset.pattern.permute.xlu0 0
        %2313 = vperm.xlu0 %2312, %v999
        %v2314 = vpop.permute.xlu0 %2313
        %2317 = vset.pattern.permute.xlu0 0
        %2318 = vperm.xlu0 %2317, %v1000
        %v2319 = vpop.permute.xlu0 %2318
        %2322 = vset.pattern.permute.xlu0 0
        %2323 = vperm.xlu0 %2322, %v1001
        %v2324 = vpop.permute.xlu0 %2323
        %v2327 = vsel %vm1145, %v2212, 0
        %v2330 = vsel %vm1145, %v2213, 0
        %v2333 = vsel %vm1145, %v2214, 0
        %v2336 = vsel %vm1145, %v2215, 0
        %v2339 = vsel %vm1145, %v2216, 0
        %v2342 = vsel %vm1145, %v2217, 0
        %v2345 = vsel %vm1145, %v2218, 0
        %v2348 = vsel %vm1145, %v2219, 0
        %v2351 = vsel %vm1145, %v2284, 0
        %v2354 = vsel %vm1145, %v2285, 0
        %2356 = vmatpush.xpose.msra.mxu0 0.0
        %2357 = vmatpush.xpose.msra.mxu0 0.0
        %2358 = vmatpush.xpose.msra.mxu0 0.0
        %2359 = vmatpush.xpose.msra.mxu0 0.0
        %2360 = vmatpush.xpose.msra.mxu0 0.0
        %2361 = vmatpush.xpose.msra.mxu0 0.0
        %2362 = vmatpush.xpose.msra.mxu0 0.0
        %2363 = vmatpush.xpose.msra.mxu0 0.0
        %2364 = vmatpush.xpose.msra.mxu0 0.0
        %2365 = vmatpush.xpose.msra.mxu0 0.0
        %2366 = vmatpush.xpose.msra.mxu0 0.0
        %2367 = vmatpush.xpose.msra.mxu0 0.0
        %2368 = vmatpush.xpose.msra.mxu0 0.0
        %2369 = vmatpush.xpose.msra.mxu0 0.0
        %2370 = vmatpush.xpose.msra.mxu0 %v2354
        %2371 = vmatpush.xpose.msra.mxu0 %v2351
        %2372 = vmatmul.f32.gmra.mxu0 %v2327
        %v2373 = vpop.f32.mrf.mxu0
        %v2374 = vadd.f32 %v2289, %v2373
        %2375 = vmatmul.f32.gmra.mxu0 %v2330
        %v2376 = vpop.f32.mrf.mxu0
        %v2377 = vadd.f32 %v2294, %v2376
        %2378 = vmatmul.f32.gmra.mxu0 %v2333
        %v2379 = vpop.f32.mrf.mxu0
        %v2380 = vadd.f32 %v2299, %v2379
        %2381 = vmatmul.f32.gmra.mxu0 %v2336
        %v2382 = vpop.f32.mrf.mxu0
        %v2383 = vadd.f32 %v2304, %v2382
        %2384 = vmatmul.f32.gmra.mxu0 %v2339
        %v2385 = vpop.f32.mrf.mxu0
        %v2386 = vadd.f32 %v2309, %v2385
        %2387 = vmatmul.f32.gmra.mxu0 %v2342
        %v2388 = vpop.f32.mrf.mxu0
        %v2389 = vadd.f32 %v2314, %v2388
        %2390 = vmatmul.f32.gmra.mxu0 %v2345
        %v2391 = vpop.f32.mrf.mxu0
        %v2392 = vadd.f32 %v2319, %v2391
        %2393 = vmatmul.f32.gmra.mxu0 %v2348
        %v2394 = vpop.f32.mrf.mxu0
        %v2395 = vadd.f32 %v2324, %v2394
        %2396 = vdwg.mxu0
        %v2398 = vperm.slane %v978, 0
        %2400 = vmatpush.msra.mxu0 0.0
        %2401 = vmatpush.msra.mxu0 0.0
        %2402 = vmatpush.msra.mxu0 0.0
        %2403 = vmatpush.msra.mxu0 0.0
        %2404 = vmatpush.msra.mxu0 0.0
        %2405 = vmatpush.msra.mxu0 0.0
        %2406 = vmatpush.msra.mxu0 0.0
        %2407 = vmatpush.msra.mxu0 0.0
        %2408 = vmatpush.msra.mxu0 0.0
        %2409 = vmatpush.msra.mxu0 0.0
        %2410 = vmatpush.msra.mxu0 0.0
        %2411 = vmatpush.msra.mxu0 0.0
        %2412 = vmatpush.msra.mxu0 %v2199
        %2413 = vmatpush.msra.mxu0 %v2198
        %2414 = vmatpush.msra.mxu0 %v2197
        %2415 = vmatpush.msra.mxu0 %v2196
        %2416 = vmatmul.f32.gmra.mxu0 %v2351
        %v2417 = vpop.f32.mrf.mxu0
        %v2418 = vadd.f32 %v2398, %v2417
        %2419 = vmatmul.f32.gmra.mxu0 %v2354
        %v2420 = vpop.f32.mrf.mxu0
        %v2421 = vadd.f32 %v2398, %v2420
        %2422 = vdwg.mxu0
        %v2424 = vsel %vm1341, %v2418, 0
        %v2427 = vsel %vm1341, %v2421, 0
        %2429 = vmatpush.msra.mxu0 0.0
        %2430 = vmatpush.msra.mxu0 0.0
        %2431 = vmatpush.msra.mxu0 0.0
        %2432 = vmatpush.msra.mxu0 0.0
        %2433 = vmatpush.msra.mxu0 0.0
        %2434 = vmatpush.msra.mxu0 0.0
        %2435 = vmatpush.msra.mxu0 0.0
        %2436 = vmatpush.msra.mxu0 0.0
        %2437 = vmatpush.msra.mxu0 0.0
        %2438 = vmatpush.msra.mxu0 0.0
        %2439 = vmatpush.msra.mxu0 0.0
        %2440 = vmatpush.msra.mxu0 0.0
        %2441 = vmatpush.msra.mxu0 0.0
        %2442 = vmatpush.msra.mxu0 0.0
        %2443 = vmatpush.msra.mxu0 0.0
        %2444 = vmatpush.msra.mxu0 %v2374
        %2445 = vmatmul.f32.gmra.mxu0 %v2424
        %v2446 = vpop.f32.mrf.mxu0
        %v2447 = vadd.f32 0.0, %v2446
        %2448 = vmatmul.f32.gmra.mxu0 %v2427
        %v2449 = vpop.f32.mrf.mxu0
        %v2450 = vadd.f32 0.0, %v2449
        %2451 = vdwg.mxu0
        %v2452 = vmul.f32 %v2447, 0.35355338
        %v2453 = vmul.f32 %v2450, 0.35355338
        %v2454 = vsel %vm1373, %v2452, -inf
        %2455 = vmax.xlane.f32.xlu0 %v2454
        %v2456 = vpop.xlane.xlu0 %2455
        %v2457 = vsel %vm1377, %v2453, -inf
        %2458 = vmax.xlane.f32.xlu0 %v2457
        %v2459 = vpop.xlane.xlu0 %2458
        %v2460 = vsub.f32 %v2452, %v2456
        %v2461 = vsub.f32 %v2453, %v2459
        %v2462 = vmul.f32 %v2460, 1.442695
        %v2463 = vpow.pop %v2462
        %v2464 = vmul.f32 %v2461, 1.442695
        %v2465 = vpow.pop %v2464
        %v2466 = vsel %vm1373, %v2463, 0.0
        %2467 = vadd.xlane.f32.xlu0 %v2466
        %v2468 = vpop.xlane.xlu0 %2467
        %v2469 = vsel %vm1377, %v2465, 0.0
        %2470 = vadd.xlane.f32.xlu0 %v2469
        %v2471 = vpop.xlane.xlu0 %2470
        %v2472 = vrcp.pop %v2468
        %v2473 = vmul.f32 %v2468, %v2472
        %v2474 = vsub.f32 1.0, %v2473
        %v2475 = vmul.f32 %v2472, %v2474
        %v2476 = vadd.f32 %v2472, %v2475
        %vm2477 = vweird.f32 %v2468
        %vm2478 = vweird.f32 %v2472
        %vm2479 = vmor %vm2477, %vm2478
        %v2480 = vsel %vm2479, %v2472, %v2476
        %v2481 = vand.u32 2147483647, %v2468
        %vm2482 = vcmp.eq.f32.partialorder %v2481, 8.507059e+37
        %v2483 = vand.u32 %v2468, 2147483648
        %v2484 = vor.u32 1.1754944e-38, %v2483
        %v2485 = vsel %vm2482, %v2484, %v2480
        %v2486 = vmul.f32 %v2463, %v2485
        %v2487 = vrcp.pop %v2471
        %v2488 = vmul.f32 %v2471, %v2487
        %v2489 = vsub.f32 1.0, %v2488
        %v2490 = vmul.f32 %v2487, %v2489
        %v2491 = vadd.f32 %v2487, %v2490
        %vm2492 = vweird.f32 %v2471
        %vm2493 = vweird.f32 %v2487
        %vm2494 = vmor %vm2492, %vm2493
        %v2495 = vsel %vm2494, %v2487, %v2491
        %v2496 = vand.u32 2147483647, %v2471
        %vm2497 = vcmp.eq.f32.partialorder %v2496, 8.507059e+37
        %v2498 = vand.u32 %v2471, 2147483648
        %v2499 = vor.u32 1.1754944e-38, %v2498
        %v2500 = vsel %vm2497, %v2499, %v2495
        %v2501 = vmul.f32 %v2465, %v2500
        %v2503 = vsel %vm1373, %v2486, 0
        %v2506 = vsel %vm1373, %v2501, 0
        %v2509 = vsel %vm1373, %v2386, 0
        %2511 = vmatpush.xpose.msra.mxu0 0.0
        %2512 = vmatpush.xpose.msra.mxu0 0.0
        %2513 = vmatpush.xpose.msra.mxu0 0.0
        %2514 = vmatpush.xpose.msra.mxu0 0.0
        %2515 = vmatpush.xpose.msra.mxu0 0.0
        %2516 = vmatpush.xpose.msra.mxu0 0.0
        %2517 = vmatpush.xpose.msra.mxu0 0.0
        %2518 = vmatpush.xpose.msra.mxu0 0.0
        %2519 = vmatpush.xpose.msra.mxu0 0.0
        %2520 = vmatpush.xpose.msra.mxu0 0.0
        %2521 = vmatpush.xpose.msra.mxu0 0.0
        %2522 = vmatpush.xpose.msra.mxu0 0.0
        %2523 = vmatpush.xpose.msra.mxu0 0.0
        %2524 = vmatpush.xpose.msra.mxu0 0.0
        %2525 = vmatpush.xpose.msra.mxu0 0.0
        %2526 = vmatpush.xpose.msra.mxu0 %v2509
        %2527 = vmatmul.f32.gmra.mxu0 %v2503
        %v2528 = vpop.f32.mrf.mxu0
        %v2529 = vadd.f32 0.0, %v2528
        %2530 = vmatmul.f32.gmra.mxu0 %v2506
        %v2531 = vpop.f32.mrf.mxu0
        %v2532 = vadd.f32 0.0, %v2531
        %2533 = vdwg.mxu0
        %v2535 = vsel %vm1341, %v2529, 0
        %v2538 = vsel %vm1341, %v2532, 0
        %2540 = vmatpush.msra.mxu0 0.0
        %2541 = vmatpush.msra.mxu0 0.0
        %2542 = vmatpush.msra.mxu0 0.0
        %2543 = vmatpush.msra.mxu0 0.0
        %2544 = vmatpush.msra.mxu0 0.0
        %2545 = vmatpush.msra.mxu0 0.0
        %2546 = vmatpush.msra.mxu0 0.0
        %2547 = vmatpush.msra.mxu0 0.0
        %2548 = vmatpush.msra.mxu0 0.0
        %2549 = vmatpush.msra.mxu0 0.0
        %2550 = vmatpush.msra.mxu0 0.0
        %2551 = vmatpush.msra.mxu0 0.0
        %2552 = vmatpush.msra.mxu0 0.0
        %2553 = vmatpush.msra.mxu0 0.0
        %2554 = vmatpush.msra.mxu0 0.0
        %2555 = vmatpush.msra.mxu0 %v2220
        %2556 = vmatmul.f32.gmra.mxu0 %v2535
        %v2557 = vpop.f32.mrf.mxu0
        %v2558 = vadd.f32 0.0, %v2557
        %2559 = vmatmul.f32.gmra.mxu0 %v2538
        %v2560 = vpop.f32.mrf.mxu0
        %v2561 = vadd.f32 0.0, %v2560
        %2562 = vdwg.mxu0
        %v2563 = vperm.slane %v970, 0
        %v2564 = vadd.f32 %v2563, %v2558
        %v2565 = vadd.f32 %v2563, %v2561
        %v2567 = vperm.slane %v979, 0
        %2569 = vmatpush.msra.mxu0 0.0
        %2570 = vmatpush.msra.mxu0 0.0
        %2571 = vmatpush.msra.mxu0 0.0
        %2572 = vmatpush.msra.mxu0 0.0
        %2573 = vmatpush.msra.mxu0 0.0
        %2574 = vmatpush.msra.mxu0 0.0
        %2575 = vmatpush.msra.mxu0 0.0
        %2576 = vmatpush.msra.mxu0 0.0
        %2577 = vmatpush.msra.mxu0 0.0
        %2578 = vmatpush.msra.mxu0 0.0
        %2579 = vmatpush.msra.mxu0 0.0
        %2580 = vmatpush.msra.mxu0 0.0
        %2581 = vmatpush.msra.mxu0 %v2203
        %2582 = vmatpush.msra.mxu0 %v2202
        %2583 = vmatpush.msra.mxu0 %v2201
        %2584 = vmatpush.msra.mxu0 %v2200
        %2585 = vmatmul.f32.gmra.mxu0 %v2351
        %v2586 = vpop.f32.mrf.mxu0
        %v2587 = vadd.f32 %v2567, %v2586
        %2588 = vmatmul.f32.gmra.mxu0 %v2354
        %v2589 = vpop.f32.mrf.mxu0
        %v2590 = vadd.f32 %v2567, %v2589
        %2591 = vdwg.mxu0
        %v2593 = vsel %vm1341, %v2587, 0
        %v2596 = vsel %vm1341, %v2590, 0
        %2598 = vmatpush.msra.mxu0 0.0
        %2599 = vmatpush.msra.mxu0 0.0
        %2600 = vmatpush.msra.mxu0 0.0
        %2601 = vmatpush.msra.mxu0 0.0
        %2602 = vmatpush.msra.mxu0 0.0
        %2603 = vmatpush.msra.mxu0 0.0
        %2604 = vmatpush.msra.mxu0 0.0
        %2605 = vmatpush.msra.mxu0 0.0
        %2606 = vmatpush.msra.mxu0 0.0
        %2607 = vmatpush.msra.mxu0 0.0
        %2608 = vmatpush.msra.mxu0 0.0
        %2609 = vmatpush.msra.mxu0 0.0
        %2610 = vmatpush.msra.mxu0 0.0
        %2611 = vmatpush.msra.mxu0 0.0
        %2612 = vmatpush.msra.mxu0 0.0
        %2613 = vmatpush.msra.mxu0 %v2377
        %2614 = vmatmul.f32.gmra.mxu0 %v2593
        %v2615 = vpop.f32.mrf.mxu0
        %v2616 = vadd.f32 0.0, %v2615
        %2617 = vmatmul.f32.gmra.mxu0 %v2596
        %v2618 = vpop.f32.mrf.mxu0
        %v2619 = vadd.f32 0.0, %v2618
        %2620 = vdwg.mxu0
        %v2621 = vmul.f32 %v2616, 0.35355338
        %v2622 = vmul.f32 %v2619, 0.35355338
        %v2623 = vsel %vm1373, %v2621, -inf
        %2624 = vmax.xlane.f32.xlu0 %v2623
        %v2625 = vpop.xlane.xlu0 %2624
        %v2626 = vsel %vm1377, %v2622, -inf
        %2627 = vmax.xlane.f32.xlu0 %v2626
        %v2628 = vpop.xlane.xlu0 %2627
        %v2629 = vsub.f32 %v2621, %v2625
        %v2630 = vsub.f32 %v2622, %v2628
        %v2631 = vmul.f32 %v2629, 1.442695
        %v2632 = vpow.pop %v2631
        %v2633 = vmul.f32 %v2630, 1.442695
        %v2634 = vpow.pop %v2633
        %v2635 = vsel %vm1373, %v2632, 0.0
        %2636 = vadd.xlane.f32.xlu0 %v2635
        %v2637 = vpop.xlane.xlu0 %2636
        %v2638 = vsel %vm1377, %v2634, 0.0
        %2639 = vadd.xlane.f32.xlu0 %v2638
        %v2640 = vpop.xlane.xlu0 %2639
        %v2641 = vrcp.pop %v2637
        %v2642 = vmul.f32 %v2637, %v2641
        %v2643 = vsub.f32 1.0, %v2642
        %v2644 = vmul.f32 %v2641, %v2643
        %v2645 = vadd.f32 %v2641, %v2644
        %vm2646 = vweird.f32 %v2637
        %vm2647 = vweird.f32 %v2641
        %vm2648 = vmor %vm2646, %vm2647
        %v2649 = vsel %vm2648, %v2641, %v2645
        %v2650 = vand.u32 2147483647, %v2637
        %vm2651 = vcmp.eq.f32.partialorder %v2650, 8.507059e+37
        %v2652 = vand.u32 %v2637, 2147483648
        %v2653 = vor.u32 1.1754944e-38, %v2652
        %v2654 = vsel %vm2651, %v2653, %v2649
        %v2655 = vmul.f32 %v2632, %v2654
        %v2656 = vrcp.pop %v2640
        %v2657 = vmul.f32 %v2640, %v2656
        %v2658 = vsub.f32 1.0, %v2657
        %v2659 = vmul.f32 %v2656, %v2658
        %v2660 = vadd.f32 %v2656, %v2659
        %vm2661 = vweird.f32 %v2640
        %vm2662 = vweird.f32 %v2656
        %vm2663 = vmor %vm2661, %vm2662
        %v2664 = vsel %vm2663, %v2656, %v2660
        %v2665 = vand.u32 2147483647, %v2640
        %vm2666 = vcmp.eq.f32.partialorder %v2665, 8.507059e+37
        %v2667 = vand.u32 %v2640, 2147483648
        %v2668 = vor.u32 1.1754944e-38, %v2667
        %v2669 = vsel %vm2666, %v2668, %v2664
        %v2670 = vmul.f32 %v2634, %v2669
        %v2672 = vsel %vm1373, %v2655, 0
        %v2675 = vsel %vm1373, %v2670, 0
        %v2678 = vsel %vm1373, %v2389, 0
        %2680 = vmatpush.xpose.msra.mxu0 0.0
        %2681 = vmatpush.xpose.msra.mxu0 0.0
        %2682 = vmatpush.xpose.msra.mxu0 0.0
        %2683 = vmatpush.xpose.msra.mxu0 0.0
        %2684 = vmatpush.xpose.msra.mxu0 0.0
        %2685 = vmatpush.xpose.msra.mxu0 0.0
        %2686 = vmatpush.xpose.msra.mxu0 0.0
        %2687 = vmatpush.xpose.msra.mxu0 0.0
        %2688 = vmatpush.xpose.msra.mxu0 0.0
        %2689 = vmatpush.xpose.msra.mxu0 0.0
        %2690 = vmatpush.xpose.msra.mxu0 0.0
        %2691 = vmatpush.xpose.msra.mxu0 0.0
        %2692 = vmatpush.xpose.msra.mxu0 0.0
        %2693 = vmatpush.xpose.msra.mxu0 0.0
        %2694 = vmatpush.xpose.msra.mxu0 0.0
        %2695 = vmatpush.xpose.msra.mxu0 %v2678
        %2696 = vmatmul.f32.gmra.mxu0 %v2672
        %v2697 = vpop.f32.mrf.mxu0
        %v2698 = vadd.f32 0.0, %v2697
        %2699 = vmatmul.f32.gmra.mxu0 %v2675
        %v2700 = vpop.f32.mrf.mxu0
        %v2701 = vadd.f32 0.0, %v2700
        %2702 = vdwg.mxu0
        %v2704 = vsel %vm1341, %v2698, 0
        %v2707 = vsel %vm1341, %v2701, 0
        %2709 = vmatpush.msra.mxu0 0.0
        %2710 = vmatpush.msra.mxu0 0.0
        %2711 = vmatpush.msra.mxu0 0.0
        %2712 = vmatpush.msra.mxu0 0.0
        %2713 = vmatpush.msra.mxu0 0.0
        %2714 = vmatpush.msra.mxu0 0.0
        %2715 = vmatpush.msra.mxu0 0.0
        %2716 = vmatpush.msra.mxu0 0.0
        %2717 = vmatpush.msra.mxu0 0.0
        %2718 = vmatpush.msra.mxu0 0.0
        %2719 = vmatpush.msra.mxu0 0.0
        %2720 = vmatpush.msra.mxu0 0.0
        %2721 = vmatpush.msra.mxu0 0.0
        %2722 = vmatpush.msra.mxu0 0.0
        %2723 = vmatpush.msra.mxu0 0.0
        %2724 = vmatpush.msra.mxu0 %v2221
        %2725 = vmatmul.f32.gmra.mxu0 %v2704
        %v2726 = vpop.f32.mrf.mxu0
        %v2727 = vadd.f32 0.0, %v2726
        %2728 = vmatmul.f32.gmra.mxu0 %v2707
        %v2729 = vpop.f32.mrf.mxu0
        %v2730 = vadd.f32 0.0, %v2729
        %2731 = vdwg.mxu0
        %v2732 = vadd.f32 %v2564, %v2727
        %v2733 = vadd.f32 %v2565, %v2730
        %v2735 = vperm.slane %v980, 0
        %2737 = vmatpush.msra.mxu0 0.0
        %2738 = vmatpush.msra.mxu0 0.0
        %2739 = vmatpush.msra.mxu0 0.0
        %2740 = vmatpush.msra.mxu0 0.0
        %2741 = vmatpush.msra.mxu0 0.0
        %2742 = vmatpush.msra.mxu0 0.0
        %2743 = vmatpush.msra.mxu0 0.0
        %2744 = vmatpush.msra.mxu0 0.0
        %2745 = vmatpush.msra.mxu0 0.0
        %2746 = vmatpush.msra.mxu0 0.0
        %2747 = vmatpush.msra.mxu0 0.0
        %2748 = vmatpush.msra.mxu0 0.0
        %2749 = vmatpush.msra.mxu0 %v2207
        %2750 = vmatpush.msra.mxu0 %v2206
        %2751 = vmatpush.msra.mxu0 %v2205
        %2752 = vmatpush.msra.mxu0 %v2204
        %2753 = vmatmul.f32.gmra.mxu0 %v2351
        %v2754 = vpop.f32.mrf.mxu0
        %v2755 = vadd.f32 %v2735, %v2754
        %2756 = vmatmul.f32.gmra.mxu0 %v2354
        %v2757 = vpop.f32.mrf.mxu0
        %v2758 = vadd.f32 %v2735, %v2757
        %2759 = vdwg.mxu0
        %v2761 = vsel %vm1341, %v2755, 0
        %v2764 = vsel %vm1341, %v2758, 0
        %2766 = vmatpush.msra.mxu0 0.0
        %2767 = vmatpush.msra.mxu0 0.0
        %2768 = vmatpush.msra.mxu0 0.0
        %2769 = vmatpush.msra.mxu0 0.0
        %2770 = vmatpush.msra.mxu0 0.0
        %2771 = vmatpush.msra.mxu0 0.0
        %2772 = vmatpush.msra.mxu0 0.0
        %2773 = vmatpush.msra.mxu0 0.0
        %2774 = vmatpush.msra.mxu0 0.0
        %2775 = vmatpush.msra.mxu0 0.0
        %2776 = vmatpush.msra.mxu0 0.0
        %2777 = vmatpush.msra.mxu0 0.0
        %2778 = vmatpush.msra.mxu0 0.0
        %2779 = vmatpush.msra.mxu0 0.0
        %2780 = vmatpush.msra.mxu0 0.0
        %2781 = vmatpush.msra.mxu0 %v2380
        %2782 = vmatmul.f32.gmra.mxu0 %v2761
        %v2783 = vpop.f32.mrf.mxu0
        %v2784 = vadd.f32 0.0, %v2783
        %2785 = vmatmul.f32.gmra.mxu0 %v2764
        %v2786 = vpop.f32.mrf.mxu0
        %v2787 = vadd.f32 0.0, %v2786
        %2788 = vdwg.mxu0
        %v2789 = vmul.f32 %v2784, 0.35355338
        %v2790 = vmul.f32 %v2787, 0.35355338
        %v2791 = vsel %vm1373, %v2789, -inf
        %2792 = vmax.xlane.f32.xlu0 %v2791
        %v2793 = vpop.xlane.xlu0 %2792
        %v2794 = vsel %vm1377, %v2790, -inf
        %2795 = vmax.xlane.f32.xlu0 %v2794
        %v2796 = vpop.xlane.xlu0 %2795
        %v2797 = vsub.f32 %v2789, %v2793
        %v2798 = vsub.f32 %v2790, %v2796
        %v2799 = vmul.f32 %v2797, 1.442695
        %v2800 = vpow.pop %v2799
        %v2801 = vmul.f32 %v2798, 1.442695
        %v2802 = vpow.pop %v2801
        %v2803 = vsel %vm1373, %v2800, 0.0
        %2804 = vadd.xlane.f32.xlu0 %v2803
        %v2805 = vpop.xlane.xlu0 %2804
        %v2806 = vsel %vm1377, %v2802, 0.0
        %2807 = vadd.xlane.f32.xlu0 %v2806
        %v2808 = vpop.xlane.xlu0 %2807
        %v2809 = vrcp.pop %v2805
        %v2810 = vmul.f32 %v2805, %v2809
        %v2811 = vsub.f32 1.0, %v2810
        %v2812 = vmul.f32 %v2809, %v2811
        %v2813 = vadd.f32 %v2809, %v2812
        %vm2814 = vweird.f32 %v2805
        %vm2815 = vweird.f32 %v2809
        %vm2816 = vmor %vm2814, %vm2815
        %v2817 = vsel %vm2816, %v2809, %v2813
        %v2818 = vand.u32 2147483647, %v2805
        %vm2819 = vcmp.eq.f32.partialorder %v2818, 8.507059e+37
        %v2820 = vand.u32 %v2805, 2147483648
        %v2821 = vor.u32 1.1754944e-38, %v2820
        %v2822 = vsel %vm2819, %v2821, %v2817
        %v2823 = vmul.f32 %v2800, %v2822
        %v2824 = vrcp.pop %v2808
        %v2825 = vmul.f32 %v2808, %v2824
        %v2826 = vsub.f32 1.0, %v2825
        %v2827 = vmul.f32 %v2824, %v2826
        %v2828 = vadd.f32 %v2824, %v2827
        %vm2829 = vweird.f32 %v2808
        %vm2830 = vweird.f32 %v2824
        %vm2831 = vmor %vm2829, %vm2830
        %v2832 = vsel %vm2831, %v2824, %v2828
        %v2833 = vand.u32 2147483647, %v2808
        %vm2834 = vcmp.eq.f32.partialorder %v2833, 8.507059e+37
        %v2835 = vand.u32 %v2808, 2147483648
        %v2836 = vor.u32 1.1754944e-38, %v2835
        %v2837 = vsel %vm2834, %v2836, %v2832
        %v2838 = vmul.f32 %v2802, %v2837
        %v2840 = vsel %vm1373, %v2823, 0
        %v2843 = vsel %vm1373, %v2838, 0
        %v2846 = vsel %vm1373, %v2392, 0
        %2848 = vmatpush.xpose.msra.mxu0 0.0
        %2849 = vmatpush.xpose.msra.mxu0 0.0
        %2850 = vmatpush.xpose.msra.mxu0 0.0
        %2851 = vmatpush.xpose.msra.mxu0 0.0
        %2852 = vmatpush.xpose.msra.mxu0 0.0
        %2853 = vmatpush.xpose.msra.mxu0 0.0
        %2854 = vmatpush.xpose.msra.mxu0 0.0
        %2855 = vmatpush.xpose.msra.mxu0 0.0
        %2856 = vmatpush.xpose.msra.mxu0 0.0
        %2857 = vmatpush.xpose.msra.mxu0 0.0
        %2858 = vmatpush.xpose.msra.mxu0 0.0
        %2859 = vmatpush.xpose.msra.mxu0 0.0
        %2860 = vmatpush.xpose.msra.mxu0 0.0
        %2861 = vmatpush.xpose.msra.mxu0 0.0
        %2862 = vmatpush.xpose.msra.mxu0 0.0
        %2863 = vmatpush.xpose.msra.mxu0 %v2846
        %2864 = vmatmul.f32.gmra.mxu0 %v2840
        %v2865 = vpop.f32.mrf.mxu0
        %v2866 = vadd.f32 0.0, %v2865
        %2867 = vmatmul.f32.gmra.mxu0 %v2843
        %v2868 = vpop.f32.mrf.mxu0
        %v2869 = vadd.f32 0.0, %v2868
        %2870 = vdwg.mxu0
        %v2872 = vsel %vm1341, %v2866, 0
        %v2875 = vsel %vm1341, %v2869, 0
        %2877 = vmatpush.msra.mxu0 0.0
        %2878 = vmatpush.msra.mxu0 0.0
        %2879 = vmatpush.msra.mxu0 0.0
        %2880 = vmatpush.msra.mxu0 0.0
        %2881 = vmatpush.msra.mxu0 0.0
        %2882 = vmatpush.msra.mxu0 0.0
        %2883 = vmatpush.msra.mxu0 0.0
        %2884 = vmatpush.msra.mxu0 0.0
        %2885 = vmatpush.msra.mxu0 0.0
        %2886 = vmatpush.msra.mxu0 0.0
        %2887 = vmatpush.msra.mxu0 0.0
        %2888 = vmatpush.msra.mxu0 0.0
        %2889 = vmatpush.msra.mxu0 0.0
        %2890 = vmatpush.msra.mxu0 0.0
        %2891 = vmatpush.msra.mxu0 0.0
        %2892 = vmatpush.msra.mxu0 %v2222
        %2893 = vmatmul.f32.gmra.mxu0 %v2872
        %v2894 = vpop.f32.mrf.mxu0
        %v2895 = vadd.f32 0.0, %v2894
        %2896 = vmatmul.f32.gmra.mxu0 %v2875
        %v2897 = vpop.f32.mrf.mxu0
        %v2898 = vadd.f32 0.0, %v2897
        %2899 = vdwg.mxu0
        %v2900 = vadd.f32 %v2732, %v2895
        %v2901 = vadd.f32 %v2733, %v2898
        %v2903 = vperm.slane %v981, 0
        %2905 = vmatpush.msra.mxu0 0.0
        %2906 = vmatpush.msra.mxu0 0.0
        %2907 = vmatpush.msra.mxu0 0.0
        %2908 = vmatpush.msra.mxu0 0.0
        %2909 = vmatpush.msra.mxu0 0.0
        %2910 = vmatpush.msra.mxu0 0.0
        %2911 = vmatpush.msra.mxu0 0.0
        %2912 = vmatpush.msra.mxu0 0.0
        %2913 = vmatpush.msra.mxu0 0.0
        %2914 = vmatpush.msra.mxu0 0.0
        %2915 = vmatpush.msra.mxu0 0.0
        %2916 = vmatpush.msra.mxu0 0.0
        %2917 = vmatpush.msra.mxu0 %v2211
        %2918 = vmatpush.msra.mxu0 %v2210
        %2919 = vmatpush.msra.mxu0 %v2209
        %2920 = vmatpush.msra.mxu0 %v2208
        %2921 = vmatmul.f32.gmra.mxu0 %v2351
        %v2922 = vpop.f32.mrf.mxu0
        %v2923 = vadd.f32 %v2903, %v2922
        %2924 = vmatmul.f32.gmra.mxu0 %v2354
        %v2925 = vpop.f32.mrf.mxu0
        %v2926 = vadd.f32 %v2903, %v2925
        %2927 = vdwg.mxu0
        %v2929 = vsel %vm1341, %v2923, 0
        %v2932 = vsel %vm1341, %v2926, 0
        %2934 = vmatpush.msra.mxu0 0.0
        %2935 = vmatpush.msra.mxu0 0.0
        %2936 = vmatpush.msra.mxu0 0.0
        %2937 = vmatpush.msra.mxu0 0.0
        %2938 = vmatpush.msra.mxu0 0.0
        %2939 = vmatpush.msra.mxu0 0.0
        %2940 = vmatpush.msra.mxu0 0.0
        %2941 = vmatpush.msra.mxu0 0.0
        %2942 = vmatpush.msra.mxu0 0.0
        %2943 = vmatpush.msra.mxu0 0.0
        %2944 = vmatpush.msra.mxu0 0.0
        %2945 = vmatpush.msra.mxu0 0.0
        %2946 = vmatpush.msra.mxu0 0.0
        %2947 = vmatpush.msra.mxu0 0.0
        %2948 = vmatpush.msra.mxu0 0.0
        %2949 = vmatpush.msra.mxu0 %v2383
        %2950 = vmatmul.f32.gmra.mxu0 %v2929
        %v2951 = vpop.f32.mrf.mxu0
        %v2952 = vadd.f32 0.0, %v2951
        %2953 = vmatmul.f32.gmra.mxu0 %v2932
        %v2954 = vpop.f32.mrf.mxu0
        %v2955 = vadd.f32 0.0, %v2954
        %2956 = vdwg.mxu0
        %v2957 = vmul.f32 %v2952, 0.35355338
        %v2958 = vmul.f32 %v2955, 0.35355338
        %v2959 = vsel %vm1373, %v2957, -inf
        %2960 = vmax.xlane.f32.xlu0 %v2959
        %v2961 = vpop.xlane.xlu0 %2960
        %v2962 = vsel %vm1377, %v2958, -inf
        %2963 = vmax.xlane.f32.xlu0 %v2962
        %v2964 = vpop.xlane.xlu0 %2963
        %v2965 = vsub.f32 %v2957, %v2961
        %v2966 = vsub.f32 %v2958, %v2964
        %v2967 = vmul.f32 %v2965, 1.442695
        %v2968 = vpow.pop %v2967
        %v2969 = vmul.f32 %v2966, 1.442695
        %v2970 = vpow.pop %v2969
        %v2971 = vsel %vm1373, %v2968, 0.0
        %2972 = vadd.xlane.f32.xlu0 %v2971
        %v2973 = vpop.xlane.xlu0 %2972
        %v2974 = vsel %vm1377, %v2970, 0.0
        %2975 = vadd.xlane.f32.xlu0 %v2974
        %v2976 = vpop.xlane.xlu0 %2975
        %v2977 = vrcp.pop %v2973
        %v2978 = vmul.f32 %v2973, %v2977
        %v2979 = vsub.f32 1.0, %v2978
        %v2980 = vmul.f32 %v2977, %v2979
        %v2981 = vadd.f32 %v2977, %v2980
        %vm2982 = vweird.f32 %v2973
        %vm2983 = vweird.f32 %v2977
        %vm2984 = vmor %vm2982, %vm2983
        %v2985 = vsel %vm2984, %v2977, %v2981
        %v2986 = vand.u32 2147483647, %v2973
        %vm2987 = vcmp.eq.f32.partialorder %v2986, 8.507059e+37
        %v2988 = vand.u32 %v2973, 2147483648
        %v2989 = vor.u32 1.1754944e-38, %v2988
        %v2990 = vsel %vm2987, %v2989, %v2985
        %v2991 = vmul.f32 %v2968, %v2990
        %v2992 = vrcp.pop %v2976
        %v2993 = vmul.f32 %v2976, %v2992
        %v2994 = vsub.f32 1.0, %v2993
        %v2995 = vmul.f32 %v2992, %v2994
        %v2996 = vadd.f32 %v2992, %v2995
        %vm2997 = vweird.f32 %v2976
        %vm2998 = vweird.f32 %v2992
        %vm2999 = vmor %vm2997, %vm2998
        %v3000 = vsel %vm2999, %v2992, %v2996
        %v3001 = vand.u32 2147483647, %v2976
        %vm3002 = vcmp.eq.f32.partialorder %v3001, 8.507059e+37
        %v3003 = vand.u32 %v2976, 2147483648
        %v3004 = vor.u32 1.1754944e-38, %v3003
        %v3005 = vsel %vm3002, %v3004, %v3000
        %v3006 = vmul.f32 %v2970, %v3005
        %v3008 = vsel %vm1373, %v2991, 0
        %v3011 = vsel %vm1373, %v3006, 0
        %v3014 = vsel %vm1373, %v2395, 0
        %3016 = vmatpush.xpose.msra.mxu0 0.0
        %3017 = vmatpush.xpose.msra.mxu0 0.0
        %3018 = vmatpush.xpose.msra.mxu0 0.0
        %3019 = vmatpush.xpose.msra.mxu0 0.0
        %3020 = vmatpush.xpose.msra.mxu0 0.0
        %3021 = vmatpush.xpose.msra.mxu0 0.0
        %3022 = vmatpush.xpose.msra.mxu0 0.0
        %3023 = vmatpush.xpose.msra.mxu0 0.0
        %3024 = vmatpush.xpose.msra.mxu0 0.0
        %3025 = vmatpush.xpose.msra.mxu0 0.0
        %3026 = vmatpush.xpose.msra.mxu0 0.0
        %3027 = vmatpush.xpose.msra.mxu0 0.0
        %3028 = vmatpush.xpose.msra.mxu0 0.0
        %3029 = vmatpush.xpose.msra.mxu0 0.0
        %3030 = vmatpush.xpose.msra.mxu0 0.0
        %3031 = vmatpush.xpose.msra.mxu0 %v3014
        %3032 = vmatmul.f32.gmra.mxu0 %v3008
        %v3033 = vpop.f32.mrf.mxu0
        %v3034 = vadd.f32 0.0, %v3033
        %3035 = vmatmul.f32.gmra.mxu0 %v3011
        %v3036 = vpop.f32.mrf.mxu0
        %v3037 = vadd.f32 0.0, %v3036
        %3038 = vdwg.mxu0
        %v3040 = vsel %vm1341, %v3034, 0
        %v3043 = vsel %vm1341, %v3037, 0
        %3045 = vmatpush.msra.mxu0 0.0
        %3046 = vmatpush.msra.mxu0 0.0
        %3047 = vmatpush.msra.mxu0 0.0
        %3048 = vmatpush.msra.mxu0 0.0
        %3049 = vmatpush.msra.mxu0 0.0
        %3050 = vmatpush.msra.mxu0 0.0
        %3051 = vmatpush.msra.mxu0 0.0
        %3052 = vmatpush.msra.mxu0 0.0
        %3053 = vmatpush.msra.mxu0 0.0
        %3054 = vmatpush.msra.mxu0 0.0
        %3055 = vmatpush.msra.mxu0 0.0
        %3056 = vmatpush.msra.mxu0 0.0
        %3057 = vmatpush.msra.mxu0 0.0
        %3058 = vmatpush.msra.mxu0 0.0
        %3059 = vmatpush.msra.mxu0 0.0
        %3060 = vmatpush.msra.mxu0 %v2223
        %3061 = vmatmul.f32.gmra.mxu0 %v3040
        %v3062 = vpop.f32.mrf.mxu0
        %v3063 = vadd.f32 0.0, %v3062
        %3064 = vmatmul.f32.gmra.mxu0 %v3043
        %v3065 = vpop.f32.mrf.mxu0
        %v3066 = vadd.f32 0.0, %v3065
        %3067 = vdwg.mxu0
        %v3068 = vadd.f32 %v2900, %v3063
        %v3069 = vadd.f32 %v2901, %v3066
        %v3070 = vadd.f32 %v2194, %v3068
        %v3071 = vadd.f32 %v2195, %v3069
        %v3072 = vsel %vm1145, %v3070, 0.0
        %3073 = vadd.xlane.f32.xlu0 %v3072
        %v3074 = vpop.xlane.xlu0 %3073
        %v3075 = vsel %vm1149, %v3071, 0.0
        %3076 = vadd.xlane.f32.xlu0 %v3075
        %v3077 = vpop.xlane.xlu0 %3076
        %v3078 = vmul.f32 %v3074, %v1159
        %v3079 = vmul.f32 %v3077, %v1159
        %v3080 = vsub.f32 %v3070, %v3078
        %v3081 = vsub.f32 %v3071, %v3079
        %v3082 = vmul.f32 %v3080, %v3080
        %v3083 = vmul.f32 %v3081, %v3081
        %v3084 = vsel %vm1145, %v3082, 0.0
        %3085 = vadd.xlane.f32.xlu0 %v3084
        %v3086 = vpop.xlane.xlu0 %3085
        %v3087 = vsel %vm1149, %v3083, 0.0
        %3088 = vadd.xlane.f32.xlu0 %v3087
        %v3089 = vpop.xlane.xlu0 %3088
        %v3090 = vmul.f32 %v3086, %v1159
        %v3091 = vmul.f32 %v3089, %v1159
        %v3092 = vadd.f32 %v3090, 1e-12
        %v3093 = vadd.f32 %v3091, 1e-12
        %v3094 = vrsqrt.pop %v3092
        %v3095 = vmul.f32 %v3094, %v3092
        %v3096 = vmul.f32 %v3095, %v3094
        %v3097 = vmul.f32 0.5, %v3096
        %v3098 = vsub.f32 1.5, %v3097
        %v3099 = vmul.f32 %v3094, %v3098
        %vm3100 = vweird.f32 %v3092
        %vm3101 = vweird.f32 %v3094
        %vm3102 = vmor %vm3100, %vm3101
        %v3103 = vsel %vm3102, %v3094, %v3099
        %v3104 = vrsqrt.pop %v3093
        %v3105 = vmul.f32 %v3104, %v3093
        %v3106 = vmul.f32 %v3105, %v3104
        %v3107 = vmul.f32 0.5, %v3106
        %v3108 = vsub.f32 1.5, %v3107
        %v3109 = vmul.f32 %v3104, %v3108
        %vm3110 = vweird.f32 %v3093
        %vm3111 = vweird.f32 %v3104
        %vm3112 = vmor %vm3110, %vm3111
        %v3113 = vsel %vm3112, %v3104, %v3109
        %v3114 = vmul.f32 %v3080, %v3103
        %v3115 = vmul.f32 %v3081, %v3113
        %v3116 = vperm.slane %v970, 1
        %v3117 = vmul.f32 %v3114, %v3116
        %v3118 = vmul.f32 %v3115, %v3116
        %v3119 = vperm.slane %v970, 2
        %v3120 = vadd.f32 %v3117, %v3119
        %v3121 = vadd.f32 %v3118, %v3119
        %v3122 = vperm.slane %v973, 1
        %v3124 = vsel %vm1145, %v3120, 0
        %v3127 = vsel %vm1145, %v3121, 0
        %3129 = vmatpush.msra.mxu0 0.0
        %3130 = vmatpush.msra.mxu0 0.0
        %3131 = vmatpush.msra.mxu0 0.0
        %3132 = vmatpush.msra.mxu0 0.0
        %3133 = vmatpush.msra.mxu0 0.0
        %3134 = vmatpush.msra.mxu0 0.0
        %3135 = vmatpush.msra.mxu0 0.0
        %3136 = vmatpush.msra.mxu0 0.0
        %3137 = vmatpush.msra.mxu0 0.0
        %3138 = vmatpush.msra.mxu0 0.0
        %3139 = vmatpush.msra.mxu0 0.0
        %3140 = vmatpush.msra.mxu0 0.0
        %3141 = vmatpush.msra.mxu0 %v2227
        %3142 = vmatpush.msra.mxu0 %v2226
        %3143 = vmatpush.msra.mxu0 %v2225
        %3144 = vmatpush.msra.mxu0 %v2224
        %3145 = vmatmul.f32.gmra.mxu0 %v3124
        %v3146 = vpop.f32.mrf.mxu0
        %v3147 = vadd.f32 %v3122, %v3146
        %3148 = vmatmul.f32.gmra.mxu0 %v3127
        %v3149 = vpop.f32.mrf.mxu0
        %v3150 = vadd.f32 %v3122, %v3149
        %3151 = vdwg.mxu0
        %v3152 = vmul.f32 %v3147, 0.5
        %v3153 = vmul.f32 %v3150, 0.5
        %v3154 = vmul.f32 %v3147, 0.70710677
        %v3155 = vmul.f32 %v3150, 0.70710677
        %v3156 = vmul.f32 %v3154, %v3154
        %v3157 = vmin.f32 16.0, %v3156
        %v3158 = vmul.f32 %v3157, 2.1237322e-06
        %v3159 = vadd.f32 %v3158, 0.00028619796
        %v3160 = vmul.f32 %v3157, %v3159
        %v3161 = vadd.f32 %v3160, 0.0036580483
        %v3162 = vmul.f32 %v3157, %v3161
        %v3163 = vadd.f32 %v3162, 0.05243302
        %v3164 = vmul.f32 %v3157, %v3163
        %v3165 = vadd.f32 %v3164, 0.18741608
        %v3166 = vmul.f32 %v3157, %v3165
        %v3167 = vadd.f32 %v3166, 1.1283791
        %v3168 = vmul.f32 %v3154, %v3167
        %v3169 = vmul.f32 %v3157, 3.8918573e-05
        %v3170 = vadd.f32 %v3169, 0.001143296
        %v3171 = vmul.f32 %v3157, %v3170
        %v3172 = vadd.f32 %v3171, 0.014752088
        %v3173 = vmul.f32 %v3157, %v3172
        %v3174 = vadd.f32 %v3173, 0.112945676
        %v3175 = vmul.f32 %v3157, %v3174
        %v3176 = vadd.f32 %v3175, 0.4994258
        %v3177 = vmul.f32 %v3157, %v3176
        %v3178 = vadd.f32 %v3177, 1.0
        %v3179 = vrcp.pop %v3178
        %v3180 = vmul.f32 %v3178, %v3179
        %v3181 = vsub.f32 1.0, %v3180
        %v3182 = vmul.f32 %v3179, %v3181
        %v3183 = vadd.f32 %v3179, %v3182
        %vm3184 = vweird.f32 %v3178
        %vm3185 = vweird.f32 %v3179
        %vm3186 = vmor %vm3184, %vm3185
        %v3187 = vsel %vm3186, %v3179, %v3183
        %v3188 = vand.u32 2147483647, %v3178
        %vm3189 = vcmp.eq.f32.partialorder %v3188, 8.507059e+37
        %v3190 = vand.u32 %v3178, 2147483648
        %v3191 = vor.u32 1.1754944e-38, %v3190
        %v3192 = vsel %vm3189, %v3191, %v3187
        %v3193 = vmul.f32 %v3168, %v3192
        %v3194 = vmin.f32 %v3193, 1.0
        %v3195 = vmax.f32 %v3194, -1.0
        %v3196 = vmul.f32 %v3155, %v3155
        %v3197 = vmin.f32 16.0, %v3196
        %v3198 = vmul.f32 %v3197, 2.1237322e-06
        %v3199 = vadd.f32 %v3198, 0.00028619796
        %v3200 = vmul.f32 %v3197, %v3199
        %v3201 = vadd.f32 %v3200, 0.0036580483
        %v3202 = vmul.f32 %v3197, %v3201
        %v3203 = vadd.f32 %v3202, 0.05243302
        %v3204 = vmul.f32 %v3197, %v3203
        %v3205 = vadd.f32 %v3204, 0.18741608
        %v3206 = vmul.f32 %v3197, %v3205
        %v3207 = vadd.f32 %v3206, 1.1283791
        %v3208 = vmul.f32 %v3155, %v3207
        %v3209 = vmul.f32 %v3197, 3.8918573e-05
        %v3210 = vadd.f32 %v3209, 0.001143296
        %v3211 = vmul.f32 %v3197, %v3210
        %v3212 = vadd.f32 %v3211, 0.014752088
        %v3213 = vmul.f32 %v3197, %v3212
        %v3214 = vadd.f32 %v3213, 0.112945676
        %v3215 = vmul.f32 %v3197, %v3214
        %v3216 = vadd.f32 %v3215, 0.4994258
        %v3217 = vmul.f32 %v3197, %v3216
        %v3218 = vadd.f32 %v3217, 1.0
        %v3219 = vrcp.pop %v3218
        %v3220 = vmul.f32 %v3218, %v3219
        %v3221 = vsub.f32 1.0, %v3220
        %v3222 = vmul.f32 %v3219, %v3221
        %v3223 = vadd.f32 %v3219, %v3222
        %vm3224 = vweird.f32 %v3218
        %vm3225 = vweird.f32 %v3219
        %vm3226 = vmor %vm3224, %vm3225
        %v3227 = vsel %vm3226, %v3219, %v3223
        %v3228 = vand.u32 2147483647, %v3218
        %vm3229 = vcmp.eq.f32.partialorder %v3228, 8.507059e+37
        %v3230 = vand.u32 %v3218, 2147483648
        %v3231 = vor.u32 1.1754944e-38, %v3230
        %v3232 = vsel %vm3229, %v3231, %v3227
        %v3233 = vmul.f32 %v3208, %v3232
        %v3234 = vmin.f32 %v3233, 1.0
        %v3235 = vmax.f32 %v3234, -1.0
        %v3236 = vadd.f32 %v3195, 1.0
        %v3237 = vadd.f32 %v3235, 1.0
        %v3238 = vmul.f32 %v3152, %v3236
        %v3239 = vmul.f32 %v3153, %v3237
        %v3241 = vsel %vm2161, %v3238, 0
        %v3244 = vsel %vm2161, %v3239, 0
        %3246 = vmatpush.msra.mxu0 0.0
        %3247 = vmatpush.msra.mxu0 0.0
        %3248 = vmatpush.msra.mxu0 0.0
        %3249 = vmatpush.msra.mxu0 0.0
        %3250 = vmatpush.msra.mxu0 0.0
        %3251 = vmatpush.msra.mxu0 0.0
        %3252 = vmatpush.msra.mxu0 0.0
        %3253 = vmatpush.msra.mxu0 0.0
        %3254 = vmatpush.msra.mxu0 %v2235
        %3255 = vmatpush.msra.mxu0 %v2234
        %3256 = vmatpush.msra.mxu0 %v2233
        %3257 = vmatpush.msra.mxu0 %v2232
        %3258 = vmatpush.msra.mxu0 %v2231
        %3259 = vmatpush.msra.mxu0 %v2230
        %3260 = vmatpush.msra.mxu0 %v2229
        %3261 = vmatpush.msra.mxu0 %v2228
        %3262 = vmatmul.f32.gmra.mxu0 %v3241
        %v3263 = vpop.f32.mrf.mxu0
        %v3264 = vadd.f32 0.0, %v3263
        %3265 = vmatmul.f32.gmra.mxu0 %v3244
        %v3266 = vpop.f32.mrf.mxu0
        %v3267 = vadd.f32 0.0, %v3266
        %3268 = vdwg.mxu0
        %v3269 = vadd.f32 %v3070, %v3264
        %v3270 = vadd.f32 %v3071, %v3267
        %v3271 = vperm.slane %v970, 3
        %v3272 = vadd.f32 %v3269, %v3271
        %v3273 = vadd.f32 %v3270, %v3271
        %v3274 = vsel %vm1145, %v3272, 0.0
        %3275 = vadd.xlane.f32.xlu0 %v3274
        %v3276 = vpop.xlane.xlu0 %3275
        %v3277 = vsel %vm1149, %v3273, 0.0
        %3278 = vadd.xlane.f32.xlu0 %v3277
        %v3279 = vpop.xlane.xlu0 %3278
        %v3280 = vmul.f32 %v3276, %v1159
        %v3281 = vmul.f32 %v3279, %v1159
        %v3282 = vsub.f32 %v3272, %v3280
        %v3283 = vsub.f32 %v3273, %v3281
        %v3284 = vmul.f32 %v3282, %v3282
        %v3285 = vmul.f32 %v3283, %v3283
        %v3286 = vsel %vm1145, %v3284, 0.0
        %3287 = vadd.xlane.f32.xlu0 %v3286
        %v3288 = vpop.xlane.xlu0 %3287
        %v3289 = vsel %vm1149, %v3285, 0.0
        %3290 = vadd.xlane.f32.xlu0 %v3289
        %v3291 = vpop.xlane.xlu0 %3290
        %v3292 = vmul.f32 %v3288, %v1159
        %v3293 = vmul.f32 %v3291, %v1159
        %v3294 = vadd.f32 %v3292, 1e-12
        %v3295 = vadd.f32 %v3293, 1e-12
        %v3296 = vrsqrt.pop %v3294
        %v3297 = vmul.f32 %v3296, %v3294
        %v3298 = vmul.f32 %v3297, %v3296
        %v3299 = vmul.f32 0.5, %v3298
        %v3300 = vsub.f32 1.5, %v3299
        %v3301 = vmul.f32 %v3296, %v3300
        %vm3302 = vweird.f32 %v3294
        %vm3303 = vweird.f32 %v3296
        %vm3304 = vmor %vm3302, %vm3303
        %v3305 = vsel %vm3304, %v3296, %v3301
        %v3306 = vrsqrt.pop %v3295
        %v3307 = vmul.f32 %v3306, %v3295
        %v3308 = vmul.f32 %v3307, %v3306
        %v3309 = vmul.f32 0.5, %v3308
        %v3310 = vsub.f32 1.5, %v3309
        %v3311 = vmul.f32 %v3306, %v3310
        %vm3312 = vweird.f32 %v3295
        %vm3313 = vweird.f32 %v3306
        %vm3314 = vmor %vm3312, %vm3313
        %v3315 = vsel %vm3314, %v3306, %v3311
        %v3316 = vmul.f32 %v3282, %v3305
        %v3317 = vmul.f32 %v3283, %v3315
        %v3318 = vperm.slane %v970, 4
        %v3319 = vmul.f32 %v3316, %v3318
        %v3320 = vmul.f32 %v3317, %v3318
        %v3321 = vperm.slane %v970, 5
        %v3322 = vadd.f32 %v3319, %v3321
        %v3323 = vadd.f32 %v3320, %v3321
        %v3324 = vld [vmem:[%s27] sm:$0xff]
        %v3325 = vld [vmem:[%s27 + $0x8] sm:$0xff]
        %v3326 = vld [vmem:[%s27 + $0x10] sm:$0xff]
        %v3327 = vld [vmem:[%s27 + $0x18] sm:$0xff]
        %v3328 = vld [vmem:[%s57] sm:$0x1]
        %v3330 = vsel %vm1145, %v3322, 0
        %3332 = vmatpush.msra.mxu0 0.0
        %3333 = vmatpush.msra.mxu0 0.0
        %3334 = vmatpush.msra.mxu0 0.0
        %3335 = vmatpush.msra.mxu0 0.0
        %3336 = vmatpush.msra.mxu0 0.0
        %3337 = vmatpush.msra.mxu0 0.0
        %3338 = vmatpush.msra.mxu0 0.0
        %3339 = vmatpush.msra.mxu0 0.0
        %3340 = vmatpush.msra.mxu0 0.0
        %3341 = vmatpush.msra.mxu0 0.0
        %3342 = vmatpush.msra.mxu0 0.0
        %3343 = vmatpush.msra.mxu0 0.0
        %3344 = vmatpush.msra.mxu0 %v3327
        %3345 = vmatpush.msra.mxu0 %v3326
        %3346 = vmatpush.msra.mxu0 %v3325
        %3347 = vmatpush.msra.mxu0 %v3324
        %3348 = vmatmul.f32.gmra.mxu0 %v3330
        %v3349 = vpop.f32.mrf.mxu0
        %v3350 = vadd.f32 %v3328, %v3349
        %3351 = vdwg.mxu0
        %vm3352 = vcmask 57344
        %3353 = vst.msk [vmem:[%s958] sm:$0x1] %vm3352, %v3350
        %v3354 = vld [vmem:[%s29] sm:$0xff]
        %v3356 = vrot.slane %v970, 6
        %v3359 = vsel %vm1341, %v3350, 0
        %3361 = vmatpush.msra.mxu0 0.0
        %3362 = vmatpush.msra.mxu0 0.0
        %3363 = vmatpush.msra.mxu0 0.0
        %3364 = vmatpush.msra.mxu0 0.0
        %3365 = vmatpush.msra.mxu0 0.0
        %3366 = vmatpush.msra.mxu0 0.0
        %3367 = vmatpush.msra.mxu0 0.0
        %3368 = vmatpush.msra.mxu0 0.0
        %3369 = vmatpush.msra.mxu0 0.0
        %3370 = vmatpush.msra.mxu0 0.0
        %3371 = vmatpush.msra.mxu0 0.0
        %3372 = vmatpush.msra.mxu0 0.0
        %3373 = vmatpush.msra.mxu0 0.0
        %3374 = vmatpush.msra.mxu0 0.0
        %3375 = vmatpush.msra.mxu0 0.0
        %3376 = vmatpush.msra.mxu0 %v3354
        %3377 = vmatmul.f32.gmra.mxu0 %v3359
        %v3378 = vpop.f32.mrf.mxu0
        %v3379 = vadd.f32 %v3356, %v3378
        %3380 = vdwg.mxu0
        %v3381 = vld [vmem:[%s31] sm:$0xff]
        %v3382 = vld [vmem:[%s31 + $0x8] sm:$0xff]
        %v3383 = vld [vmem:[%s31 + $0x10] sm:$0xff]
        %v3384 = vld [vmem:[%s31 + $0x18] sm:$0xff]
        %v3385 = vld [vmem:[%s31 + $0x20] sm:$0xff]
        %v3386 = vld [vmem:[%s31 + $0x28] sm:$0xff]
        %v3387 = vld [vmem:[%s31 + $0x30] sm:$0xff]
        %v3388 = vld [vmem:[%s31 + $0x38] sm:$0xff]
        %v3389 = vld [vmem:[%s31 + $0x40] sm:$0xff]
        %v3390 = vld [vmem:[%s31 + $0x48] sm:$0xff]
        %v3391 = vld [vmem:[%s31 + $0x50] sm:$0xff]
        %v3392 = vld [vmem:[%s31 + $0x58] sm:$0xff]
        %v3393 = vld [vmem:[%s31 + $0x60] sm:$0xff]
        %v3394 = vld [vmem:[%s31 + $0x68] sm:$0xff]
        %v3395 = vld [vmem:[%s31 + $0x70] sm:$0xff]
        %v3396 = vld [vmem:[%s31 + $0x78] sm:$0xff]
        %v3397 = vld [vmem:[%s33] sm:$0xff]
        %v3398 = vld [vmem:[%s33 + $0x8] sm:$0xff]
        %v3399 = vld [vmem:[%s33 + $0x10] sm:$0xff]
        %v3400 = vld [vmem:[%s33 + $0x18] sm:$0xff]
        %v3401 = vld [vmem:[%s33 + $0x20] sm:$0xff]
        %v3402 = vld [vmem:[%s33 + $0x28] sm:$0xff]
        %v3403 = vld [vmem:[%s33 + $0x30] sm:$0xff]
        %v3404 = vld [vmem:[%s33 + $0x38] sm:$0xff]
        %v3405 = vld [vmem:[%s35] sm:$0xff]
        %v3406 = vld [vmem:[%s35 + $0x8] sm:$0xff]
        %v3407 = vld [vmem:[%s35 + $0x10] sm:$0xff]
        %v3408 = vld [vmem:[%s35 + $0x18] sm:$0xff]
        %v3409 = vld [vmem:[%s37] sm:$0xff]
        %v3410 = vld [vmem:[%s37 + $0x8] sm:$0xff]
        %v3411 = vld [vmem:[%s37 + $0x10] sm:$0xff]
        %v3412 = vld [vmem:[%s37 + $0x18] sm:$0xff]
        %v3413 = vld [vmem:[%s39] sm:$0xff]
        %v3414 = vld [vmem:[%s39 + $0x8] sm:$0xff]
        %v3415 = vld [vmem:[%s39 + $0x10] sm:$0xff]
        %v3416 = vld [vmem:[%s39 + $0x18] sm:$0xff]
        %v3417 = vld [vmem:[%s41] sm:$0xff]
        %v3418 = vld [vmem:[%s41 + $0x8] sm:$0xff]
        %v3419 = vld [vmem:[%s41 + $0x10] sm:$0xff]
        %v3420 = vld [vmem:[%s41 + $0x18] sm:$0xff]
        %v3421 = vld [vmem:[%s43] sm:$0xff]
        %v3422 = vld [vmem:[%s43 + $0x8] sm:$0xff]
        %v3423 = vld [vmem:[%s43 + $0x10] sm:$0xff]
        %v3424 = vld [vmem:[%s43 + $0x18] sm:$0xff]
        %v3425 = vld [vmem:[%s43 + $0x20] sm:$0xff]
        %v3426 = vld [vmem:[%s43 + $0x28] sm:$0xff]
        %v3427 = vld [vmem:[%s43 + $0x30] sm:$0xff]
        %v3428 = vld [vmem:[%s43 + $0x38] sm:$0xff]
        %3430 = vset.pattern.permute.xlu0 0
        %3431 = vperm.xlu0 %3430, %v1002
        %v3432 = vpop.permute.xlu0 %3431
        %3435 = vset.pattern.permute.xlu0 0
        %3436 = vperm.xlu0 %3435, %v1003
        %v3437 = vpop.permute.xlu0 %3436
        %3440 = vset.pattern.permute.xlu0 0
        %3441 = vperm.xlu0 %3440, %v1004
        %v3442 = vpop.permute.xlu0 %3441
        %3445 = vset.pattern.permute.xlu0 0
        %3446 = vperm.xlu0 %3445, %v1005
        %v3447 = vpop.permute.xlu0 %3446
        %3450 = vset.pattern.permute.xlu0 0
        %3451 = vperm.xlu0 %3450, %v1006
        %v3452 = vpop.permute.xlu0 %3451
        %3455 = vset.pattern.permute.xlu0 0
        %3456 = vperm.xlu0 %3455, %v1007
        %v3457 = vpop.permute.xlu0 %3456
        %3460 = vset.pattern.permute.xlu0 0
        %3461 = vperm.xlu0 %3460, %v1008
        %v3462 = vpop.permute.xlu0 %3461
        %3465 = vset.pattern.permute.xlu0 0
        %3466 = vperm.xlu0 %3465, %v1009
        %v3467 = vpop.permute.xlu0 %3466
        %v3470 = vsel %vm1145, %v3397, 0
        %v3473 = vsel %vm1145, %v3398, 0
        %v3476 = vsel %vm1145, %v3399, 0
        %v3479 = vsel %vm1145, %v3400, 0
        %v3482 = vsel %vm1145, %v3401, 0
        %v3485 = vsel %vm1145, %v3402, 0
        %v3488 = vsel %vm1145, %v3403, 0
        %v3491 = vsel %vm1145, %v3404, 0
        %v3494 = vsel %vm1145, %v3323, 0
        %3496 = vmatpush.xpose.msra.mxu0 0.0
        %3497 = vmatpush.xpose.msra.mxu0 0.0
        %3498 = vmatpush.xpose.msra.mxu0 0.0
        %3499 = vmatpush.xpose.msra.mxu0 0.0
        %3500 = vmatpush.xpose.msra.mxu0 0.0
        %3501 = vmatpush.xpose.msra.mxu0 0.0
        %3502 = vmatpush.xpose.msra.mxu0 0.0
        %3503 = vmatpush.xpose.msra.mxu0 0.0
        %3504 = vmatpush.xpose.msra.mxu0 0.0
        %3505 = vmatpush.xpose.msra.mxu0 0.0
        %3506 = vmatpush.xpose.msra.mxu0 0.0
        %3507 = vmatpush.xpose.msra.mxu0 0.0
        %3508 = vmatpush.xpose.msra.mxu0 0.0
        %3509 = vmatpush.xpose.msra.mxu0 0.0
        %3510 = vmatpush.xpose.msra.mxu0 %v3494
        %3511 = vmatpush.xpose.msra.mxu0 %v3330
        %3512 = vmatmul.f32.gmra.mxu0 %v3470
        %v3513 = vpop.f32.mrf.mxu0
        %v3514 = vadd.f32 %v3432, %v3513
        %3515 = vmatmul.f32.gmra.mxu0 %v3473
        %v3516 = vpop.f32.mrf.mxu0
        %v3517 = vadd.f32 %v3437, %v3516
        %3518 = vmatmul.f32.gmra.mxu0 %v3476
        %v3519 = vpop.f32.mrf.mxu0
        %v3520 = vadd.f32 %v3442, %v3519
        %3521 = vmatmul.f32.gmra.mxu0 %v3479
        %v3522 = vpop.f32.mrf.mxu0
        %v3523 = vadd.f32 %v3447, %v3522
        %3524 = vmatmul.f32.gmra.mxu0 %v3482
        %v3525 = vpop.f32.mrf.mxu0
        %v3526 = vadd.f32 %v3452, %v3525
        %3527 = vmatmul.f32.gmra.mxu0 %v3485
        %v3528 = vpop.f32.mrf.mxu0
        %v3529 = vadd.f32 %v3457, %v3528
        %3530 = vmatmul.f32.gmra.mxu0 %v3488
        %v3531 = vpop.f32.mrf.mxu0
        %v3532 = vadd.f32 %v3462, %v3531
        %3533 = vmatmul.f32.gmra.mxu0 %v3491
        %v3534 = vpop.f32.mrf.mxu0
        %v3535 = vadd.f32 %v3467, %v3534
        %3536 = vdwg.mxu0
        %v3538 = vperm.slane %v982, 0
        %3540 = vmatpush.msra.mxu0 0.0
        %3541 = vmatpush.msra.mxu0 0.0
        %3542 = vmatpush.msra.mxu0 0.0
        %3543 = vmatpush.msra.mxu0 0.0
        %3544 = vmatpush.msra.mxu0 0.0
        %3545 = vmatpush.msra.mxu0 0.0
        %3546 = vmatpush.msra.mxu0 0.0
        %3547 = vmatpush.msra.mxu0 0.0
        %3548 = vmatpush.msra.mxu0 0.0
        %3549 = vmatpush.msra.mxu0 0.0
        %3550 = vmatpush.msra.mxu0 0.0
        %3551 = vmatpush.msra.mxu0 0.0
        %3552 = vmatpush.msra.mxu0 %v3384
        %3553 = vmatpush.msra.mxu0 %v3383
        %3554 = vmatpush.msra.mxu0 %v3382
        %3555 = vmatpush.msra.mxu0 %v3381
        %3556 = vmatmul.f32.gmra.mxu0 %v3330
        %v3557 = vpop.f32.mrf.mxu0
        %v3558 = vadd.f32 %v3538, %v3557
        %3559 = vmatmul.f32.gmra.mxu0 %v3494
        %v3560 = vpop.f32.mrf.mxu0
        %v3561 = vadd.f32 %v3538, %v3560
        %3562 = vdwg.mxu0
        %v3564 = vsel %vm1341, %v3558, 0
        %v3567 = vsel %vm1341, %v3561, 0
        %3569 = vmatpush.msra.mxu0 0.0
        %3570 = vmatpush.msra.mxu0 0.0
        %3571 = vmatpush.msra.mxu0 0.0
        %3572 = vmatpush.msra.mxu0 0.0
        %3573 = vmatpush.msra.mxu0 0.0
        %3574 = vmatpush.msra.mxu0 0.0
        %3575 = vmatpush.msra.mxu0 0.0
        %3576 = vmatpush.msra.mxu0 0.0
        %3577 = vmatpush.msra.mxu0 0.0
        %3578 = vmatpush.msra.mxu0 0.0
        %3579 = vmatpush.msra.mxu0 0.0
        %3580 = vmatpush.msra.mxu0 0.0
        %3581 = vmatpush.msra.mxu0 0.0
        %3582 = vmatpush.msra.mxu0 0.0
        %3583 = vmatpush.msra.mxu0 0.0
        %3584 = vmatpush.msra.mxu0 %v3514
        %3585 = vmatmul.f32.gmra.mxu0 %v3564
        %v3586 = vpop.f32.mrf.mxu0
        %v3587 = vadd.f32 0.0, %v3586
        %3588 = vmatmul.f32.gmra.mxu0 %v3567
        %v3589 = vpop.f32.mrf.mxu0
        %v3590 = vadd.f32 0.0, %v3589
        %3591 = vdwg.mxu0
        %v3592 = vmul.f32 %v3587, 0.35355338
        %v3593 = vmul.f32 %v3590, 0.35355338
        %v3594 = vsel %vm1373, %v3592, -inf
        %3595 = vmax.xlane.f32.xlu0 %v3594
        %v3596 = vpop.xlane.xlu0 %3595
        %v3597 = vsel %vm1377, %v3593, -inf
        %3598 = vmax.xlane.f32.xlu0 %v3597
        %v3599 = vpop.xlane.xlu0 %3598
        %v3600 = vsub.f32 %v3592, %v3596
        %v3601 = vsub.f32 %v3593, %v3599
        %v3602 = vmul.f32 %v3600, 1.442695
        %v3603 = vpow.pop %v3602
        %v3604 = vmul.f32 %v3601, 1.442695
        %v3605 = vpow.pop %v3604
        %v3606 = vsel %vm1373, %v3603, 0.0
        %3607 = vadd.xlane.f32.xlu0 %v3606
        %v3608 = vpop.xlane.xlu0 %3607
        %v3609 = vsel %vm1377, %v3605, 0.0
        %3610 = vadd.xlane.f32.xlu0 %v3609
        %v3611 = vpop.xlane.xlu0 %3610
        %v3612 = vrcp.pop %v3608
        %v3613 = vmul.f32 %v3608, %v3612
        %v3614 = vsub.f32 1.0, %v3613
        %v3615 = vmul.f32 %v3612, %v3614
        %v3616 = vadd.f32 %v3612, %v3615
        %vm3617 = vweird.f32 %v3608
        %vm3618 = vweird.f32 %v3612
        %vm3619 = vmor %vm3617, %vm3618
        %v3620 = vsel %vm3619, %v3612, %v3616
        %v3621 = vand.u32 2147483647, %v3608
        %vm3622 = vcmp.eq.f32.partialorder %v3621, 8.507059e+37
        %v3623 = vand.u32 %v3608, 2147483648
        %v3624 = vor.u32 1.1754944e-38, %v3623
        %v3625 = vsel %vm3622, %v3624, %v3620
        %v3626 = vmul.f32 %v3603, %v3625
        %v3627 = vrcp.pop %v3611
        %v3628 = vmul.f32 %v3611, %v3627
        %v3629 = vsub.f32 1.0, %v3628
        %v3630 = vmul.f32 %v3627, %v3629
        %v3631 = vadd.f32 %v3627, %v3630
        %vm3632 = vweird.f32 %v3611
        %vm3633 = vweird.f32 %v3627
        %vm3634 = vmor %vm3632, %vm3633
        %v3635 = vsel %vm3634, %v3627, %v3631
        %v3636 = vand.u32 2147483647, %v3611
        %vm3637 = vcmp.eq.f32.partialorder %v3636, 8.507059e+37
        %v3638 = vand.u32 %v3611, 2147483648
        %v3639 = vor.u32 1.1754944e-38, %v3638
        %v3640 = vsel %vm3637, %v3639, %v3635
        %v3641 = vmul.f32 %v3605, %v3640
        %v3643 = vsel %vm1373, %v3626, 0
        %v3646 = vsel %vm1373, %v3641, 0
        %v3649 = vsel %vm1373, %v3526, 0
        %3651 = vmatpush.xpose.msra.mxu0 0.0
        %3652 = vmatpush.xpose.msra.mxu0 0.0
        %3653 = vmatpush.xpose.msra.mxu0 0.0
        %3654 = vmatpush.xpose.msra.mxu0 0.0
        %3655 = vmatpush.xpose.msra.mxu0 0.0
        %3656 = vmatpush.xpose.msra.mxu0 0.0
        %3657 = vmatpush.xpose.msra.mxu0 0.0
        %3658 = vmatpush.xpose.msra.mxu0 0.0
        %3659 = vmatpush.xpose.msra.mxu0 0.0
        %3660 = vmatpush.xpose.msra.mxu0 0.0
        %3661 = vmatpush.xpose.msra.mxu0 0.0
        %3662 = vmatpush.xpose.msra.mxu0 0.0
        %3663 = vmatpush.xpose.msra.mxu0 0.0
        %3664 = vmatpush.xpose.msra.mxu0 0.0
        %3665 = vmatpush.xpose.msra.mxu0 0.0
        %3666 = vmatpush.xpose.msra.mxu0 %v3649
        %3667 = vmatmul.f32.gmra.mxu0 %v3643
        %v3668 = vpop.f32.mrf.mxu0
        %v3669 = vadd.f32 0.0, %v3668
        %3670 = vmatmul.f32.gmra.mxu0 %v3646
        %v3671 = vpop.f32.mrf.mxu0
        %v3672 = vadd.f32 0.0, %v3671
        %3673 = vdwg.mxu0
        %v3675 = vsel %vm1341, %v3669, 0
        %v3678 = vsel %vm1341, %v3672, 0
        %3680 = vmatpush.msra.mxu0 0.0
        %3681 = vmatpush.msra.mxu0 0.0
        %3682 = vmatpush.msra.mxu0 0.0
        %3683 = vmatpush.msra.mxu0 0.0
        %3684 = vmatpush.msra.mxu0 0.0
        %3685 = vmatpush.msra.mxu0 0.0
        %3686 = vmatpush.msra.mxu0 0.0
        %3687 = vmatpush.msra.mxu0 0.0
        %3688 = vmatpush.msra.mxu0 0.0
        %3689 = vmatpush.msra.mxu0 0.0
        %3690 = vmatpush.msra.mxu0 0.0
        %3691 = vmatpush.msra.mxu0 0.0
        %3692 = vmatpush.msra.mxu0 0.0
        %3693 = vmatpush.msra.mxu0 0.0
        %3694 = vmatpush.msra.mxu0 0.0
        %3695 = vmatpush.msra.mxu0 %v3405
        %3696 = vmatmul.f32.gmra.mxu0 %v3675
        %v3697 = vpop.f32.mrf.mxu0
        %v3698 = vadd.f32 0.0, %v3697
        %3699 = vmatmul.f32.gmra.mxu0 %v3678
        %v3700 = vpop.f32.mrf.mxu0
        %v3701 = vadd.f32 0.0, %v3700
        %3702 = vdwg.mxu0
        %v3703 = vperm.slane %v971, 1
        %v3704 = vadd.f32 %v3703, %v3698
        %v3705 = vadd.f32 %v3703, %v3701
        %v3707 = vperm.slane %v983, 0
        %3709 = vmatpush.msra.mxu0 0.0
        %3710 = vmatpush.msra.mxu0 0.0
        %3711 = vmatpush.msra.mxu0 0.0
        %3712 = vmatpush.msra.mxu0 0.0
        %3713 = vmatpush.msra.mxu0 0.0
        %3714 = vmatpush.msra.mxu0 0.0
        %3715 = vmatpush.msra.mxu0 0.0
        %3716 = vmatpush.msra.mxu0 0.0
        %3717 = vmatpush.msra.mxu0 0.0
        %3718 = vmatpush.msra.mxu0 0.0
        %3719 = vmatpush.msra.mxu0 0.0
        %3720 = vmatpush.msra.mxu0 0.0
        %3721 = vmatpush.msra.mxu0 %v3388
        %3722 = vmatpush.msra.mxu0 %v3387
        %3723 = vmatpush.msra.mxu0 %v3386
        %3724 = vmatpush.msra.mxu0 %v3385
        %3725 = vmatmul.f32.gmra.mxu0 %v3330
        %v3726 = vpop.f32.mrf.mxu0
        %v3727 = vadd.f32 %v3707, %v3726
        %3728 = vmatmul.f32.gmra.mxu0 %v3494
        %v3729 = vpop.f32.mrf.mxu0
        %v3730 = vadd.f32 %v3707, %v3729
        %3731 = vdwg.mxu0
        %v3733 = vsel %vm1341, %v3727, 0
        %v3736 = vsel %vm1341, %v3730, 0
        %3738 = vmatpush.msra.mxu0 0.0
        %3739 = vmatpush.msra.mxu0 0.0
        %3740 = vmatpush.msra.mxu0 0.0
        %3741 = vmatpush.msra.mxu0 0.0
        %3742 = vmatpush.msra.mxu0 0.0
        %3743 = vmatpush.msra.mxu0 0.0
        %3744 = vmatpush.msra.mxu0 0.0
        %3745 = vmatpush.msra.mxu0 0.0
        %3746 = vmatpush.msra.mxu0 0.0
        %3747 = vmatpush.msra.mxu0 0.0
        %3748 = vmatpush.msra.mxu0 0.0
        %3749 = vmatpush.msra.mxu0 0.0
        %3750 = vmatpush.msra.mxu0 0.0
        %3751 = vmatpush.msra.mxu0 0.0
        %3752 = vmatpush.msra.mxu0 0.0
        %3753 = vmatpush.msra.mxu0 %v3517
        %3754 = vmatmul.f32.gmra.mxu0 %v3733
        %v3755 = vpop.f32.mrf.mxu0
        %v3756 = vadd.f32 0.0, %v3755
        %3757 = vmatmul.f32.gmra.mxu0 %v3736
        %v3758 = vpop.f32.mrf.mxu0
        %v3759 = vadd.f32 0.0, %v3758
        %3760 = vdwg.mxu0
        %v3761 = vmul.f32 %v3756, 0.35355338
        %v3762 = vmul.f32 %v3759, 0.35355338
        %v3763 = vsel %vm1373, %v3761, -inf
        %3764 = vmax.xlane.f32.xlu0 %v3763
        %v3765 = vpop.xlane.xlu0 %3764
        %v3766 = vsel %vm1377, %v3762, -inf
        %3767 = vmax.xlane.f32.xlu0 %v3766
        %v3768 = vpop.xlane.xlu0 %3767
        %v3769 = vsub.f32 %v3761, %v3765
        %v3770 = vsub.f32 %v3762, %v3768
        %v3771 = vmul.f32 %v3769, 1.442695
        %v3772 = vpow.pop %v3771
        %v3773 = vmul.f32 %v3770, 1.442695
        %v3774 = vpow.pop %v3773
        %v3775 = vsel %vm1373, %v3772, 0.0
        %3776 = vadd.xlane.f32.xlu0 %v3775
        %v3777 = vpop.xlane.xlu0 %3776
        %v3778 = vsel %vm1377, %v3774, 0.0
        %3779 = vadd.xlane.f32.xlu0 %v3778
        %v3780 = vpop.xlane.xlu0 %3779
        %v3781 = vrcp.pop %v3777
        %v3782 = vmul.f32 %v3777, %v3781
        %v3783 = vsub.f32 1.0, %v3782
        %v3784 = vmul.f32 %v3781, %v3783
        %v3785 = vadd.f32 %v3781, %v3784
        %vm3786 = vweird.f32 %v3777
        %vm3787 = vweird.f32 %v3781
        %vm3788 = vmor %vm3786, %vm3787
        %v3789 = vsel %vm3788, %v3781, %v3785
        %v3790 = vand.u32 2147483647, %v3777
        %vm3791 = vcmp.eq.f32.partialorder %v3790, 8.507059e+37
        %v3792 = vand.u32 %v3777, 2147483648
        %v3793 = vor.u32 1.1754944e-38, %v3792
        %v3794 = vsel %vm3791, %v3793, %v3789
        %v3795 = vmul.f32 %v3772, %v3794
        %v3796 = vrcp.pop %v3780
        %v3797 = vmul.f32 %v3780, %v3796
        %v3798 = vsub.f32 1.0, %v3797
        %v3799 = vmul.f32 %v3796, %v3798
        %v3800 = vadd.f32 %v3796, %v3799
        %vm3801 = vweird.f32 %v3780
        %vm3802 = vweird.f32 %v3796
        %vm3803 = vmor %vm3801, %vm3802
        %v3804 = vsel %vm3803, %v3796, %v3800
        %v3805 = vand.u32 2147483647, %v3780
        %vm3806 = vcmp.eq.f32.partialorder %v3805, 8.507059e+37
        %v3807 = vand.u32 %v3780, 2147483648
        %v3808 = vor.u32 1.1754944e-38, %v3807
        %v3809 = vsel %vm3806, %v3808, %v3804
        %v3810 = vmul.f32 %v3774, %v3809
        %v3812 = vsel %vm1373, %v3795, 0
        %v3815 = vsel %vm1373, %v3810, 0
        %v3818 = vsel %vm1373, %v3529, 0
        %3820 = vmatpush.xpose.msra.mxu0 0.0
        %3821 = vmatpush.xpose.msra.mxu0 0.0
        %3822 = vmatpush.xpose.msra.mxu0 0.0
        %3823 = vmatpush.xpose.msra.mxu0 0.0
        %3824 = vmatpush.xpose.msra.mxu0 0.0
        %3825 = vmatpush.xpose.msra.mxu0 0.0
        %3826 = vmatpush.xpose.msra.mxu0 0.0
        %3827 = vmatpush.xpose.msra.mxu0 0.0
        %3828 = vmatpush.xpose.msra.mxu0 0.0
        %3829 = vmatpush.xpose.msra.mxu0 0.0
        %3830 = vmatpush.xpose.msra.mxu0 0.0
        %3831 = vmatpush.xpose.msra.mxu0 0.0
        %3832 = vmatpush.xpose.msra.mxu0 0.0
        %3833 = vmatpush.xpose.msra.mxu0 0.0
        %3834 = vmatpush.xpose.msra.mxu0 0.0
        %3835 = vmatpush.xpose.msra.mxu0 %v3818
        %3836 = vmatmul.f32.gmra.mxu0 %v3812
        %v3837 = vpop.f32.mrf.mxu0
        %v3838 = vadd.f32 0.0, %v3837
        %3839 = vmatmul.f32.gmra.mxu0 %v3815
        %v3840 = vpop.f32.mrf.mxu0
        %v3841 = vadd.f32 0.0, %v3840
        %3842 = vdwg.mxu0
        %v3844 = vsel %vm1341, %v3838, 0
        %v3847 = vsel %vm1341, %v3841, 0
        %3849 = vmatpush.msra.mxu0 0.0
        %3850 = vmatpush.msra.mxu0 0.0
        %3851 = vmatpush.msra.mxu0 0.0
        %3852 = vmatpush.msra.mxu0 0.0
        %3853 = vmatpush.msra.mxu0 0.0
        %3854 = vmatpush.msra.mxu0 0.0
        %3855 = vmatpush.msra.mxu0 0.0
        %3856 = vmatpush.msra.mxu0 0.0
        %3857 = vmatpush.msra.mxu0 0.0
        %3858 = vmatpush.msra.mxu0 0.0
        %3859 = vmatpush.msra.mxu0 0.0
        %3860 = vmatpush.msra.mxu0 0.0
        %3861 = vmatpush.msra.mxu0 0.0
        %3862 = vmatpush.msra.mxu0 0.0
        %3863 = vmatpush.msra.mxu0 0.0
        %3864 = vmatpush.msra.mxu0 %v3406
        %3865 = vmatmul.f32.gmra.mxu0 %v3844
        %v3866 = vpop.f32.mrf.mxu0
        %v3867 = vadd.f32 0.0, %v3866
        %3868 = vmatmul.f32.gmra.mxu0 %v3847
        %v3869 = vpop.f32.mrf.mxu0
        %v3870 = vadd.f32 0.0, %v3869
        %3871 = vdwg.mxu0
        %v3872 = vadd.f32 %v3704, %v3867
        %v3873 = vadd.f32 %v3705, %v3870
        %v3875 = vperm.slane %v984, 0
        %3877 = vmatpush.msra.mxu0 0.0
        %3878 = vmatpush.msra.mxu0 0.0
        %3879 = vmatpush.msra.mxu0 0.0
        %3880 = vmatpush.msra.mxu0 0.0
        %3881 = vmatpush.msra.mxu0 0.0
        %3882 = vmatpush.msra.mxu0 0.0
        %3883 = vmatpush.msra.mxu0 0.0
        %3884 = vmatpush.msra.mxu0 0.0
        %3885 = vmatpush.msra.mxu0 0.0
        %3886 = vmatpush.msra.mxu0 0.0
        %3887 = vmatpush.msra.mxu0 0.0
        %3888 = vmatpush.msra.mxu0 0.0
        %3889 = vmatpush.msra.mxu0 %v3392
        %3890 = vmatpush.msra.mxu0 %v3391
        %3891 = vmatpush.msra.mxu0 %v3390
        %3892 = vmatpush.msra.mxu0 %v3389
        %3893 = vmatmul.f32.gmra.mxu0 %v3330
        %v3894 = vpop.f32.mrf.mxu0
        %v3895 = vadd.f32 %v3875, %v3894
        %3896 = vmatmul.f32.gmra.mxu0 %v3494
        %v3897 = vpop.f32.mrf.mxu0
        %v3898 = vadd.f32 %v3875, %v3897
        %3899 = vdwg.mxu0
        %v3901 = vsel %vm1341, %v3895, 0
        %v3904 = vsel %vm1341, %v3898, 0
        %3906 = vmatpush.msra.mxu0 0.0
        %3907 = vmatpush.msra.mxu0 0.0
        %3908 = vmatpush.msra.mxu0 0.0
        %3909 = vmatpush.msra.mxu0 0.0
        %3910 = vmatpush.msra.mxu0 0.0
        %3911 = vmatpush.msra.mxu0 0.0
        %3912 = vmatpush.msra.mxu0 0.0
        %3913 = vmatpush.msra.mxu0 0.0
        %3914 = vmatpush.msra.mxu0 0.0
        %3915 = vmatpush.msra.mxu0 0.0
        %3916 = vmatpush.msra.mxu0 0.0
        %3917 = vmatpush.msra.mxu0 0.0
        %3918 = vmatpush.msra.mxu0 0.0
        %3919 = vmatpush.msra.mxu0 0.0
        %3920 = vmatpush.msra.mxu0 0.0
        %3921 = vmatpush.msra.mxu0 %v3520
        %3922 = vmatmul.f32.gmra.mxu0 %v3901
        %v3923 = vpop.f32.mrf.mxu0
        %v3924 = vadd.f32 0.0, %v3923
        %3925 = vmatmul.f32.gmra.mxu0 %v3904
        %v3926 = vpop.f32.mrf.mxu0
        %v3927 = vadd.f32 0.0, %v3926
        %3928 = vdwg.mxu0
        %v3929 = vmul.f32 %v3924, 0.35355338
        %v3930 = vmul.f32 %v3927, 0.35355338
        %v3931 = vsel %vm1373, %v3929, -inf
        %3932 = vmax.xlane.f32.xlu0 %v3931
        %v3933 = vpop.xlane.xlu0 %3932
        %v3934 = vsel %vm1377, %v3930, -inf
        %3935 = vmax.xlane.f32.xlu0 %v3934
        %v3936 = vpop.xlane.xlu0 %3935
        %v3937 = vsub.f32 %v3929, %v3933
        %v3938 = vsub.f32 %v3930, %v3936
        %v3939 = vmul.f32 %v3937, 1.442695
        %v3940 = vpow.pop %v3939
        %v3941 = vmul.f32 %v3938, 1.442695
        %v3942 = vpow.pop %v3941
        %v3943 = vsel %vm1373, %v3940, 0.0
        %3944 = vadd.xlane.f32.xlu0 %v3943
        %v3945 = vpop.xlane.xlu0 %3944
        %v3946 = vsel %vm1377, %v3942, 0.0
        %3947 = vadd.xlane.f32.xlu0 %v3946
        %v3948 = vpop.xlane.xlu0 %3947
        %v3949 = vrcp.pop %v3945
        %v3950 = vmul.f32 %v3945, %v3949
        %v3951 = vsub.f32 1.0, %v3950
        %v3952 = vmul.f32 %v3949, %v3951
        %v3953 = vadd.f32 %v3949, %v3952
        %vm3954 = vweird.f32 %v3945
        %vm3955 = vweird.f32 %v3949
        %vm3956 = vmor %vm3954, %vm3955
        %v3957 = vsel %vm3956, %v3949, %v3953
        %v3958 = vand.u32 2147483647, %v3945
        %vm3959 = vcmp.eq.f32.partialorder %v3958, 8.507059e+37
        %v3960 = vand.u32 %v3945, 2147483648
        %v3961 = vor.u32 1.1754944e-38, %v3960
        %v3962 = vsel %vm3959, %v3961, %v3957
        %v3963 = vmul.f32 %v3940, %v3962
        %v3964 = vrcp.pop %v3948
        %v3965 = vmul.f32 %v3948, %v3964
        %v3966 = vsub.f32 1.0, %v3965
        %v3967 = vmul.f32 %v3964, %v3966
        %v3968 = vadd.f32 %v3964, %v3967
        %vm3969 = vweird.f32 %v3948
        %vm3970 = vweird.f32 %v3964
        %vm3971 = vmor %vm3969, %vm3970
        %v3972 = vsel %vm3971, %v3964, %v3968
        %v3973 = vand.u32 2147483647, %v3948
        %vm3974 = vcmp.eq.f32.partialorder %v3973, 8.507059e+37
        %v3975 = vand.u32 %v3948, 2147483648
        %v3976 = vor.u32 1.1754944e-38, %v3975
        %v3977 = vsel %vm3974, %v3976, %v3972
        %v3978 = vmul.f32 %v3942, %v3977
        %v3980 = vsel %vm1373, %v3963, 0
        %v3983 = vsel %vm1373, %v3978, 0
        %v3986 = vsel %vm1373, %v3532, 0
        %3988 = vmatpush.xpose.msra.mxu0 0.0
        %3989 = vmatpush.xpose.msra.mxu0 0.0
        %3990 = vmatpush.xpose.msra.mxu0 0.0
        %3991 = vmatpush.xpose.msra.mxu0 0.0
        %3992 = vmatpush.xpose.msra.mxu0 0.0
        %3993 = vmatpush.xpose.msra.mxu0 0.0
        %3994 = vmatpush.xpose.msra.mxu0 0.0
        %3995 = vmatpush.xpose.msra.mxu0 0.0
        %3996 = vmatpush.xpose.msra.mxu0 0.0
        %3997 = vmatpush.xpose.msra.mxu0 0.0
        %3998 = vmatpush.xpose.msra.mxu0 0.0
        %3999 = vmatpush.xpose.msra.mxu0 0.0
        %4000 = vmatpush.xpose.msra.mxu0 0.0
        %4001 = vmatpush.xpose.msra.mxu0 0.0
        %4002 = vmatpush.xpose.msra.mxu0 0.0
        %4003 = vmatpush.xpose.msra.mxu0 %v3986
        %4004 = vmatmul.f32.gmra.mxu0 %v3980
        %v4005 = vpop.f32.mrf.mxu0
        %v4006 = vadd.f32 0.0, %v4005
        %4007 = vmatmul.f32.gmra.mxu0 %v3983
        %v4008 = vpop.f32.mrf.mxu0
        %v4009 = vadd.f32 0.0, %v4008
        %4010 = vdwg.mxu0
        %v4012 = vsel %vm1341, %v4006, 0
        %v4015 = vsel %vm1341, %v4009, 0
        %4017 = vmatpush.msra.mxu0 0.0
        %4018 = vmatpush.msra.mxu0 0.0
        %4019 = vmatpush.msra.mxu0 0.0
        %4020 = vmatpush.msra.mxu0 0.0
        %4021 = vmatpush.msra.mxu0 0.0
        %4022 = vmatpush.msra.mxu0 0.0
        %4023 = vmatpush.msra.mxu0 0.0
        %4024 = vmatpush.msra.mxu0 0.0
        %4025 = vmatpush.msra.mxu0 0.0
        %4026 = vmatpush.msra.mxu0 0.0
        %4027 = vmatpush.msra.mxu0 0.0
        %4028 = vmatpush.msra.mxu0 0.0
        %4029 = vmatpush.msra.mxu0 0.0
        %4030 = vmatpush.msra.mxu0 0.0
        %4031 = vmatpush.msra.mxu0 0.0
        %4032 = vmatpush.msra.mxu0 %v3407
        %4033 = vmatmul.f32.gmra.mxu0 %v4012
        %v4034 = vpop.f32.mrf.mxu0
        %v4035 = vadd.f32 0.0, %v4034
        %4036 = vmatmul.f32.gmra.mxu0 %v4015
        %v4037 = vpop.f32.mrf.mxu0
        %v4038 = vadd.f32 0.0, %v4037
        %4039 = vdwg.mxu0
        %v4040 = vadd.f32 %v3872, %v4035
        %v4041 = vadd.f32 %v3873, %v4038
        %v4043 = vperm.slane %v985, 0
        %4045 = vmatpush.msra.mxu0 0.0
        %4046 = vmatpush.msra.mxu0 0.0
        %4047 = vmatpush.msra.mxu0 0.0
        %4048 = vmatpush.msra.mxu0 0.0
        %4049 = vmatpush.msra.mxu0 0.0
        %4050 = vmatpush.msra.mxu0 0.0
        %4051 = vmatpush.msra.mxu0 0.0
        %4052 = vmatpush.msra.mxu0 0.0
        %4053 = vmatpush.msra.mxu0 0.0
        %4054 = vmatpush.msra.mxu0 0.0
        %4055 = vmatpush.msra.mxu0 0.0
        %4056 = vmatpush.msra.mxu0 0.0
        %4057 = vmatpush.msra.mxu0 %v3396
        %4058 = vmatpush.msra.mxu0 %v3395
        %4059 = vmatpush.msra.mxu0 %v3394
        %4060 = vmatpush.msra.mxu0 %v3393
        %4061 = vmatmul.f32.gmra.mxu0 %v3330
        %v4062 = vpop.f32.mrf.mxu0
        %v4063 = vadd.f32 %v4043, %v4062
        %4064 = vmatmul.f32.gmra.mxu0 %v3494
        %v4065 = vpop.f32.mrf.mxu0
        %v4066 = vadd.f32 %v4043, %v4065
        %4067 = vdwg.mxu0
        %v4069 = vsel %vm1341, %v4063, 0
        %v4072 = vsel %vm1341, %v4066, 0
        %4074 = vmatpush.msra.mxu0 0.0
        %4075 = vmatpush.msra.mxu0 0.0
        %4076 = vmatpush.msra.mxu0 0.0
        %4077 = vmatpush.msra.mxu0 0.0
        %4078 = vmatpush.msra.mxu0 0.0
        %4079 = vmatpush.msra.mxu0 0.0
        %4080 = vmatpush.msra.mxu0 0.0
        %4081 = vmatpush.msra.mxu0 0.0
        %4082 = vmatpush.msra.mxu0 0.0
        %4083 = vmatpush.msra.mxu0 0.0
        %4084 = vmatpush.msra.mxu0 0.0
        %4085 = vmatpush.msra.mxu0 0.0
        %4086 = vmatpush.msra.mxu0 0.0
        %4087 = vmatpush.msra.mxu0 0.0
        %4088 = vmatpush.msra.mxu0 0.0
        %4089 = vmatpush.msra.mxu0 %v3523
        %4090 = vmatmul.f32.gmra.mxu0 %v4069
        %v4091 = vpop.f32.mrf.mxu0
        %v4092 = vadd.f32 0.0, %v4091
        %4093 = vmatmul.f32.gmra.mxu0 %v4072
        %v4094 = vpop.f32.mrf.mxu0
        %v4095 = vadd.f32 0.0, %v4094
        %4096 = vdwg.mxu0
        %v4097 = vmul.f32 %v4092, 0.35355338
        %v4098 = vmul.f32 %v4095, 0.35355338
        %v4099 = vsel %vm1373, %v4097, -inf
        %4100 = vmax.xlane.f32.xlu0 %v4099
        %v4101 = vpop.xlane.xlu0 %4100
        %v4102 = vsel %vm1377, %v4098, -inf
        %4103 = vmax.xlane.f32.xlu0 %v4102
        %v4104 = vpop.xlane.xlu0 %4103
        %v4105 = vsub.f32 %v4097, %v4101
        %v4106 = vsub.f32 %v4098, %v4104
        %v4107 = vmul.f32 %v4105, 1.442695
        %v4108 = vpow.pop %v4107
        %v4109 = vmul.f32 %v4106, 1.442695
        %v4110 = vpow.pop %v4109
        %v4111 = vsel %vm1373, %v4108, 0.0
        %4112 = vadd.xlane.f32.xlu0 %v4111
        %v4113 = vpop.xlane.xlu0 %4112
        %v4114 = vsel %vm1377, %v4110, 0.0
        %4115 = vadd.xlane.f32.xlu0 %v4114
        %v4116 = vpop.xlane.xlu0 %4115
        %v4117 = vrcp.pop %v4113
        %v4118 = vmul.f32 %v4113, %v4117
        %v4119 = vsub.f32 1.0, %v4118
        %v4120 = vmul.f32 %v4117, %v4119
        %v4121 = vadd.f32 %v4117, %v4120
        %vm4122 = vweird.f32 %v4113
        %vm4123 = vweird.f32 %v4117
        %vm4124 = vmor %vm4122, %vm4123
        %v4125 = vsel %vm4124, %v4117, %v4121
        %v4126 = vand.u32 2147483647, %v4113
        %vm4127 = vcmp.eq.f32.partialorder %v4126, 8.507059e+37
        %v4128 = vand.u32 %v4113, 2147483648
        %v4129 = vor.u32 1.1754944e-38, %v4128
        %v4130 = vsel %vm4127, %v4129, %v4125
        %v4131 = vmul.f32 %v4108, %v4130
        %v4132 = vrcp.pop %v4116
        %v4133 = vmul.f32 %v4116, %v4132
        %v4134 = vsub.f32 1.0, %v4133
        %v4135 = vmul.f32 %v4132, %v4134
        %v4136 = vadd.f32 %v4132, %v4135
        %vm4137 = vweird.f32 %v4116
        %vm4138 = vweird.f32 %v4132
        %vm4139 = vmor %vm4137, %vm4138
        %v4140 = vsel %vm4139, %v4132, %v4136
        %v4141 = vand.u32 2147483647, %v4116
        %vm4142 = vcmp.eq.f32.partialorder %v4141, 8.507059e+37
        %v4143 = vand.u32 %v4116, 2147483648
        %v4144 = vor.u32 1.1754944e-38, %v4143
        %v4145 = vsel %vm4142, %v4144, %v4140
        %v4146 = vmul.f32 %v4110, %v4145
        %v4148 = vsel %vm1373, %v4131, 0
        %v4151 = vsel %vm1373, %v4146, 0
        %v4154 = vsel %vm1373, %v3535, 0
        %4156 = vmatpush.xpose.msra.mxu0 0.0
        %4157 = vmatpush.xpose.msra.mxu0 0.0
        %4158 = vmatpush.xpose.msra.mxu0 0.0
        %4159 = vmatpush.xpose.msra.mxu0 0.0
        %4160 = vmatpush.xpose.msra.mxu0 0.0
        %4161 = vmatpush.xpose.msra.mxu0 0.0
        %4162 = vmatpush.xpose.msra.mxu0 0.0
        %4163 = vmatpush.xpose.msra.mxu0 0.0
        %4164 = vmatpush.xpose.msra.mxu0 0.0
        %4165 = vmatpush.xpose.msra.mxu0 0.0
        %4166 = vmatpush.xpose.msra.mxu0 0.0
        %4167 = vmatpush.xpose.msra.mxu0 0.0
        %4168 = vmatpush.xpose.msra.mxu0 0.0
        %4169 = vmatpush.xpose.msra.mxu0 0.0
        %4170 = vmatpush.xpose.msra.mxu0 0.0
        %4171 = vmatpush.xpose.msra.mxu0 %v4154
        %4172 = vmatmul.f32.gmra.mxu0 %v4148
        %v4173 = vpop.f32.mrf.mxu0
        %v4174 = vadd.f32 0.0, %v4173
        %4175 = vmatmul.f32.gmra.mxu0 %v4151
        %v4176 = vpop.f32.mrf.mxu0
        %v4177 = vadd.f32 0.0, %v4176
        %4178 = vdwg.mxu0
        %v4180 = vsel %vm1341, %v4174, 0
        %v4183 = vsel %vm1341, %v4177, 0
        %4185 = vmatpush.msra.mxu0 0.0
        %4186 = vmatpush.msra.mxu0 0.0
        %4187 = vmatpush.msra.mxu0 0.0
        %4188 = vmatpush.msra.mxu0 0.0
        %4189 = vmatpush.msra.mxu0 0.0
        %4190 = vmatpush.msra.mxu0 0.0
        %4191 = vmatpush.msra.mxu0 0.0
        %4192 = vmatpush.msra.mxu0 0.0
        %4193 = vmatpush.msra.mxu0 0.0
        %4194 = vmatpush.msra.mxu0 0.0
        %4195 = vmatpush.msra.mxu0 0.0
        %4196 = vmatpush.msra.mxu0 0.0
        %4197 = vmatpush.msra.mxu0 0.0
        %4198 = vmatpush.msra.mxu0 0.0
        %4199 = vmatpush.msra.mxu0 0.0
        %4200 = vmatpush.msra.mxu0 %v3408
        %4201 = vmatmul.f32.gmra.mxu0 %v4180
        %v4202 = vpop.f32.mrf.mxu0
        %v4203 = vadd.f32 0.0, %v4202
        %4204 = vmatmul.f32.gmra.mxu0 %v4183
        %v4205 = vpop.f32.mrf.mxu0
        %v4206 = vadd.f32 0.0, %v4205
        %4207 = vdwg.mxu0
        %v4208 = vadd.f32 %v4040, %v4203
        %v4209 = vadd.f32 %v4041, %v4206
        %v4210 = vadd.f32 %v3322, %v4208
        %v4211 = vadd.f32 %v3323, %v4209
        %v4212 = vsel %vm1145, %v4210, 0.0
        %4213 = vadd.xlane.f32.xlu0 %v4212
        %v4214 = vpop.xlane.xlu0 %4213
        %v4215 = vsel %vm1149, %v4211, 0.0
        %4216 = vadd.xlane.f32.xlu0 %v4215
        %v4217 = vpop.xlane.xlu0 %4216
        %v4218 = vmul.f32 %v4214, %v1159
        %v4219 = vmul.f32 %v4217, %v1159
        %v4220 = vsub.f32 %v4210, %v4218
        %v4221 = vsub.f32 %v4211, %v4219
        %v4222 = vmul.f32 %v4220, %v4220
        %v4223 = vmul.f32 %v4221, %v4221
        %v4224 = vsel %vm1145, %v4222, 0.0
        %4225 = vadd.xlane.f32.xlu0 %v4224
        %v4226 = vpop.xlane.xlu0 %4225
        %v4227 = vsel %vm1149, %v4223, 0.0
        %4228 = vadd.xlane.f32.xlu0 %v4227
        %v4229 = vpop.xlane.xlu0 %4228
        %v4230 = vmul.f32 %v4226, %v1159
        %v4231 = vmul.f32 %v4229, %v1159
        %v4232 = vadd.f32 %v4230, 1e-05
        %v4233 = vadd.f32 %v4231, 1e-05
        %v4234 = vrsqrt.pop %v4232
        %v4235 = vmul.f32 %v4234, %v4232
        %v4236 = vmul.f32 %v4235, %v4234
        %v4237 = vmul.f32 0.5, %v4236
        %v4238 = vsub.f32 1.5, %v4237
        %v4239 = vmul.f32 %v4234, %v4238
        %vm4240 = vweird.f32 %v4232
        %vm4241 = vweird.f32 %v4234
        %vm4242 = vmor %vm4240, %vm4241
        %v4243 = vsel %vm4242, %v4234, %v4239
        %v4244 = vrsqrt.pop %v4233
        %v4245 = vmul.f32 %v4244, %v4233
        %v4246 = vmul.f32 %v4245, %v4244
        %v4247 = vmul.f32 0.5, %v4246
        %v4248 = vsub.f32 1.5, %v4247
        %v4249 = vmul.f32 %v4244, %v4248
        %vm4250 = vweird.f32 %v4233
        %vm4251 = vweird.f32 %v4244
        %vm4252 = vmor %vm4250, %vm4251
        %v4253 = vsel %vm4252, %v4244, %v4249
        %v4254 = vmul.f32 %v4220, %v4243
        %v4255 = vmul.f32 %v4221, %v4253
        %v4256 = vperm.slane %v970, 7
        %v4257 = vmul.f32 %v4254, %v4256
        %v4258 = vmul.f32 %v4255, %v4256
        %v4259 = vperm.slane %v971, 0
        %v4260 = vadd.f32 %v4257, %v4259
        %v4261 = vadd.f32 %v4258, %v4259
        %v4263 = vrot.slane %v971, 2
        %v4266 = vsel %vm1145, %v3379, 0
        %4268 = vmatpush.msra.mxu0 0.0
        %4269 = vmatpush.msra.mxu0 0.0
        %4270 = vmatpush.msra.mxu0 0.0
        %4271 = vmatpush.msra.mxu0 0.0
        %4272 = vmatpush.msra.mxu0 0.0
        %4273 = vmatpush.msra.mxu0 0.0
        %4274 = vmatpush.msra.mxu0 0.0
        %4275 = vmatpush.msra.mxu0 0.0
        %4276 = vmatpush.msra.mxu0 0.0
        %4277 = vmatpush.msra.mxu0 0.0
        %4278 = vmatpush.msra.mxu0 0.0
        %4279 = vmatpush.msra.mxu0 0.0
        %4280 = vmatpush.msra.mxu0 %v3412
        %4281 = vmatpush.msra.mxu0 %v3411
        %4282 = vmatpush.msra.mxu0 %v3410
        %4283 = vmatpush.msra.mxu0 %v3409
        %4284 = vmatmul.f32.gmra.mxu0 %v4266
        %v4285 = vpop.f32.mrf.mxu0
        %v4286 = vadd.f32 %v4263, %v4285
        %4287 = vdwg.mxu0
        %v4288 = vrot.slane %v971, 3
        %v4291 = vsel %vm1145, %v4286, 0
        %4293 = vmatpush.msra.mxu0 0.0
        %4294 = vmatpush.msra.mxu0 0.0
        %4295 = vmatpush.msra.mxu0 0.0
        %4296 = vmatpush.msra.mxu0 0.0
        %4297 = vmatpush.msra.mxu0 0.0
        %4298 = vmatpush.msra.mxu0 0.0
        %4299 = vmatpush.msra.mxu0 0.0
        %4300 = vmatpush.msra.mxu0 0.0
        %4301 = vmatpush.msra.mxu0 0.0
        %4302 = vmatpush.msra.mxu0 0.0
        %4303 = vmatpush.msra.mxu0 0.0
        %4304 = vmatpush.msra.mxu0 0.0
        %4305 = vmatpush.msra.mxu0 %v3416
        %4306 = vmatpush.msra.mxu0 %v3415
        %4307 = vmatpush.msra.mxu0 %v3414
        %4308 = vmatpush.msra.mxu0 %v3413
        %4309 = vmatmul.f32.gmra.mxu0 %v4291
        %v4310 = vpop.f32.mrf.mxu0
        %v4311 = vadd.f32 %v4288, %v4310
        %4312 = vdwg.mxu0
        %v4313 = vperm.slane %v4311, 0
        %v4314 = vadd.f32 %v4260, %v4313
        %v4315 = vadd.f32 %v4261, %v4313
        %v4316 = vsel %vm1145, %v4314, 0.0
        %4317 = vadd.xlane.f32.xlu0 %v4316
        %v4318 = vpop.xlane.xlu0 %4317
        %v4319 = vsel %vm1149, %v4315, 0.0
        %4320 = vadd.xlane.f32.xlu0 %v4319
        %v4321 = vpop.xlane.xlu0 %4320
        %v4322 = vmul.f32 %v4318, %v1159
        %v4323 = vmul.f32 %v4321, %v1159
        %v4324 = vsub.f32 %v4314, %v4322
        %v4325 = vsub.f32 %v4315, %v4323
        %v4326 = vmul.f32 %v4324, %v4324
        %v4327 = vmul.f32 %v4325, %v4325
        %v4328 = vsel %vm1145, %v4326, 0.0
        %4329 = vadd.xlane.f32.xlu0 %v4328
        %v4330 = vpop.xlane.xlu0 %4329
        %v4331 = vsel %vm1149, %v4327, 0.0
        %4332 = vadd.xlane.f32.xlu0 %v4331
        %v4333 = vpop.xlane.xlu0 %4332
        %v4334 = vmul.f32 %v4330, %v1159
        %v4335 = vmul.f32 %v4333, %v1159
        %v4336 = vadd.f32 %v4334, 1e-05
        %v4337 = vadd.f32 %v4335, 1e-05
        %v4338 = vrsqrt.pop %v4336
        %v4339 = vmul.f32 %v4338, %v4336
        %v4340 = vmul.f32 %v4339, %v4338
        %v4341 = vmul.f32 0.5, %v4340
        %v4342 = vsub.f32 1.5, %v4341
        %v4343 = vmul.f32 %v4338, %v4342
        %vm4344 = vweird.f32 %v4336
        %vm4345 = vweird.f32 %v4338
        %vm4346 = vmor %vm4344, %vm4345
        %v4347 = vsel %vm4346, %v4338, %v4343
        %v4348 = vrsqrt.pop %v4337
        %v4349 = vmul.f32 %v4348, %v4337
        %v4350 = vmul.f32 %v4349, %v4348
        %v4351 = vmul.f32 0.5, %v4350
        %v4352 = vsub.f32 1.5, %v4351
        %v4353 = vmul.f32 %v4348, %v4352
        %vm4354 = vweird.f32 %v4337
        %vm4355 = vweird.f32 %v4348
        %vm4356 = vmor %vm4354, %vm4355
        %v4357 = vsel %vm4356, %v4348, %v4353
        %v4358 = vmul.f32 %v4324, %v4347
        %v4359 = vmul.f32 %v4325, %v4357
        %v4360 = vperm.slane %v971, 4
        %v4361 = vmul.f32 %v4358, %v4360
        %v4362 = vmul.f32 %v4359, %v4360
        %v4363 = vperm.slane %v971, 5
        %v4364 = vadd.f32 %v4361, %v4363
        %v4365 = vadd.f32 %v4362, %v4363
        %v4366 = vperm.slane %v973, 2
        %v4368 = vsel %vm1145, %v4364, 0
        %v4371 = vsel %vm1145, %v4365, 0
        %4373 = vmatpush.msra.mxu0 0.0
        %4374 = vmatpush.msra.mxu0 0.0
        %4375 = vmatpush.msra.mxu0 0.0
        %4376 = vmatpush.msra.mxu0 0.0
        %4377 = vmatpush.msra.mxu0 0.0
        %4378 = vmatpush.msra.mxu0 0.0
        %4379 = vmatpush.msra.mxu0 0.0
        %4380 = vmatpush.msra.mxu0 0.0
        %4381 = vmatpush.msra.mxu0 0.0
        %4382 = vmatpush.msra.mxu0 0.0
        %4383 = vmatpush.msra.mxu0 0.0
        %4384 = vmatpush.msra.mxu0 0.0
        %4385 = vmatpush.msra.mxu0 %v3420
        %4386 = vmatpush.msra.mxu0 %v3419
        %4387 = vmatpush.msra.mxu0 %v3418
        %4388 = vmatpush.msra.mxu0 %v3417
        %4389 = vmatmul.f32.gmra.mxu0 %v4368
        %v4390 = vpop.f32.mrf.mxu0
        %v4391 = vadd.f32 %v4366, %v4390
        %4392 = vmatmul.f32.gmra.mxu0 %v4371
        %v4393 = vpop.f32.mrf.mxu0
        %v4394 = vadd.f32 %v4366, %v4393
        %4395 = vdwg.mxu0
        %v4396 = vmax.f32 %v4391, 0.0
        %v4397 = vmax.f32 %v4394, 0.0
        %v4399 = vsel %vm2161, %v4396, 0
        %v4402 = vsel %vm2161, %v4397, 0
        %4404 = vmatpush.msra.mxu0 0.0
        %4405 = vmatpush.msra.mxu0 0.0
        %4406 = vmatpush.msra.mxu0 0.0
        %4407 = vmatpush.msra.mxu0 0.0
        %4408 = vmatpush.msra.mxu0 0.0
        %4409 = vmatpush.msra.mxu0 0.0
        %4410 = vmatpush.msra.mxu0 0.0
        %4411 = vmatpush.msra.mxu0 0.0
        %4412 = vmatpush.msra.mxu0 %v3428
        %4413 = vmatpush.msra.mxu0 %v3427
        %4414 = vmatpush.msra.mxu0 %v3426
        %4415 = vmatpush.msra.mxu0 %v3425
        %4416 = vmatpush.msra.mxu0 %v3424
        %4417 = vmatpush.msra.mxu0 %v3423
        %4418 = vmatpush.msra.mxu0 %v3422
        %4419 = vmatpush.msra.mxu0 %v3421
        %4420 = vmatmul.f32.gmra.mxu0 %v4399
        %v4421 = vpop.f32.mrf.mxu0
        %v4422 = vadd.f32 0.0, %v4421
        %4423 = vmatmul.f32.gmra.mxu0 %v4402
        %v4424 = vpop.f32.mrf.mxu0
        %v4425 = vadd.f32 0.0, %v4424
        %4426 = vdwg.mxu0
        %v4427 = vadd.f32 %v4364, %v4422
        %v4428 = vadd.f32 %v4365, %v4425
        %v4429 = vperm.slane %v971, 6
        %v4430 = vadd.f32 %v4427, %v4429
        %v4431 = vadd.f32 %v4428, %v4429
        %v4432 = vsel %vm1145, %v4430, 0.0
        %4433 = vadd.xlane.f32.xlu0 %v4432
        %v4434 = vpop.xlane.xlu0 %4433
        %v4435 = vsel %vm1149, %v4431, 0.0
        %4436 = vadd.xlane.f32.xlu0 %v4435
        %v4437 = vpop.xlane.xlu0 %4436
        %v4438 = vmul.f32 %v4434, %v1159
        %v4439 = vmul.f32 %v4437, %v1159
        %v4440 = vsub.f32 %v4430, %v4438
        %v4441 = vsub.f32 %v4431, %v4439
        %v4442 = vmul.f32 %v4440, %v4440
        %v4443 = vmul.f32 %v4441, %v4441
        %v4444 = vsel %vm1145, %v4442, 0.0
        %4445 = vadd.xlane.f32.xlu0 %v4444
        %v4446 = vpop.xlane.xlu0 %4445
        %v4447 = vsel %vm1149, %v4443, 0.0
        %4448 = vadd.xlane.f32.xlu0 %v4447
        %v4449 = vpop.xlane.xlu0 %4448
        %v4450 = vmul.f32 %v4446, %v1159
        %v4451 = vmul.f32 %v4449, %v1159
        %v4452 = vadd.f32 %v4450, 1e-05
        %v4453 = vadd.f32 %v4451, 1e-05
        %v4454 = vrsqrt.pop %v4452
        %v4455 = vmul.f32 %v4454, %v4452
        %v4456 = vmul.f32 %v4455, %v4454
        %v4457 = vmul.f32 0.5, %v4456
        %v4458 = vsub.f32 1.5, %v4457
        %v4459 = vmul.f32 %v4454, %v4458
        %vm4460 = vweird.f32 %v4452
        %vm4461 = vweird.f32 %v4454
        %vm4462 = vmor %vm4460, %vm4461
        %v4463 = vsel %vm4462, %v4454, %v4459
        %v4464 = vrsqrt.pop %v4453
        %v4465 = vmul.f32 %v4464, %v4453
        %v4466 = vmul.f32 %v4465, %v4464
        %v4467 = vmul.f32 0.5, %v4466
        %v4468 = vsub.f32 1.5, %v4467
        %v4469 = vmul.f32 %v4464, %v4468
        %vm4470 = vweird.f32 %v4453
        %vm4471 = vweird.f32 %v4464
        %vm4472 = vmor %vm4470, %vm4471
        %v4473 = vsel %vm4472, %v4464, %v4469
        %v4474 = vmul.f32 %v4440, %v4463
        %v4475 = vmul.f32 %v4441, %v4473
        %v4476 = vperm.slane %v971, 7
        %v4477 = vmul.f32 %v4474, %v4476
        %v4478 = vmul.f32 %v4475, %v4476
        %v4479 = vperm.slane %v972, 0
        %v4480 = vadd.f32 %v4477, %v4479
        %v4481 = vadd.f32 %v4478, %v4479
        %v4482 = vld [vmem:[%s45] sm:$0xff]
        %v4483 = vld [vmem:[%s45 + $0x8] sm:$0xff]
        %v4484 = vld [vmem:[%s45 + $0x10] sm:$0xff]
        %v4485 = vld [vmem:[%s45 + $0x18] sm:$0xff]
        %v4486 = vperm.slane %v972, 1
        %v4488 = vsel %vm1145, %v4480, 0
        %v4491 = vsel %vm1145, %v4481, 0
        %4493 = vmatpush.msra.mxu0 0.0
        %4494 = vmatpush.msra.mxu0 0.0
        %4495 = vmatpush.msra.mxu0 0.0
        %4496 = vmatpush.msra.mxu0 0.0
        %4497 = vmatpush.msra.mxu0 0.0
        %4498 = vmatpush.msra.mxu0 0.0
        %4499 = vmatpush.msra.mxu0 0.0
        %4500 = vmatpush.msra.mxu0 0.0
        %4501 = vmatpush.msra.mxu0 0.0
        %4502 = vmatpush.msra.mxu0 0.0
        %4503 = vmatpush.msra.mxu0 0.0
        %4504 = vmatpush.msra.mxu0 0.0
        %4505 = vmatpush.msra.mxu0 %v4485
        %4506 = vmatpush.msra.mxu0 %v4484
        %4507 = vmatpush.msra.mxu0 %v4483
        %4508 = vmatpush.msra.mxu0 %v4482
        %4509 = vmatmul.f32.gmra.mxu0 %v4488
        %v4510 = vpop.f32.mrf.mxu0
        %v4511 = vadd.f32 %v4486, %v4510
        %4512 = vmatmul.f32.gmra.mxu0 %v4491
        %v4513 = vpop.f32.mrf.mxu0
        %v4514 = vadd.f32 %v4486, %v4513
        %4515 = vdwg.mxu0
        %v4516 = vmax.f32 %v4511, 0.0
        %v4517 = vmax.f32 %v4514, 0.0
        %v4518 = vld [vmem:[%s47] sm:$0xff]
        %v4519 = vld [vmem:[%s47 + $0x8] sm:$0xff]
        %v4520 = vld [vmem:[%s59] sm:$0xff]
        %v4521 = vld [vmem:[%s59 + $0x8] sm:$0xff]
        %4523 = vset.pattern.permute.xlu0 0
        %4524 = vperm.xlu0 %4523, %v4520
        %v4525 = vpop.permute.xlu0 %4524
        %4528 = vset.pattern.permute.xlu0 0
        %4529 = vperm.xlu0 %4528, %v4521
        %v4530 = vpop.permute.xlu0 %4529
        %v4533 = vsel %vm1145, %v4518, 0
        %v4536 = vsel %vm1145, %v4519, 0
        %v4539 = vsel %vm1145, %v4516, 0
        %v4542 = vsel %vm1145, %v4517, 0
        %4544 = vmatpush.xpose.msra.mxu0 0.0
        %4545 = vmatpush.xpose.msra.mxu0 0.0
        %4546 = vmatpush.xpose.msra.mxu0 0.0
        %4547 = vmatpush.xpose.msra.mxu0 0.0
        %4548 = vmatpush.xpose.msra.mxu0 0.0
        %4549 = vmatpush.xpose.msra.mxu0 0.0
        %4550 = vmatpush.xpose.msra.mxu0 0.0
        %4551 = vmatpush.xpose.msra.mxu0 0.0
        %4552 = vmatpush.xpose.msra.mxu0 0.0
        %4553 = vmatpush.xpose.msra.mxu0 0.0
        %4554 = vmatpush.xpose.msra.mxu0 0.0
        %4555 = vmatpush.xpose.msra.mxu0 0.0
        %4556 = vmatpush.xpose.msra.mxu0 0.0
        %4557 = vmatpush.xpose.msra.mxu0 0.0
        %4558 = vmatpush.xpose.msra.mxu0 %v4542
        %4559 = vmatpush.xpose.msra.mxu0 %v4539
        %4560 = vmatmul.f32.gmra.mxu0 %v4533
        %v4561 = vpop.f32.mrf.mxu0
        %v4562 = vadd.f32 %v4525, %v4561
        %4563 = vmatmul.f32.gmra.mxu0 %v4536
        %v4564 = vpop.f32.mrf.mxu0
        %v4565 = vadd.f32 %v4530, %v4564
        %4566 = vdwg.mxu0
        %4567 = vst.msk [vmem:[%s968] sm:$0xff] %vm1373, %v4562
        %4568 = vst.msk [vmem:[%s968 + $0x8] sm:$0xff] %vm1373, %v4565
        %p4569 = scmp.lt.s32.totalorder %s78, 1
        %s4570 = scalar_select %p4569, %s78, 1
        %s4571 = smul.addr %s4570, 2
        %s4572 = smul.addr %s4571, 8
        %s4573 = scalar_lea.vmem %s61, %s4572
        %s4574 = sand.u32 %s747, 1
        %s4575 = scalar_lea.sflag [#allocation3], %s4574
        %s4576 = sand.u32 %s747, 1
        %s4577 = scalar_lea.vmem [#allocation2], %s4576
        // Predicated region
        $region141: #{branch_transformer_ae_forward.1} parent=139 // pred_check
          %p4578 = pneg %p731
        $region142: #{branch_transformer_ae_forward.1} parent=139 // pred_check_branch
          %4580 = sbr.rel (%p4578) target = $region144
        $region143: #{branch_transformer_ae_forward.1} parent=139 // pred_region
          _
        $region144: #{branch_transformer_ae_forward.1} parent=139 // pred_fallthru
          _
        // Predicated region
        $region145: #{branch_transformer_ae_forward.1} parent=139 // pred_check
          %p4581 = pneg %p757
        $region146: #{branch_transformer_ae_forward.1} parent=139 // pred_check_branch
          %4583 = sbr.rel (%p4581) target = $region148
        $region147: #{branch_transformer_ae_forward.1} parent=139 // pred_region
          %4585 = vsyncadd %s4575, 0
          %s4586 = scalar_lea.hbm %s63, %s78
          %s4588 = sshll.u32 %s4577, 4
          %s4589 = int_to_ptr.vmem [resolvable:$true] %s4588
          %s4590 = sshll.u32 %s4586, 4
          %s4591 = int_to_ptr.hbm [resolvable:$true] %s4590
          %4593 = dma.vmem_to_hbm [thread:$0]  %s4589, 16, %s4591, %s4575
        $region148: #{branch_transformer_ae_forward.1} parent=139 // pred_fallthru
          _
      $region140: #{branch_transformer_ae_forward.1} parent=5 // pred_fallthru
        _
      %p4594 = scmp.le.s32.totalorder 2, %s73
      // Predicated region
      $region149: #{branch_transformer_ae_forward.1} parent=5 // pred_check
        %p4595 = pneg %p4594
      $region150: #{branch_transformer_ae_forward.1} parent=5 // pred_check_branch
        %4597 = sbr.rel (%p4595) target = $region152
      $region151: #{branch_transformer_ae_forward.1} parent=5 // pred_region
        %s4598 = ssub.s32 %s73, 2
        // Predicated region
        $region153: #{branch_transformer_ae_forward.1} parent=151 // pred_check
          %p4599 = pneg %p737
        $region154: #{branch_transformer_ae_forward.1} parent=151 // pred_check_branch
          %4601 = sbr.rel (%p4599) target = $region156
        $region155: #{branch_transformer_ae_forward.1} parent=151 // pred_region
          %p4602 = scmp.lt.s32.totalorder %s79, 1
          %s4603 = scalar_select %p4602, %s79, 1
          %s4604 = smul.addr %s4603, 2
          %s4605 = smul.addr %s4604, 8
          %s4606 = scalar_lea.vmem %s61, %s4605
        $region156: #{branch_transformer_ae_forward.1} parent=151 // pred_fallthru
          _
        // Predicated region
        $region157: #{branch_transformer_ae_forward.1} parent=151 // pred_check
          %p4607 = pneg %p763
        $region158: #{branch_transformer_ae_forward.1} parent=151 // pred_check_branch
          %4609 = sbr.rel (%p4607) target = $region160
        $region159: #{branch_transformer_ae_forward.1} parent=151 // pred_region
          %s4610 = sand.u32 %s748, 1
          %s4611 = scalar_lea.sflag [#allocation3], %s4610
          %s4612 = sand.u32 %s748, 1
          %s4613 = scalar_lea.vmem [#allocation2], %s4612
          %4615 = dma.done %s4611, 16
        $region160: #{branch_transformer_ae_forward.1} parent=151 // pred_fallthru
          _
      $region152: #{branch_transformer_ae_forward.1} parent=5 // pred_fallthru
        _
    $region6: #{branch_transformer_ae_forward.1} parent=1 // loop_footer
      %s77 = sadd.s32 1, %s73
    $region7: #{branch_transformer_ae_forward.1} parent=1 // loop_footer_branch
      %72 = sbr.rel target = $region3
    $region8: #{branch_transformer_ae_forward.1} parent=1 // loop_exit
      _
    %4616 = vsyncpa [#allocation3], 1
    %s4617 = scalar_lea.sflag [#allocation3], 1
    %4618 = vsyncpa %s4617, 1

</llo_original>
